<compile_context>
chip_gen: v7x
topology: tpu7x:2x2x1
jax: 0.10.0
libtpu: 0.0.40
codegen_flags: <defaults>
</compile_context>

<pallas_src>
import jax
import jax.numpy as jnp
from jax.experimental import pallas as pl
from jax.experimental.pallas import tpu as pltpu

# Logical dims (match the PyTorch Net spec).
D_IN = 812
D_HID = 1000
D_OUT = 784

# 128-aligned padded output dims of the two linears.
D_HID_P = 1024
D_OUT_P = 896


def _round_up(n, m):
    return (n + m - 1) // m * m


def _mlp_kernel(x_ref, w1_ref, b1_ref, w2_ref, b2_ref, o_ref):
    # fc1 + ReLU: cast x to bf16 in VMEM (no extra HBM pass in the wrapper),
    # f32 MXU accumulation, f32 bias+ReLU epilogue on the VPU.
    x = x_ref[...].astype(jnp.bfloat16)
    h = jnp.dot(x, w1_ref[...], preferred_element_type=jnp.float32)
    h = jnp.maximum(h + b1_ref[...], 0.0)
    # Padded hidden columns are relu(0 + 0) = 0, so they contribute nothing
    # to fc2; cast hidden to bf16 so the second matmul also runs at the
    # native MXU bf16 rate.
    y = jnp.dot(h.astype(jnp.bfloat16), w2_ref[...],
                preferred_element_type=jnp.float32)
    o_ref[...] = jnp.maximum(y + b2_ref[...], 0.0).astype(o_ref.dtype)


def init_params(key):
    """Deterministic init matching PyTorch nn.Linear defaults:
    U(-1/sqrt(fan_in), 1/sqrt(fan_in)) for both weight and bias.
    Stored as (in, out) = transpose of PyTorch's (out, in); unpadded f32."""
    k1, k2, k3, k4 = jax.random.split(key, 4)
    bound1 = 1.0 / jnp.sqrt(jnp.float32(D_IN))
    bound2 = 1.0 / jnp.sqrt(jnp.float32(D_HID))
    w1 = jax.random.uniform(k1, (D_IN, D_HID), jnp.float32, -bound1, bound1)
    b1 = jax.random.uniform(k2, (1, D_HID), jnp.float32, -bound1, bound1)
    w2 = jax.random.uniform(k3, (D_HID, D_OUT), jnp.float32, -bound2, bound2)
    b2 = jax.random.uniform(k4, (1, D_OUT), jnp.float32, -bound2, bound2)
    return w1, b1, w2, b2


def pad_and_cast_params(w1, b1, w2, b2):
    """Zero-pad the OUTPUT dims of each linear to 128 multiples and cast the
    weights to bf16 (biases stay f32).  The 812 input dim stays unpadded.
    Call once and reuse so weights are not re-padded every forward."""
    w1p = jnp.zeros((D_IN, D_HID_P), jnp.bfloat16)
    w1p = w1p.at[:, :D_HID].set(w1.astype(jnp.bfloat16))
    b1p = jnp.zeros((1, D_HID_P), jnp.float32)
    b1p = b1p.at[:, :D_HID].set(b1.reshape(1, D_HID).astype(jnp.float32))
    w2p = jnp.zeros((D_HID_P, D_OUT_P), jnp.bfloat16)
    w2p = w2p.at[:D_HID, :D_OUT].set(w2.astype(jnp.bfloat16))
    b2p = jnp.zeros((1, D_OUT_P), jnp.float32)
    b2p = b2p.at[:, :D_OUT].set(b2.reshape(1, D_OUT).astype(jnp.float32))
    return w1p, b1p, w2p, b2p


def _pick_tile_b(B):
    """Batch tile heuristic:
    - B <= 256: one full-dim block (legal for any B, zero dead rows; the
      kernel is weight-DMA-bound here anyway).
    - B  > 256: ~512-row tiles (amortizes the ~0.35us/step overhead), at
      least 2 tiles so the 'parallel' grid axis can shard across v7x's two
      TensorCores, and sized so the last tile is nearly full."""
    if B <= 256:
        return B
    n_tiles = max(2, pl.cdiv(B, 512))
    return _round_up(pl.cdiv(B, n_tiles), 8)


@jax.jit
def mlp_forward(x, w1p, b1p, w2p, b2p):
    """x: (B, 812) f32 -> (B, 784) bf16 (f32 MXU accumulation inside).
    Weights are the padded bf16 params from pad_and_cast_params."""
    B = x.shape[0]
    tile_b = _pick_tile_b(B)
    grid = (pl.cdiv(B, tile_b),)

    flops = 2 * B * (D_IN * D_HID_P + D_HID_P * D_OUT_P)
    bytes_accessed = (x.size * 4 + w1p.size * 2 + w2p.size * 2
                      + b1p.size * 4 + b2p.size * 4 + B * D_OUT_P * 2)

    out = pl.pallas_call(
        _mlp_kernel,
        out_shape=jax.ShapeDtypeStruct((B, D_OUT_P), jnp.bfloat16),
        grid=grid,
        in_specs=[
            # x: batch-tiled, double-buffered (default) so DMA hides under MXU.
            pl.BlockSpec((tile_b, D_IN), lambda i: (i, 0)),
            # Constant operands: fetched once, single VMEM buffer each.
            pl.BlockSpec((D_IN, D_HID_P), lambda i: (0, 0),
                         pipeline_mode=pl.Buffered(1)),
            pl.BlockSpec((1, D_HID_P), lambda i: (0, 0),
                         pipeline_mode=pl.Buffered(1)),
            pl.BlockSpec((D_HID_P, D_OUT_P), lambda i: (0, 0),
                         pipeline_mode=pl.Buffered(1)),
            pl.BlockSpec((1, D_OUT_P), lambda i: (0, 0),
                         pipeline_mode=pl.Buffered(1)),
        ],
        out_specs=pl.BlockSpec((tile_b, D_OUT_P), lambda i: (i, 0)),
        compiler_params=pltpu.CompilerParams(
            dimension_semantics=("parallel",),      # shards batch tiles on v7x
            vmem_limit_bytes=32 * 1024 * 1024),     # headroom beyond v5e's 16 MiB default
        cost_estimate=pl.CostEstimate(
            flops=flops, transcendentals=0, bytes_accessed=bytes_accessed),
    )(x, w1p, b1p, w2p, b2p)

    # Spec-shaped result.  Downstream consumers that can read the padded
    # (B, 896) bf16 buffer directly should do so and skip this copy.
    return out[:, :D_OUT]


def reference_forward(x, w1, b1, w2, b2):
    h = jnp.maximum(x @ w1 + b1, 0.0)
    return jnp.maximum(h @ w2 + b2, 0.0)


if __name__ == "__main__":
    key = jax.random.PRNGKey(0)
    kx, kp = jax.random.split(key)
    B = 2
    x = jax.random.normal(kx, (B, D_IN), jnp.float32)
    w1, b1, w2, b2 = init_params(kp)
    w1p, b1p, w2p, b2p = pad_and_cast_params(w1, b1, w2, b2)

    out = jax.block_until_ready(mlp_forward(x, w1p, b1p, w2p, b2p))
    ref = reference_forward(x, w1, b1, w2, b2)

    assert out.shape == (B, D_OUT), out.shape
    # bf16 inputs/output with f32 accumulation: loosened tolerance vs f32 ref.
    assert jnp.allclose(out.astype(jnp.float32), ref, atol=3e-2, rtol=3e-2)
    print("KERNEL_OK")
</pallas_src>

<mosaic_0001>
module attributes {stable_mosaic.version = 11 : i64} {
  func.func @_mlp_kernel(%arg0: i32, %arg1: memref<2x812xf32, #tpu.memory_space<vmem>>, %arg2: memref<812x1024xbf16, #tpu.memory_space<vmem>>, %arg3: memref<1x1024xf32, #tpu.memory_space<vmem>>, %arg4: memref<1024x896xbf16, #tpu.memory_space<vmem>>, %arg5: memref<1x896xf32, #tpu.memory_space<vmem>>, %arg6: memref<2x896xbf16, #tpu.memory_space<vmem>>) attributes {dimension_semantics = [#tpu.dimension_semantics<parallel>], iteration_bounds = array<i64: 1>, scalar_prefetch = 0 : i64, scratch_operands = 0 : i64, tpu.core_type = #tpu.core_type<tc>, window_params = [{transform_indices = @transform_0, window_bounds = array<i64: 2, 812>}, {pipeline_mode = #tpu.pipeline_mode<synchronous>, transform_indices = @transform_1, window_bounds = array<i64: 812, 1024>}, {pipeline_mode = #tpu.pipeline_mode<synchronous>, transform_indices = @transform_2, window_bounds = array<i64: 1, 1024>}, {pipeline_mode = #tpu.pipeline_mode<synchronous>, transform_indices = @transform_3, window_bounds = array<i64: 1024, 896>}, {pipeline_mode = #tpu.pipeline_mode<synchronous>, transform_indices = @transform_4, window_bounds = array<i64: 1, 896>}, {transform_indices = @transform_5, window_bounds = array<i64: 2, 896>}]} {
    %c0 = arith.constant 0 : index
    %c0_0 = arith.constant 0 : index
    %0 = vector.load %arg1[%c0, %c0_0] : memref<2x812xf32, #tpu.memory_space<vmem>>, vector<2x812xf32>
    %1 = arith.truncf %0 : vector<2x812xf32> to vector<2x812xbf16>
    %c0_1 = arith.constant 0 : index
    %c0_2 = arith.constant 0 : index
    %2 = vector.load %arg2[%c0_1, %c0_2] : memref<812x1024xbf16, #tpu.memory_space<vmem>>, vector<812x1024xbf16>
    %cst = arith.constant dense<0.000000e+00> : vector<2x1024xf32>
    %3 = tpu.matmul %1, %2, %cst {dimension_numbers = #tpu.dot_dimension_numbers<[1], [0], [0], [1], [0, 0, 1, 1], [], []>} : vector<2x812xbf16>, vector<812x1024xbf16>, vector<2x1024xf32> -> vector<2x1024xf32>
    %c0_3 = arith.constant 0 : index
    %c0_4 = arith.constant 0 : index
    %4 = vector.load %arg3[%c0_3, %c0_4] : memref<1x1024xf32, #tpu.memory_space<vmem>>, vector<1x1024xf32>
    %5 = vector.broadcast %4 : vector<1x1024xf32> to vector<2x1024xf32>
    %6 = arith.addf %3, %5 : vector<2x1024xf32>
    %cst_5 = arith.constant 0.000000e+00 : f32
    %7 = vector.broadcast %cst_5 : f32 to vector<2x1024xf32>
    %8 = arith.maximumf %6, %7 : vector<2x1024xf32>
    %9 = arith.truncf %8 : vector<2x1024xf32> to vector<2x1024xbf16>
    %c0_6 = arith.constant 0 : index
    %c0_7 = arith.constant 0 : index
    %10 = vector.load %arg4[%c0_6, %c0_7] : memref<1024x896xbf16, #tpu.memory_space<vmem>>, vector<1024x896xbf16>
    %cst_8 = arith.constant dense<0.000000e+00> : vector<2x896xf32>
    %11 = tpu.matmul %9, %10, %cst_8 {dimension_numbers = #tpu.dot_dimension_numbers<[1], [0], [0], [1], [0, 0, 1, 1], [], []>} : vector<2x1024xbf16>, vector<1024x896xbf16>, vector<2x896xf32> -> vector<2x896xf32>
    %c0_9 = arith.constant 0 : index
    %c0_10 = arith.constant 0 : index
    %12 = vector.load %arg5[%c0_9, %c0_10] : memref<1x896xf32, #tpu.memory_space<vmem>>, vector<1x896xf32>
    %13 = vector.broadcast %12 : vector<1x896xf32> to vector<2x896xf32>
    %14 = arith.addf %11, %13 : vector<2x896xf32>
    %cst_11 = arith.constant 0.000000e+00 : f32
    %15 = vector.broadcast %cst_11 : f32 to vector<2x896xf32>
    %16 = arith.maximumf %14, %15 : vector<2x896xf32>
    %17 = arith.truncf %16 : vector<2x896xf32> to vector<2x896xbf16>
    %c0_12 = arith.constant 0 : index
    %c0_13 = arith.constant 0 : index
    %18 = vector.load %arg6[%c0_12, %c0_13] : memref<2x896xbf16, #tpu.memory_space<vmem>>, vector<2x896xbf16>
    tpu.vector_store %arg6[%c0_12, %c0_13], %17 {strides = array<i32>} : memref<2x896xbf16, #tpu.memory_space<vmem>>, vector<2x896xbf16>,
    return
  }
  func.func @transform_0(%arg0: i32) -> (i32, i32) {
    %c0_i32 = arith.constant 0 : i32
    %c0_i32_0 = arith.constant 0 : i32
    return %arg0, %c0_i32 : i32, i32
  }
  func.func @transform_1(%arg0: i32) -> (i32, i32) {
    %c0_i32 = arith.constant 0 : i32
    %c0_i32_0 = arith.constant 0 : i32
    %c0_i32_1 = arith.constant 0 : i32
    return %c0_i32, %c0_i32_0 : i32, i32
  }
  func.func @transform_2(%arg0: i32) -> (i32, i32) {
    %c0_i32 = arith.constant 0 : i32
    %c0_i32_0 = arith.constant 0 : i32
    %c0_i32_1 = arith.constant 0 : i32
    return %c0_i32, %c0_i32_0 : i32, i32
  }
  func.func @transform_3(%arg0: i32) -> (i32, i32) {
    %c0_i32 = arith.constant 0 : i32
    %c0_i32_0 = arith.constant 0 : i32
    %c0_i32_1 = arith.constant 0 : i32
    return %c0_i32, %c0_i32_0 : i32, i32
  }
  func.func @transform_4(%arg0: i32) -> (i32, i32) {
    %c0_i32 = arith.constant 0 : i32
    %c0_i32_0 = arith.constant 0 : i32
    %c0_i32_1 = arith.constant 0 : i32
    return %c0_i32, %c0_i32_0 : i32, i32
  }
  func.func @transform_5(%arg0: i32) -> (i32, i32) {
    %c0_i32 = arith.constant 0 : i32
    %c0_i32_0 = arith.constant 0 : i32
    return %arg0, %c0_i32 : i32, i32
  }
}

</mosaic_0001>

<llo_original>
// kernel: mlp_forward.1
$region0: #{mlp_forward.1}
  #allocation0 [shape = 'u32[]', space=smem, size = 0x4, offset = 0x4, fixed_abs, tag = 'smem constant byte address 0x4 - core index']
  #allocation1 [shape = 'u32[144,128]{1,0:T(1,128)}', space=vmem, size = 0x12000, scoped, tag = 'internal scratch']
  %s0 = inlined_call_operand.hbm [shape: f32[2,812], index: 0, kind: input, shape index: {}]
  %s1 = inlined_call_operand.hbm [shape: bf16[812,1024], index: 1, kind: input, shape index: {}]
  %s2 = inlined_call_operand.hbm [shape: f32[1,1024], index: 2, kind: input, shape index: {}]
  %s3 = inlined_call_operand.hbm [shape: bf16[1024,896], index: 3, kind: input, shape index: {}]
  %s4 = inlined_call_operand.hbm [shape: f32[1,896], index: 4, kind: input, shape index: {}]
  %s5 = inlined_call_operand.hbm [shape: bf16[2,896], index: 5, kind: output, shape index: {}]
  %s6 = sld [smem:[#allocation0]]
  $region50: #{mlp_forward.1} parent=0
    _
  %s8 = ssub.s32 1, %s6
  %s9 = scalar_select 0, %s8, %s6
  $region1: #{mlp_forward.1} parent=0
    #allocation2 [shape = 'u8[7168]{0}', space=vmem, size = 0x1c00, scoped, tag = 'input window, operand 0, single buffered']
    #allocation3 [shape = 's32[1]{0}', space=sflag, size = 0x4, scoped, tag = 'scoped memory for mlp_forward.1']
    #allocation4 [shape = 's32[1]{0}', space=sflag, size = 0x4, scoped, tag = 'scoped memory for mlp_forward.1']
    #allocation5 [shape = 'u8[1671168]{0}', space=vmem, size = 0x198000, scoped, tag = 'input window, operand 1, single buffered']
    #allocation6 [shape = 's32[1]{0}', space=sflag, size = 0x4, scoped, tag = 'scoped memory for mlp_forward.1']
    #allocation7 [shape = 'u8[4096]{0}', space=vmem, size = 0x1000, scoped, tag = 'input window, operand 2, single buffered']
    #allocation8 [shape = 'u8[1835008]{0}', space=vmem, size = 0x1c0000, scoped, tag = 'input window, operand 3, single buffered']
    #allocation9 [shape = 's32[1]{0}', space=sflag, size = 0x4, scoped, tag = 'scoped memory for mlp_forward.1']
    #allocation10 [shape = 'u8[3584]{0}', space=vmem, size = 0x1000, scoped, tag = 'input window, operand 4, single buffered']
    #allocation11 [shape = 'u8[3584]{0}', space=vmem, size = 0x1000, scoped, tag = 'output window, operand 0, single buffered']
    %10 = vsyncpa [#allocation3], 0
    %11 = vsyncpa [#allocation6], 0
    %12 = vsyncpa [#allocation9], 0
    %13 = vsyncpa [#allocation4], 0
    // Predicated region
    $region2: #{mlp_forward.1} parent=1 // pred_check
      _
    $region3: #{mlp_forward.1} parent=1 // pred_check_branch
      %15 = sbr.rel (0) target = $region5
    $region4: #{mlp_forward.1} parent=1 // pred_region
      %s17 = ssub.s32 224, 224
      %18 = vsyncadd [#allocation3], %s17
      %s20 = sshll.u32 [#allocation2], 4
      %s21 = int_to_ptr.vmem [resolvable:$true] %s20
      %23 = dma.hbm_to_vmem [thread:$0]  %s0, 224, %s21, [#allocation3]
    $region5: #{mlp_forward.1} parent=1 // pred_fallthru
      _
    // Predicated region
    $region6: #{mlp_forward.1} parent=1 // pred_check
      _
    $region7: #{mlp_forward.1} parent=1 // pred_check_branch
      %25 = sbr.rel (0) target = $region9
    $region8: #{mlp_forward.1} parent=1 // pred_region
      %s27 = ssub.s32 52224, 52224
      %28 = vsyncadd [#allocation6], %s27
      %s29 = sshll.u32 [#allocation5], 4
      %s30 = int_to_ptr.vmem [resolvable:$true] %s29
      %35 = dma.hbm_to_vmem [thread:$0]  %s1, 52224, %s30, [#allocation6], 512, 512, 32
    $region9: #{mlp_forward.1} parent=1 // pred_fallthru
      _
    // Predicated region
    $region10: #{mlp_forward.1} parent=1 // pred_check
      _
    $region11: #{mlp_forward.1} parent=1 // pred_check_branch
      %37 = sbr.rel (0) target = $region13
    $region12: #{mlp_forward.1} parent=1 // pred_region
      %s39 = ssub.s32 128, 128
      %40 = vsyncadd [#allocation6], %s39
      %s42 = sshll.u32 [#allocation7], 4
      %s43 = int_to_ptr.vmem [resolvable:$true] %s42
      %45 = dma.hbm_to_vmem [thread:$0]  %s2, 128, %s43, [#allocation6]
    $region13: #{mlp_forward.1} parent=1 // pred_fallthru
      _
    // Predicated region
    $region14: #{mlp_forward.1} parent=1 // pred_check
      _
    $region15: #{mlp_forward.1} parent=1 // pred_check_branch
      %47 = sbr.rel (0) target = $region17
    $region16: #{mlp_forward.1} parent=1 // pred_region
      %s49 = ssub.s32 57344, 57344
      %50 = vsyncadd [#allocation9], %s49
      %s51 = sshll.u32 [#allocation8], 4
      %s52 = int_to_ptr.vmem [resolvable:$true] %s51
      %57 = dma.hbm_to_vmem [thread:$0]  %s3, 57344, %s52, [#allocation9], 448, 448, 28
    $region17: #{mlp_forward.1} parent=1 // pred_fallthru
      _
    // Predicated region
    $region18: #{mlp_forward.1} parent=1 // pred_check
      _
    $region19: #{mlp_forward.1} parent=1 // pred_check_branch
      %59 = sbr.rel (0) target = $region21
    $region20: #{mlp_forward.1} parent=1 // pred_region
      %s61 = ssub.s32 112, 112
      %62 = vsyncadd [#allocation9], %s61
      %s64 = sshll.u32 [#allocation10], 4
      %s65 = int_to_ptr.vmem [resolvable:$true] %s64
      %67 = dma.hbm_to_vmem [thread:$0]  %s4, 112, %s65, [#allocation9]
    $region21: #{mlp_forward.1} parent=1 // pred_fallthru
      _
    // Predicated region
    $region22: #{mlp_forward.1} parent=1 // pred_check
      _
    $region23: #{mlp_forward.1} parent=1 // pred_check_branch
      %69 = sbr.rel (0) target = $region25
    $region24: #{mlp_forward.1} parent=1 // pred_region
      %70 = dma.done [#allocation3], 224
    $region25: #{mlp_forward.1} parent=1 // pred_fallthru
      _
    // Predicated region
    $region26: #{mlp_forward.1} parent=1 // pred_check
      _
    $region27: #{mlp_forward.1} parent=1 // pred_check_branch
      %72 = sbr.rel (0) target = $region29
    $region28: #{mlp_forward.1} parent=1 // pred_region
      %73 = dma.done [#allocation6], 52224
    $region29: #{mlp_forward.1} parent=1 // pred_fallthru
      _
    // Predicated region
    $region30: #{mlp_forward.1} parent=1 // pred_check
      _
    $region31: #{mlp_forward.1} parent=1 // pred_check_branch
      %75 = sbr.rel (0) target = $region33
    $region32: #{mlp_forward.1} parent=1 // pred_region
      %76 = dma.done [#allocation6], 128
    $region33: #{mlp_forward.1} parent=1 // pred_fallthru
      _
    // Predicated region
    $region34: #{mlp_forward.1} parent=1 // pred_check
      _
    $region35: #{mlp_forward.1} parent=1 // pred_check_branch
      %78 = sbr.rel (0) target = $region37
    $region36: #{mlp_forward.1} parent=1 // pred_region
      %79 = dma.done [#allocation9], 57344
    $region37: #{mlp_forward.1} parent=1 // pred_fallthru
      _
    // Predicated region
    $region38: #{mlp_forward.1} parent=1 // pred_check
      _
    $region39: #{mlp_forward.1} parent=1 // pred_check_branch
      %81 = sbr.rel (0) target = $region41
    $region40: #{mlp_forward.1} parent=1 // pred_region
      %82 = dma.done [#allocation9], 112
    $region41: #{mlp_forward.1} parent=1 // pred_fallthru
      _
    %v84 = vld [vmem:[#allocation2] sm:$0xff]
    %v85 = vld [vmem:[#allocation2 + $0x8] sm:$0x3f]
    %v88 = vcombine.high %v84, %v84
    %v90 = vunpack.c.l.s4 1983009808
    %v91 = vunpack.c.0.s8 %v90
    %v92 = vlaneseq
    %v93 = vshrl.u32 %v92, 7
    %v94 = vsub.s32 %v91, %v93
    %v95 = vrot.slane %v84, %v94
    %v97 = vunpack.c.l.s4 1983009808
    %v98 = vunpack.c.0.s8 %v97
    %v99 = vlaneseq
    %v100 = vshrl.u32 %v99, 7
    %v101 = vsub.s32 %v98, %v100
    %v102 = vrot.slane %v88, %v101
    %v103 = vcombine.high %v95, %v95
    %v104 = vcombine.high %v102, %v102
    %v105 = vcombine.high %v85, %v85
    %v107 = vunpack.c.l.s4 1983009808
    %v108 = vunpack.c.0.s8 %v107
    %v109 = vlaneseq
    %v110 = vshrl.u32 %v109, 7
    %v111 = vsub.s32 %v108, %v110
    %v112 = vrot.slane %v85, %v111
    %v114 = vunpack.c.l.s4 1983009808
    %v115 = vunpack.c.0.s8 %v114
    %v116 = vlaneseq
    %v117 = vshrl.u32 %v116, 7
    %v118 = vsub.s32 %v115, %v117
    %v119 = vrot.slane %v105, %v118
    %v120 = vcombine.high %v112, %v112
    %v128 = vpack.c.bf16 %v95, %v95
    %v129 = vpack.c.bf16 %v103, %v103
    %v130 = vpack.c.bf16 %v102, %v102
    %v131 = vpack.c.bf16 %v104, %v104
    %v132 = vpack.c.bf16 %v112, %v112
    %v133 = vpack.c.bf16 %v120, %v120
    %v134 = vpack.c.bf16 %v119, %v119
    %v135 = vld [vmem:[#allocation5] sm:$0xff]
    %v136 = vld [vmem:[#allocation5 + $0x8] sm:$0xff]
    %v137 = vld [vmem:[#allocation5 + $0x10] sm:$0xff]
    %v138 = vld [vmem:[#allocation5 + $0x18] sm:$0xff]
    %v139 = vld [vmem:[#allocation5 + $0x20] sm:$0xff]
    %v140 = vld [vmem:[#allocation5 + $0x28] sm:$0xff]
    %v141 = vld [vmem:[#allocation5 + $0x30] sm:$0xff]
    %v142 = vld [vmem:[#allocation5 + $0x38] sm:$0xff]
    %v143 = vld [vmem:[#allocation5 + $0x40] sm:$0xff]
    %v144 = vld [vmem:[#allocation5 + $0x48] sm:$0xff]
    %v145 = vld [vmem:[#allocation5 + $0x50] sm:$0xff]
    %v146 = vld [vmem:[#allocation5 + $0x58] sm:$0xff]
    %v147 = vld [vmem:[#allocation5 + $0x60] sm:$0xff]
    %v148 = vld [vmem:[#allocation5 + $0x68] sm:$0xff]
    %v149 = vld [vmem:[#allocation5 + $0x70] sm:$0xff]
    %v150 = vld [vmem:[#allocation5 + $0x78] sm:$0xff]
    %v151 = vld [vmem:[#allocation5 + $0x80] sm:$0xff]
    %v152 = vld [vmem:[#allocation5 + $0x88] sm:$0xff]
    %v153 = vld [vmem:[#allocation5 + $0x90] sm:$0xff]
    %v154 = vld [vmem:[#allocation5 + $0x98] sm:$0xff]
    %v155 = vld [vmem:[#allocation5 + $0xa0] sm:$0xff]
    %v156 = vld [vmem:[#allocation5 + $0xa8] sm:$0xff]
    %v157 = vld [vmem:[#allocation5 + $0xb0] sm:$0xff]
    %v158 = vld [vmem:[#allocation5 + $0xb8] sm:$0xff]
    %v159 = vld [vmem:[#allocation5 + $0xc0] sm:$0xff]
    %v160 = vld [vmem:[#allocation5 + $0xc8] sm:$0xff]
    %v161 = vld [vmem:[#allocation5 + $0xd0] sm:$0xff]
    %v162 = vld [vmem:[#allocation5 + $0xd8] sm:$0xff]
    %v163 = vld [vmem:[#allocation5 + $0xe0] sm:$0xff]
    %v164 = vld [vmem:[#allocation5 + $0xe8] sm:$0xff]
    %v165 = vld [vmem:[#allocation5 + $0xf0] sm:$0xff]
    %v166 = vld [vmem:[#allocation5 + $0xf8] sm:$0xff]
    %v167 = vld [vmem:[#allocation5 + $0x100] sm:$0xff]
    %v168 = vld [vmem:[#allocation5 + $0x108] sm:$0xff]
    %v169 = vld [vmem:[#allocation5 + $0x110] sm:$0xff]
    %v170 = vld [vmem:[#allocation5 + $0x118] sm:$0xff]
    %v171 = vld [vmem:[#allocation5 + $0x120] sm:$0xff]
    %v172 = vld [vmem:[#allocation5 + $0x128] sm:$0xff]
    %v173 = vld [vmem:[#allocation5 + $0x130] sm:$0xff]
    %v174 = vld [vmem:[#allocation5 + $0x138] sm:$0xff]
    %v175 = vld [vmem:[#allocation5 + $0x140] sm:$0xff]
    %v176 = vld [vmem:[#allocation5 + $0x148] sm:$0xff]
    %v177 = vld [vmem:[#allocation5 + $0x150] sm:$0xff]
    %v178 = vld [vmem:[#allocation5 + $0x158] sm:$0xff]
    %v179 = vld [vmem:[#allocation5 + $0x160] sm:$0xff]
    %v180 = vld [vmem:[#allocation5 + $0x168] sm:$0xff]
    %v181 = vld [vmem:[#allocation5 + $0x170] sm:$0xff]
    %v182 = vld [vmem:[#allocation5 + $0x178] sm:$0xff]
    %v183 = vld [vmem:[#allocation5 + $0x180] sm:$0xff]
    %v184 = vld [vmem:[#allocation5 + $0x188] sm:$0xff]
    %v185 = vld [vmem:[#allocation5 + $0x190] sm:$0xff]
    %v186 = vld [vmem:[#allocation5 + $0x198] sm:$0xff]
    %v187 = vld [vmem:[#allocation5 + $0x1a0] sm:$0xff]
    %v188 = vld [vmem:[#allocation5 + $0x1a8] sm:$0xff]
    %v189 = vld [vmem:[#allocation5 + $0x1b0] sm:$0xff]
    %v190 = vld [vmem:[#allocation5 + $0x1b8] sm:$0xff]
    %v191 = vld [vmem:[#allocation5 + $0x1c0] sm:$0xff]
    %v192 = vld [vmem:[#allocation5 + $0x1c8] sm:$0xff]
    %v193 = vld [vmem:[#allocation5 + $0x1d0] sm:$0xff]
    %v194 = vld [vmem:[#allocation5 + $0x1d8] sm:$0xff]
    %v195 = vld [vmem:[#allocation5 + $0x1e0] sm:$0xff]
    %v196 = vld [vmem:[#allocation5 + $0x1e8] sm:$0xff]
    %v197 = vld [vmem:[#allocation5 + $0x1f0] sm:$0xff]
    %v198 = vld [vmem:[#allocation5 + $0x1f8] sm:$0xff]
    %v199 = vld [vmem:[#allocation5 + $0x200] sm:$0xff]
    %v200 = vld [vmem:[#allocation5 + $0x208] sm:$0xff]
    %v201 = vld [vmem:[#allocation5 + $0x210] sm:$0xff]
    %v202 = vld [vmem:[#allocation5 + $0x218] sm:$0xff]
    %v203 = vld [vmem:[#allocation5 + $0x220] sm:$0xff]
    %v204 = vld [vmem:[#allocation5 + $0x228] sm:$0xff]
    %v205 = vld [vmem:[#allocation5 + $0x230] sm:$0xff]
    %v206 = vld [vmem:[#allocation5 + $0x238] sm:$0xff]
    %v207 = vld [vmem:[#allocation5 + $0x240] sm:$0xff]
    %v208 = vld [vmem:[#allocation5 + $0x248] sm:$0xff]
    %v209 = vld [vmem:[#allocation5 + $0x250] sm:$0xff]
    %v210 = vld [vmem:[#allocation5 + $0x258] sm:$0xff]
    %v211 = vld [vmem:[#allocation5 + $0x260] sm:$0xff]
    %v212 = vld [vmem:[#allocation5 + $0x268] sm:$0xff]
    %v213 = vld [vmem:[#allocation5 + $0x270] sm:$0xff]
    %v214 = vld [vmem:[#allocation5 + $0x278] sm:$0xff]
    %v215 = vld [vmem:[#allocation5 + $0x280] sm:$0xff]
    %v216 = vld [vmem:[#allocation5 + $0x288] sm:$0xff]
    %v217 = vld [vmem:[#allocation5 + $0x290] sm:$0xff]
    %v218 = vld [vmem:[#allocation5 + $0x298] sm:$0xff]
    %v219 = vld [vmem:[#allocation5 + $0x2a0] sm:$0xff]
    %v220 = vld [vmem:[#allocation5 + $0x2a8] sm:$0xff]
    %v221 = vld [vmem:[#allocation5 + $0x2b0] sm:$0xff]
    %v222 = vld [vmem:[#allocation5 + $0x2b8] sm:$0xff]
    %v223 = vld [vmem:[#allocation5 + $0x2c0] sm:$0xff]
    %v224 = vld [vmem:[#allocation5 + $0x2c8] sm:$0xff]
    %v225 = vld [vmem:[#allocation5 + $0x2d0] sm:$0xff]
    %v226 = vld [vmem:[#allocation5 + $0x2d8] sm:$0xff]
    %v227 = vld [vmem:[#allocation5 + $0x2e0] sm:$0xff]
    %v228 = vld [vmem:[#allocation5 + $0x2e8] sm:$0xff]
    %v229 = vld [vmem:[#allocation5 + $0x2f0] sm:$0xff]
    %v230 = vld [vmem:[#allocation5 + $0x2f8] sm:$0xff]
    %v231 = vld [vmem:[#allocation5 + $0x300] sm:$0xff]
    %v232 = vld [vmem:[#allocation5 + $0x308] sm:$0xff]
    %v233 = vld [vmem:[#allocation5 + $0x310] sm:$0xff]
    %v234 = vld [vmem:[#allocation5 + $0x318] sm:$0xff]
    %v235 = vld [vmem:[#allocation5 + $0x320] sm:$0xff]
    %v236 = vld [vmem:[#allocation5 + $0x328] sm:$0xff]
    %v237 = vld [vmem:[#allocation5 + $0x330] sm:$0xff]
    %v238 = vld [vmem:[#allocation5 + $0x338] sm:$0xff]
    %v239 = vld [vmem:[#allocation5 + $0x340] sm:$0xff]
    %v240 = vld [vmem:[#allocation5 + $0x348] sm:$0xff]
    %v241 = vld [vmem:[#allocation5 + $0x350] sm:$0xff]
    %v242 = vld [vmem:[#allocation5 + $0x358] sm:$0xff]
    %v243 = vld [vmem:[#allocation5 + $0x360] sm:$0xff]
    %v244 = vld [vmem:[#allocation5 + $0x368] sm:$0xff]
    %v245 = vld [vmem:[#allocation5 + $0x370] sm:$0xff]
    %v246 = vld [vmem:[#allocation5 + $0x378] sm:$0xff]
    %v247 = vld [vmem:[#allocation5 + $0x380] sm:$0xff]
    %v248 = vld [vmem:[#allocation5 + $0x388] sm:$0xff]
    %v249 = vld [vmem:[#allocation5 + $0x390] sm:$0xff]
    %v250 = vld [vmem:[#allocation5 + $0x398] sm:$0xff]
    %v251 = vld [vmem:[#allocation5 + $0x3a0] sm:$0xff]
    %v252 = vld [vmem:[#allocation5 + $0x3a8] sm:$0xff]
    %v253 = vld [vmem:[#allocation5 + $0x3b0] sm:$0xff]
    %v254 = vld [vmem:[#allocation5 + $0x3b8] sm:$0xff]
    %v255 = vld [vmem:[#allocation5 + $0x3c0] sm:$0xff]
    %v256 = vld [vmem:[#allocation5 + $0x3c8] sm:$0xff]
    %v257 = vld [vmem:[#allocation5 + $0x3d0] sm:$0xff]
    %v258 = vld [vmem:[#allocation5 + $0x3d8] sm:$0xff]
    %v259 = vld [vmem:[#allocation5 + $0x3e0] sm:$0xff]
    %v260 = vld [vmem:[#allocation5 + $0x3e8] sm:$0xff]
    %v261 = vld [vmem:[#allocation5 + $0x3f0] sm:$0xff]
    %v262 = vld [vmem:[#allocation5 + $0x3f8] sm:$0xff]
    %v263 = vld [vmem:[#allocation5 + $0x400] sm:$0xff]
    %v264 = vld [vmem:[#allocation5 + $0x408] sm:$0xff]
    %v265 = vld [vmem:[#allocation5 + $0x410] sm:$0xff]
    %v266 = vld [vmem:[#allocation5 + $0x418] sm:$0xff]
    %v267 = vld [vmem:[#allocation5 + $0x420] sm:$0xff]
    %v268 = vld [vmem:[#allocation5 + $0x428] sm:$0xff]
    %v269 = vld [vmem:[#allocation5 + $0x430] sm:$0xff]
    %v270 = vld [vmem:[#allocation5 + $0x438] sm:$0xff]
    %v271 = vld [vmem:[#allocation5 + $0x440] sm:$0xff]
    %v272 = vld [vmem:[#allocation5 + $0x448] sm:$0xff]
    %v273 = vld [vmem:[#allocation5 + $0x450] sm:$0xff]
    %v274 = vld [vmem:[#allocation5 + $0x458] sm:$0xff]
    %v275 = vld [vmem:[#allocation5 + $0x460] sm:$0xff]
    %v276 = vld [vmem:[#allocation5 + $0x468] sm:$0xff]
    %v277 = vld [vmem:[#allocation5 + $0x470] sm:$0xff]
    %v278 = vld [vmem:[#allocation5 + $0x478] sm:$0xff]
    %v279 = vld [vmem:[#allocation5 + $0x480] sm:$0xff]
    %v280 = vld [vmem:[#allocation5 + $0x488] sm:$0xff]
    %v281 = vld [vmem:[#allocation5 + $0x490] sm:$0xff]
    %v282 = vld [vmem:[#allocation5 + $0x498] sm:$0xff]
    %v283 = vld [vmem:[#allocation5 + $0x4a0] sm:$0xff]
    %v284 = vld [vmem:[#allocation5 + $0x4a8] sm:$0xff]
    %v285 = vld [vmem:[#allocation5 + $0x4b0] sm:$0xff]
    %v286 = vld [vmem:[#allocation5 + $0x4b8] sm:$0xff]
    %v287 = vld [vmem:[#allocation5 + $0x4c0] sm:$0xff]
    %v288 = vld [vmem:[#allocation5 + $0x4c8] sm:$0xff]
    %v289 = vld [vmem:[#allocation5 + $0x4d0] sm:$0xff]
    %v290 = vld [vmem:[#allocation5 + $0x4d8] sm:$0xff]
    %v291 = vld [vmem:[#allocation5 + $0x4e0] sm:$0xff]
    %v292 = vld [vmem:[#allocation5 + $0x4e8] sm:$0xff]
    %v293 = vld [vmem:[#allocation5 + $0x4f0] sm:$0xff]
    %v294 = vld [vmem:[#allocation5 + $0x4f8] sm:$0xff]
    %v295 = vld [vmem:[#allocation5 + $0x500] sm:$0xff]
    %v296 = vld [vmem:[#allocation5 + $0x508] sm:$0xff]
    %v297 = vld [vmem:[#allocation5 + $0x510] sm:$0xff]
    %v298 = vld [vmem:[#allocation5 + $0x518] sm:$0xff]
    %v299 = vld [vmem:[#allocation5 + $0x520] sm:$0xff]
    %v300 = vld [vmem:[#allocation5 + $0x528] sm:$0xff]
    %v301 = vld [vmem:[#allocation5 + $0x530] sm:$0xff]
    %v302 = vld [vmem:[#allocation5 + $0x538] sm:$0xff]
    %v303 = vld [vmem:[#allocation5 + $0x540] sm:$0xff]
    %v304 = vld [vmem:[#allocation5 + $0x548] sm:$0xff]
    %v305 = vld [vmem:[#allocation5 + $0x550] sm:$0xff]
    %v306 = vld [vmem:[#allocation5 + $0x558] sm:$0xff]
    %v307 = vld [vmem:[#allocation5 + $0x560] sm:$0xff]
    %v308 = vld [vmem:[#allocation5 + $0x568] sm:$0xff]
    %v309 = vld [vmem:[#allocation5 + $0x570] sm:$0xff]
    %v310 = vld [vmem:[#allocation5 + $0x578] sm:$0xff]
    %v311 = vld [vmem:[#allocation5 + $0x580] sm:$0xff]
    %v312 = vld [vmem:[#allocation5 + $0x588] sm:$0xff]
    %v313 = vld [vmem:[#allocation5 + $0x590] sm:$0xff]
    %v314 = vld [vmem:[#allocation5 + $0x598] sm:$0xff]
    %v315 = vld [vmem:[#allocation5 + $0x5a0] sm:$0xff]
    %v316 = vld [vmem:[#allocation5 + $0x5a8] sm:$0xff]
    %v317 = vld [vmem:[#allocation5 + $0x5b0] sm:$0xff]
    %v318 = vld [vmem:[#allocation5 + $0x5b8] sm:$0xff]
    %v319 = vld [vmem:[#allocation5 + $0x5c0] sm:$0xff]
    %v320 = vld [vmem:[#allocation5 + $0x5c8] sm:$0xff]
    %v321 = vld [vmem:[#allocation5 + $0x5d0] sm:$0xff]
    %v322 = vld [vmem:[#allocation5 + $0x5d8] sm:$0xff]
    %v323 = vld [vmem:[#allocation5 + $0x5e0] sm:$0xff]
    %v324 = vld [vmem:[#allocation5 + $0x5e8] sm:$0xff]
    %v325 = vld [vmem:[#allocation5 + $0x5f0] sm:$0xff]
    %v326 = vld [vmem:[#allocation5 + $0x5f8] sm:$0xff]
    %v327 = vld [vmem:[#allocation5 + $0x600] sm:$0xff]
    %v328 = vld [vmem:[#allocation5 + $0x608] sm:$0xff]
    %v329 = vld [vmem:[#allocation5 + $0x610] sm:$0xff]
    %v330 = vld [vmem:[#allocation5 + $0x618] sm:$0xff]
    %v331 = vld [vmem:[#allocation5 + $0x620] sm:$0xff]
    %v332 = vld [vmem:[#allocation5 + $0x628] sm:$0xff]
    %v333 = vld [vmem:[#allocation5 + $0x630] sm:$0xff]
    %v334 = vld [vmem:[#allocation5 + $0x638] sm:$0xff]
    %v335 = vld [vmem:[#allocation5 + $0x640] sm:$0xff]
    %v336 = vld [vmem:[#allocation5 + $0x648] sm:$0xff]
    %v337 = vld [vmem:[#allocation5 + $0x650] sm:$0xff]
    %v338 = vld [vmem:[#allocation5 + $0x658] sm:$0xff]
    %v339 = vld [vmem:[#allocation5 + $0x660] sm:$0xff]
    %v340 = vld [vmem:[#allocation5 + $0x668] sm:$0xff]
    %v341 = vld [vmem:[#allocation5 + $0x670] sm:$0xff]
    %v342 = vld [vmem:[#allocation5 + $0x678] sm:$0xff]
    %v343 = vld [vmem:[#allocation5 + $0x680] sm:$0xff]
    %v344 = vld [vmem:[#allocation5 + $0x688] sm:$0xff]
    %v345 = vld [vmem:[#allocation5 + $0x690] sm:$0xff]
    %v346 = vld [vmem:[#allocation5 + $0x698] sm:$0xff]
    %v347 = vld [vmem:[#allocation5 + $0x6a0] sm:$0xff]
    %v348 = vld [vmem:[#allocation5 + $0x6a8] sm:$0xff]
    %v349 = vld [vmem:[#allocation5 + $0x6b0] sm:$0xff]
    %v350 = vld [vmem:[#allocation5 + $0x6b8] sm:$0xff]
    %v351 = vld [vmem:[#allocation5 + $0x6c0] sm:$0xff]
    %v352 = vld [vmem:[#allocation5 + $0x6c8] sm:$0xff]
    %v353 = vld [vmem:[#allocation5 + $0x6d0] sm:$0xff]
    %v354 = vld [vmem:[#allocation5 + $0x6d8] sm:$0xff]
    %v355 = vld [vmem:[#allocation5 + $0x6e0] sm:$0xff]
    %v356 = vld [vmem:[#allocation5 + $0x6e8] sm:$0xff]
    %v357 = vld [vmem:[#allocation5 + $0x6f0] sm:$0xff]
    %v358 = vld [vmem:[#allocation5 + $0x6f8] sm:$0xff]
    %v359 = vld [vmem:[#allocation5 + $0x700] sm:$0xff]
    %v360 = vld [vmem:[#allocation5 + $0x708] sm:$0xff]
    %v361 = vld [vmem:[#allocation5 + $0x710] sm:$0xff]
    %v362 = vld [vmem:[#allocation5 + $0x718] sm:$0xff]
    %v363 = vld [vmem:[#allocation5 + $0x720] sm:$0xff]
    %v364 = vld [vmem:[#allocation5 + $0x728] sm:$0xff]
    %v365 = vld [vmem:[#allocation5 + $0x730] sm:$0xff]
    %v366 = vld [vmem:[#allocation5 + $0x738] sm:$0xff]
    %v367 = vld [vmem:[#allocation5 + $0x740] sm:$0xff]
    %v368 = vld [vmem:[#allocation5 + $0x748] sm:$0xff]
    %v369 = vld [vmem:[#allocation5 + $0x750] sm:$0xff]
    %v370 = vld [vmem:[#allocation5 + $0x758] sm:$0xff]
    %v371 = vld [vmem:[#allocation5 + $0x760] sm:$0xff]
    %v372 = vld [vmem:[#allocation5 + $0x768] sm:$0xff]
    %v373 = vld [vmem:[#allocation5 + $0x770] sm:$0xff]
    %v374 = vld [vmem:[#allocation5 + $0x778] sm:$0xff]
    %v375 = vld [vmem:[#allocation5 + $0x780] sm:$0xff]
    %v376 = vld [vmem:[#allocation5 + $0x788] sm:$0xff]
    %v377 = vld [vmem:[#allocation5 + $0x790] sm:$0xff]
    %v378 = vld [vmem:[#allocation5 + $0x798] sm:$0xff]
    %v379 = vld [vmem:[#allocation5 + $0x7a0] sm:$0xff]
    %v380 = vld [vmem:[#allocation5 + $0x7a8] sm:$0xff]
    %v381 = vld [vmem:[#allocation5 + $0x7b0] sm:$0xff]
    %v382 = vld [vmem:[#allocation5 + $0x7b8] sm:$0xff]
    %v383 = vld [vmem:[#allocation5 + $0x7c0] sm:$0xff]
    %v384 = vld [vmem:[#allocation5 + $0x7c8] sm:$0xff]
    %v385 = vld [vmem:[#allocation5 + $0x7d0] sm:$0xff]
    %v386 = vld [vmem:[#allocation5 + $0x7d8] sm:$0xff]
    %v387 = vld [vmem:[#allocation5 + $0x7e0] sm:$0xff]
    %v388 = vld [vmem:[#allocation5 + $0x7e8] sm:$0xff]
    %v389 = vld [vmem:[#allocation5 + $0x7f0] sm:$0xff]
    %v390 = vld [vmem:[#allocation5 + $0x7f8] sm:$0xff]
    %v391 = vld [vmem:[#allocation5 + $0x800] sm:$0xff]
    %v392 = vld [vmem:[#allocation5 + $0x808] sm:$0xff]
    %v393 = vld [vmem:[#allocation5 + $0x810] sm:$0xff]
    %v394 = vld [vmem:[#allocation5 + $0x818] sm:$0xff]
    %v395 = vld [vmem:[#allocation5 + $0x820] sm:$0xff]
    %v396 = vld [vmem:[#allocation5 + $0x828] sm:$0xff]
    %v397 = vld [vmem:[#allocation5 + $0x830] sm:$0xff]
    %v398 = vld [vmem:[#allocation5 + $0x838] sm:$0xff]
    %v399 = vld [vmem:[#allocation5 + $0x840] sm:$0xff]
    %v400 = vld [vmem:[#allocation5 + $0x848] sm:$0xff]
    %v401 = vld [vmem:[#allocation5 + $0x850] sm:$0xff]
    %v402 = vld [vmem:[#allocation5 + $0x858] sm:$0xff]
    %v403 = vld [vmem:[#allocation5 + $0x860] sm:$0xff]
    %v404 = vld [vmem:[#allocation5 + $0x868] sm:$0xff]
    %v405 = vld [vmem:[#allocation5 + $0x870] sm:$0xff]
    %v406 = vld [vmem:[#allocation5 + $0x878] sm:$0xff]
    %v407 = vld [vmem:[#allocation5 + $0x880] sm:$0xff]
    %v408 = vld [vmem:[#allocation5 + $0x888] sm:$0xff]
    %v409 = vld [vmem:[#allocation5 + $0x890] sm:$0xff]
    %v410 = vld [vmem:[#allocation5 + $0x898] sm:$0xff]
    %v411 = vld [vmem:[#allocation5 + $0x8a0] sm:$0xff]
    %v412 = vld [vmem:[#allocation5 + $0x8a8] sm:$0xff]
    %v413 = vld [vmem:[#allocation5 + $0x8b0] sm:$0xff]
    %v414 = vld [vmem:[#allocation5 + $0x8b8] sm:$0xff]
    %v415 = vld [vmem:[#allocation5 + $0x8c0] sm:$0xff]
    %v416 = vld [vmem:[#allocation5 + $0x8c8] sm:$0xff]
    %v417 = vld [vmem:[#allocation5 + $0x8d0] sm:$0xff]
    %v418 = vld [vmem:[#allocation5 + $0x8d8] sm:$0xff]
    %v419 = vld [vmem:[#allocation5 + $0x8e0] sm:$0xff]
    %v420 = vld [vmem:[#allocation5 + $0x8e8] sm:$0xff]
    %v421 = vld [vmem:[#allocation5 + $0x8f0] sm:$0xff]
    %v422 = vld [vmem:[#allocation5 + $0x8f8] sm:$0xff]
    %v423 = vld [vmem:[#allocation5 + $0x900] sm:$0xff]
    %v424 = vld [vmem:[#allocation5 + $0x908] sm:$0xff]
    %v425 = vld [vmem:[#allocation5 + $0x910] sm:$0xff]
    %v426 = vld [vmem:[#allocation5 + $0x918] sm:$0xff]
    %v427 = vld [vmem:[#allocation5 + $0x920] sm:$0xff]
    %v428 = vld [vmem:[#allocation5 + $0x928] sm:$0xff]
    %v429 = vld [vmem:[#allocation5 + $0x930] sm:$0xff]
    %v430 = vld [vmem:[#allocation5 + $0x938] sm:$0xff]
    %v431 = vld [vmem:[#allocation5 + $0x940] sm:$0xff]
    %v432 = vld [vmem:[#allocation5 + $0x948] sm:$0xff]
    %v433 = vld [vmem:[#allocation5 + $0x950] sm:$0xff]
    %v434 = vld [vmem:[#allocation5 + $0x958] sm:$0xff]
    %v435 = vld [vmem:[#allocation5 + $0x960] sm:$0xff]
    %v436 = vld [vmem:[#allocation5 + $0x968] sm:$0xff]
    %v437 = vld [vmem:[#allocation5 + $0x970] sm:$0xff]
    %v438 = vld [vmem:[#allocation5 + $0x978] sm:$0xff]
    %v439 = vld [vmem:[#allocation5 + $0x980] sm:$0xff]
    %v440 = vld [vmem:[#allocation5 + $0x988] sm:$0xff]
    %v441 = vld [vmem:[#allocation5 + $0x990] sm:$0xff]
    %v442 = vld [vmem:[#allocation5 + $0x998] sm:$0xff]
    %v443 = vld [vmem:[#allocation5 + $0x9a0] sm:$0xff]
    %v444 = vld [vmem:[#allocation5 + $0x9a8] sm:$0xff]
    %v445 = vld [vmem:[#allocation5 + $0x9b0] sm:$0xff]
    %v446 = vld [vmem:[#allocation5 + $0x9b8] sm:$0xff]
    %v447 = vld [vmem:[#allocation5 + $0x9c0] sm:$0xff]
    %v448 = vld [vmem:[#allocation5 + $0x9c8] sm:$0xff]
    %v449 = vld [vmem:[#allocation5 + $0x9d0] sm:$0xff]
    %v450 = vld [vmem:[#allocation5 + $0x9d8] sm:$0xff]
    %v451 = vld [vmem:[#allocation5 + $0x9e0] sm:$0xff]
    %v452 = vld [vmem:[#allocation5 + $0x9e8] sm:$0xff]
    %v453 = vld [vmem:[#allocation5 + $0x9f0] sm:$0xff]
    %v454 = vld [vmem:[#allocation5 + $0x9f8] sm:$0xff]
    %v455 = vld [vmem:[#allocation5 + $0xa00] sm:$0xff]
    %v456 = vld [vmem:[#allocation5 + $0xa08] sm:$0xff]
    %v457 = vld [vmem:[#allocation5 + $0xa10] sm:$0xff]
    %v458 = vld [vmem:[#allocation5 + $0xa18] sm:$0xff]
    %v459 = vld [vmem:[#allocation5 + $0xa20] sm:$0xff]
    %v460 = vld [vmem:[#allocation5 + $0xa28] sm:$0xff]
    %v461 = vld [vmem:[#allocation5 + $0xa30] sm:$0xff]
    %v462 = vld [vmem:[#allocation5 + $0xa38] sm:$0xff]
    %v463 = vld [vmem:[#allocation5 + $0xa40] sm:$0xff]
    %v464 = vld [vmem:[#allocation5 + $0xa48] sm:$0xff]
    %v465 = vld [vmem:[#allocation5 + $0xa50] sm:$0xff]
    %v466 = vld [vmem:[#allocation5 + $0xa58] sm:$0xff]
    %v467 = vld [vmem:[#allocation5 + $0xa60] sm:$0xff]
    %v468 = vld [vmem:[#allocation5 + $0xa68] sm:$0xff]
    %v469 = vld [vmem:[#allocation5 + $0xa70] sm:$0xff]
    %v470 = vld [vmem:[#allocation5 + $0xa78] sm:$0xff]
    %v471 = vld [vmem:[#allocation5 + $0xa80] sm:$0xff]
    %v472 = vld [vmem:[#allocation5 + $0xa88] sm:$0xff]
    %v473 = vld [vmem:[#allocation5 + $0xa90] sm:$0xff]
    %v474 = vld [vmem:[#allocation5 + $0xa98] sm:$0xff]
    %v475 = vld [vmem:[#allocation5 + $0xaa0] sm:$0xff]
    %v476 = vld [vmem:[#allocation5 + $0xaa8] sm:$0xff]
    %v477 = vld [vmem:[#allocation5 + $0xab0] sm:$0xff]
    %v478 = vld [vmem:[#allocation5 + $0xab8] sm:$0xff]
    %v479 = vld [vmem:[#allocation5 + $0xac0] sm:$0xff]
    %v480 = vld [vmem:[#allocation5 + $0xac8] sm:$0xff]
    %v481 = vld [vmem:[#allocation5 + $0xad0] sm:$0xff]
    %v482 = vld [vmem:[#allocation5 + $0xad8] sm:$0xff]
    %v483 = vld [vmem:[#allocation5 + $0xae0] sm:$0xff]
    %v484 = vld [vmem:[#allocation5 + $0xae8] sm:$0xff]
    %v485 = vld [vmem:[#allocation5 + $0xaf0] sm:$0xff]
    %v486 = vld [vmem:[#allocation5 + $0xaf8] sm:$0xff]
    %v487 = vld [vmem:[#allocation5 + $0xb00] sm:$0xff]
    %v488 = vld [vmem:[#allocation5 + $0xb08] sm:$0xff]
    %v489 = vld [vmem:[#allocation5 + $0xb10] sm:$0xff]
    %v490 = vld [vmem:[#allocation5 + $0xb18] sm:$0xff]
    %v491 = vld [vmem:[#allocation5 + $0xb20] sm:$0xff]
    %v492 = vld [vmem:[#allocation5 + $0xb28] sm:$0xff]
    %v493 = vld [vmem:[#allocation5 + $0xb30] sm:$0xff]
    %v494 = vld [vmem:[#allocation5 + $0xb38] sm:$0xff]
    %v495 = vld [vmem:[#allocation5 + $0xb40] sm:$0xff]
    %v496 = vld [vmem:[#allocation5 + $0xb48] sm:$0xff]
    %v497 = vld [vmem:[#allocation5 + $0xb50] sm:$0xff]
    %v498 = vld [vmem:[#allocation5 + $0xb58] sm:$0xff]
    %v499 = vld [vmem:[#allocation5 + $0xb60] sm:$0xff]
    %v500 = vld [vmem:[#allocation5 + $0xb68] sm:$0xff]
    %v501 = vld [vmem:[#allocation5 + $0xb70] sm:$0xff]
    %v502 = vld [vmem:[#allocation5 + $0xb78] sm:$0xff]
    %v503 = vld [vmem:[#allocation5 + $0xb80] sm:$0xff]
    %v504 = vld [vmem:[#allocation5 + $0xb88] sm:$0xff]
    %v505 = vld [vmem:[#allocation5 + $0xb90] sm:$0xff]
    %v506 = vld [vmem:[#allocation5 + $0xb98] sm:$0xff]
    %v507 = vld [vmem:[#allocation5 + $0xba0] sm:$0xff]
    %v508 = vld [vmem:[#allocation5 + $0xba8] sm:$0xff]
    %v509 = vld [vmem:[#allocation5 + $0xbb0] sm:$0xff]
    %v510 = vld [vmem:[#allocation5 + $0xbb8] sm:$0xff]
    %v511 = vld [vmem:[#allocation5 + $0xbc0] sm:$0xff]
    %v512 = vld [vmem:[#allocation5 + $0xbc8] sm:$0xff]
    %v513 = vld [vmem:[#allocation5 + $0xbd0] sm:$0xff]
    %v514 = vld [vmem:[#allocation5 + $0xbd8] sm:$0xff]
    %v515 = vld [vmem:[#allocation5 + $0xbe0] sm:$0xff]
    %v516 = vld [vmem:[#allocation5 + $0xbe8] sm:$0xff]
    %v517 = vld [vmem:[#allocation5 + $0xbf0] sm:$0xff]
    %v518 = vld [vmem:[#allocation5 + $0xbf8] sm:$0xff]
    %v519 = vld [vmem:[#allocation5 + $0xc00] sm:$0xff]
    %v520 = vld [vmem:[#allocation5 + $0xc08] sm:$0xff]
    %v521 = vld [vmem:[#allocation5 + $0xc10] sm:$0xff]
    %v522 = vld [vmem:[#allocation5 + $0xc18] sm:$0xff]
    %v523 = vld [vmem:[#allocation5 + $0xc20] sm:$0xff]
    %v524 = vld [vmem:[#allocation5 + $0xc28] sm:$0xff]
    %v525 = vld [vmem:[#allocation5 + $0xc30] sm:$0xff]
    %v526 = vld [vmem:[#allocation5 + $0xc38] sm:$0xff]
    %v527 = vld [vmem:[#allocation5 + $0xc40] sm:$0xff]
    %v528 = vld [vmem:[#allocation5 + $0xc48] sm:$0xff]
    %v529 = vld [vmem:[#allocation5 + $0xc50] sm:$0xff]
    %v530 = vld [vmem:[#allocation5 + $0xc58] sm:$0xff]
    %v531 = vld [vmem:[#allocation5 + $0xc60] sm:$0xff]
    %v532 = vld [vmem:[#allocation5 + $0xc68] sm:$0xff]
    %v533 = vld [vmem:[#allocation5 + $0xc70] sm:$0xff]
    %v534 = vld [vmem:[#allocation5 + $0xc78] sm:$0xff]
    %v535 = vld [vmem:[#allocation5 + $0xc80] sm:$0xff]
    %v536 = vld [vmem:[#allocation5 + $0xc88] sm:$0xff]
    %v537 = vld [vmem:[#allocation5 + $0xc90] sm:$0xff]
    %v538 = vld [vmem:[#allocation5 + $0xc98] sm:$0xff]
    %v539 = vld [vmem:[#allocation5 + $0xca0] sm:$0x33]
    %v540 = vld [vmem:[#allocation5 + $0xca8] sm:$0x33]
    %v541 = vld [vmem:[#allocation5 + $0xcb0] sm:$0x33]
    %v542 = vld [vmem:[#allocation5 + $0xcb8] sm:$0x33]
    %v543 = vld [vmem:[#allocation7] sm:$0xff]
    %v545 = vlaneseq
    %v546 = vshrl.u32 %v545, 7
    %v547 = vsub.s32 0, %v546
    %v548 = vrot.slane %v543, %v547
    %v549 = vlaneseq
    %v550 = vshrl.u32 %v549, 7
    %v551 = vsub.s32 1, %v550
    %v552 = vrot.slane %v543, %v551
    %v553 = vlaneseq
    %v554 = vshrl.u32 %v553, 7
    %v555 = vsub.s32 2, %v554
    %v556 = vrot.slane %v543, %v555
    %v557 = vlaneseq
    %v558 = vshrl.u32 %v557, 7
    %v559 = vsub.s32 3, %v558
    %v560 = vrot.slane %v543, %v559
    %v561 = vlaneseq
    %v562 = vshrl.u32 %v561, 7
    %v563 = vsub.s32 4, %v562
    %v564 = vrot.slane %v543, %v563
    %v565 = vlaneseq
    %v566 = vshrl.u32 %v565, 7
    %v567 = vsub.s32 5, %v566
    %v568 = vrot.slane %v543, %v567
    %v569 = vlaneseq
    %v570 = vshrl.u32 %v569, 7
    %v571 = vsub.s32 6, %v570
    %v572 = vrot.slane %v543, %v571
    %v573 = vlaneseq
    %v574 = vshrl.u32 %v573, 7
    %v575 = vsub.s32 7, %v574
    %v576 = vrot.slane %v543, %v575
    %v993 = vunpack.c.l.b16 %v135
    %v994 = vunpack.c.h.b16 %v135
    %v995 = vunpack.c.l.b16 %v136
    %v996 = vunpack.c.h.b16 %v136
    %v997 = vunpack.c.l.b16 %v137
    %v998 = vunpack.c.h.b16 %v137
    %v999 = vunpack.c.l.b16 %v138
    %v1000 = vunpack.c.h.b16 %v138
    %v1001 = vunpack.c.l.b16 %v139
    %v1002 = vunpack.c.h.b16 %v139
    %v1003 = vunpack.c.l.b16 %v140
    %v1004 = vunpack.c.h.b16 %v140
    %v1005 = vunpack.c.l.b16 %v141
    %v1006 = vunpack.c.h.b16 %v141
    %v1007 = vunpack.c.l.b16 %v142
    %v1008 = vunpack.c.h.b16 %v142
    %v1009 = vunpack.c.l.b16 %v143
    %v1010 = vunpack.c.h.b16 %v143
    %v1011 = vunpack.c.l.b16 %v144
    %v1012 = vunpack.c.h.b16 %v144
    %v1013 = vunpack.c.l.b16 %v145
    %v1014 = vunpack.c.h.b16 %v145
    %v1015 = vunpack.c.l.b16 %v146
    %v1016 = vunpack.c.h.b16 %v146
    %v1017 = vunpack.c.l.b16 %v147
    %v1018 = vunpack.c.h.b16 %v147
    %v1019 = vunpack.c.l.b16 %v148
    %v1020 = vunpack.c.h.b16 %v148
    %v1021 = vunpack.c.l.b16 %v149
    %v1022 = vunpack.c.h.b16 %v149
    %v1023 = vunpack.c.l.b16 %v150
    %v1024 = vunpack.c.h.b16 %v150
    %v1025 = vunpack.c.l.b16 %v151
    %v1026 = vunpack.c.h.b16 %v151
    %v1027 = vunpack.c.l.b16 %v152
    %v1028 = vunpack.c.h.b16 %v152
    %v1029 = vunpack.c.l.b16 %v153
    %v1030 = vunpack.c.h.b16 %v153
    %v1031 = vunpack.c.l.b16 %v154
    %v1032 = vunpack.c.h.b16 %v154
    %v1033 = vunpack.c.l.b16 %v155
    %v1034 = vunpack.c.h.b16 %v155
    %v1035 = vunpack.c.l.b16 %v156
    %v1036 = vunpack.c.h.b16 %v156
    %v1037 = vunpack.c.l.b16 %v157
    %v1038 = vunpack.c.h.b16 %v157
    %v1039 = vunpack.c.l.b16 %v158
    %v1040 = vunpack.c.h.b16 %v158
    %v1041 = vunpack.c.l.b16 %v159
    %v1042 = vunpack.c.h.b16 %v159
    %v1043 = vunpack.c.l.b16 %v160
    %v1044 = vunpack.c.h.b16 %v160
    %v1045 = vunpack.c.l.b16 %v161
    %v1046 = vunpack.c.h.b16 %v161
    %v1047 = vunpack.c.l.b16 %v162
    %v1048 = vunpack.c.h.b16 %v162
    %v1049 = vunpack.c.l.b16 %v163
    %v1050 = vunpack.c.h.b16 %v163
    %v1051 = vunpack.c.l.b16 %v164
    %v1052 = vunpack.c.h.b16 %v164
    %v1053 = vunpack.c.l.b16 %v165
    %v1054 = vunpack.c.h.b16 %v165
    %v1055 = vunpack.c.l.b16 %v166
    %v1056 = vunpack.c.h.b16 %v166
    %v1057 = vunpack.c.l.b16 %v167
    %v1058 = vunpack.c.h.b16 %v167
    %v1059 = vunpack.c.l.b16 %v168
    %v1060 = vunpack.c.h.b16 %v168
    %v1061 = vunpack.c.l.b16 %v169
    %v1062 = vunpack.c.h.b16 %v169
    %v1063 = vunpack.c.l.b16 %v170
    %v1064 = vunpack.c.h.b16 %v170
    %v1065 = vunpack.c.l.b16 %v171
    %v1066 = vunpack.c.h.b16 %v171
    %v1067 = vunpack.c.l.b16 %v172
    %v1068 = vunpack.c.h.b16 %v172
    %v1069 = vunpack.c.l.b16 %v173
    %v1070 = vunpack.c.h.b16 %v173
    %v1071 = vunpack.c.l.b16 %v174
    %v1072 = vunpack.c.h.b16 %v174
    %v1073 = vunpack.c.l.b16 %v175
    %v1074 = vunpack.c.h.b16 %v175
    %v1075 = vunpack.c.l.b16 %v176
    %v1076 = vunpack.c.h.b16 %v176
    %v1077 = vunpack.c.l.b16 %v177
    %v1078 = vunpack.c.h.b16 %v177
    %v1079 = vunpack.c.l.b16 %v178
    %v1080 = vunpack.c.h.b16 %v178
    %v1081 = vunpack.c.l.b16 %v179
    %v1082 = vunpack.c.h.b16 %v179
    %v1083 = vunpack.c.l.b16 %v180
    %v1084 = vunpack.c.h.b16 %v180
    %v1085 = vunpack.c.l.b16 %v181
    %v1086 = vunpack.c.h.b16 %v181
    %v1087 = vunpack.c.l.b16 %v182
    %v1088 = vunpack.c.h.b16 %v182
    %v1089 = vunpack.c.l.b16 %v183
    %v1090 = vunpack.c.h.b16 %v183
    %v1091 = vunpack.c.l.b16 %v184
    %v1092 = vunpack.c.h.b16 %v184
    %v1093 = vunpack.c.l.b16 %v185
    %v1094 = vunpack.c.h.b16 %v185
    %v1095 = vunpack.c.l.b16 %v186
    %v1096 = vunpack.c.h.b16 %v186
    %v1097 = vunpack.c.l.b16 %v187
    %v1098 = vunpack.c.h.b16 %v187
    %v1099 = vunpack.c.l.b16 %v188
    %v1100 = vunpack.c.h.b16 %v188
    %v1101 = vunpack.c.l.b16 %v189
    %v1102 = vunpack.c.h.b16 %v189
    %v1103 = vunpack.c.l.b16 %v190
    %v1104 = vunpack.c.h.b16 %v190
    %v1105 = vunpack.c.l.b16 %v191
    %v1106 = vunpack.c.h.b16 %v191
    %v1107 = vunpack.c.l.b16 %v192
    %v1108 = vunpack.c.h.b16 %v192
    %v1109 = vunpack.c.l.b16 %v193
    %v1110 = vunpack.c.h.b16 %v193
    %v1111 = vunpack.c.l.b16 %v194
    %v1112 = vunpack.c.h.b16 %v194
    %v1113 = vunpack.c.l.b16 %v195
    %v1114 = vunpack.c.h.b16 %v195
    %v1115 = vunpack.c.l.b16 %v196
    %v1116 = vunpack.c.h.b16 %v196
    %v1117 = vunpack.c.l.b16 %v197
    %v1118 = vunpack.c.h.b16 %v197
    %v1119 = vunpack.c.l.b16 %v198
    %v1120 = vunpack.c.h.b16 %v198
    %v1121 = vunpack.c.l.b16 %v199
    %v1122 = vunpack.c.h.b16 %v199
    %v1123 = vunpack.c.l.b16 %v200
    %v1124 = vunpack.c.h.b16 %v200
    %v1125 = vunpack.c.l.b16 %v201
    %v1126 = vunpack.c.h.b16 %v201
    %v1127 = vunpack.c.l.b16 %v202
    %v1128 = vunpack.c.h.b16 %v202
    %v1129 = vunpack.c.l.b16 %v203
    %v1130 = vunpack.c.h.b16 %v203
    %v1131 = vunpack.c.l.b16 %v204
    %v1132 = vunpack.c.h.b16 %v204
    %v1133 = vunpack.c.l.b16 %v205
    %v1134 = vunpack.c.h.b16 %v205
    %v1135 = vunpack.c.l.b16 %v206
    %v1136 = vunpack.c.h.b16 %v206
    %v1137 = vunpack.c.l.b16 %v207
    %v1138 = vunpack.c.h.b16 %v207
    %v1139 = vunpack.c.l.b16 %v208
    %v1140 = vunpack.c.h.b16 %v208
    %v1141 = vunpack.c.l.b16 %v209
    %v1142 = vunpack.c.h.b16 %v209
    %v1143 = vunpack.c.l.b16 %v210
    %v1144 = vunpack.c.h.b16 %v210
    %v1145 = vunpack.c.l.b16 %v211
    %v1146 = vunpack.c.h.b16 %v211
    %v1147 = vunpack.c.l.b16 %v212
    %v1148 = vunpack.c.h.b16 %v212
    %v1149 = vunpack.c.l.b16 %v213
    %v1150 = vunpack.c.h.b16 %v213
    %v1151 = vunpack.c.l.b16 %v214
    %v1152 = vunpack.c.h.b16 %v214
    %v1153 = vunpack.c.l.b16 %v215
    %v1154 = vunpack.c.h.b16 %v215
    %v1155 = vunpack.c.l.b16 %v216
    %v1156 = vunpack.c.h.b16 %v216
    %v1157 = vunpack.c.l.b16 %v217
    %v1158 = vunpack.c.h.b16 %v217
    %v1159 = vunpack.c.l.b16 %v218
    %v1160 = vunpack.c.h.b16 %v218
    %v1161 = vunpack.c.l.b16 %v219
    %v1162 = vunpack.c.h.b16 %v219
    %v1163 = vunpack.c.l.b16 %v220
    %v1164 = vunpack.c.h.b16 %v220
    %v1165 = vunpack.c.l.b16 %v221
    %v1166 = vunpack.c.h.b16 %v221
    %v1167 = vunpack.c.l.b16 %v222
    %v1168 = vunpack.c.h.b16 %v222
    %v1169 = vunpack.c.l.b16 %v223
    %v1170 = vunpack.c.h.b16 %v223
    %v1171 = vunpack.c.l.b16 %v224
    %v1172 = vunpack.c.h.b16 %v224
    %v1173 = vunpack.c.l.b16 %v225
    %v1174 = vunpack.c.h.b16 %v225
    %v1175 = vunpack.c.l.b16 %v226
    %v1176 = vunpack.c.h.b16 %v226
    %v1177 = vunpack.c.l.b16 %v227
    %v1178 = vunpack.c.h.b16 %v227
    %v1179 = vunpack.c.l.b16 %v228
    %v1180 = vunpack.c.h.b16 %v228
    %v1181 = vunpack.c.l.b16 %v229
    %v1182 = vunpack.c.h.b16 %v229
    %v1183 = vunpack.c.l.b16 %v230
    %v1184 = vunpack.c.h.b16 %v230
    %v1185 = vunpack.c.l.b16 %v231
    %v1186 = vunpack.c.h.b16 %v231
    %v1187 = vunpack.c.l.b16 %v232
    %v1188 = vunpack.c.h.b16 %v232
    %v1189 = vunpack.c.l.b16 %v233
    %v1190 = vunpack.c.h.b16 %v233
    %v1191 = vunpack.c.l.b16 %v234
    %v1192 = vunpack.c.h.b16 %v234
    %v1193 = vunpack.c.l.b16 %v235
    %v1194 = vunpack.c.h.b16 %v235
    %v1195 = vunpack.c.l.b16 %v236
    %v1196 = vunpack.c.h.b16 %v236
    %v1197 = vunpack.c.l.b16 %v237
    %v1198 = vunpack.c.h.b16 %v237
    %v1199 = vunpack.c.l.b16 %v238
    %v1200 = vunpack.c.h.b16 %v238
    %v1201 = vunpack.c.l.b16 %v239
    %v1202 = vunpack.c.h.b16 %v239
    %v1203 = vunpack.c.l.b16 %v240
    %v1204 = vunpack.c.h.b16 %v240
    %v1205 = vunpack.c.l.b16 %v241
    %v1206 = vunpack.c.h.b16 %v241
    %v1207 = vunpack.c.l.b16 %v242
    %v1208 = vunpack.c.h.b16 %v242
    %v1209 = vunpack.c.l.b16 %v243
    %v1210 = vunpack.c.h.b16 %v243
    %v1211 = vunpack.c.l.b16 %v244
    %v1212 = vunpack.c.h.b16 %v244
    %v1213 = vunpack.c.l.b16 %v245
    %v1214 = vunpack.c.h.b16 %v245
    %v1215 = vunpack.c.l.b16 %v246
    %v1216 = vunpack.c.h.b16 %v246
    %v1217 = vunpack.c.l.b16 %v247
    %v1218 = vunpack.c.h.b16 %v247
    %v1219 = vunpack.c.l.b16 %v248
    %v1220 = vunpack.c.h.b16 %v248
    %v1221 = vunpack.c.l.b16 %v249
    %v1222 = vunpack.c.h.b16 %v249
    %v1223 = vunpack.c.l.b16 %v250
    %v1224 = vunpack.c.h.b16 %v250
    %v1225 = vunpack.c.l.b16 %v251
    %v1226 = vunpack.c.h.b16 %v251
    %v1227 = vunpack.c.l.b16 %v252
    %v1228 = vunpack.c.h.b16 %v252
    %v1229 = vunpack.c.l.b16 %v253
    %v1230 = vunpack.c.h.b16 %v253
    %v1231 = vunpack.c.l.b16 %v254
    %v1232 = vunpack.c.h.b16 %v254
    %v1233 = vunpack.c.l.b16 %v255
    %v1234 = vunpack.c.h.b16 %v255
    %v1235 = vunpack.c.l.b16 %v256
    %v1236 = vunpack.c.h.b16 %v256
    %v1237 = vunpack.c.l.b16 %v257
    %v1238 = vunpack.c.h.b16 %v257
    %v1239 = vunpack.c.l.b16 %v258
    %v1240 = vunpack.c.h.b16 %v258
    %v1241 = vunpack.c.l.b16 %v259
    %v1242 = vunpack.c.h.b16 %v259
    %v1243 = vunpack.c.l.b16 %v260
    %v1244 = vunpack.c.h.b16 %v260
    %v1245 = vunpack.c.l.b16 %v261
    %v1246 = vunpack.c.h.b16 %v261
    %v1247 = vunpack.c.l.b16 %v262
    %v1248 = vunpack.c.h.b16 %v262
    %v1249 = vunpack.c.l.b16 %v263
    %v1250 = vunpack.c.h.b16 %v263
    %v1251 = vunpack.c.l.b16 %v264
    %v1252 = vunpack.c.h.b16 %v264
    %v1253 = vunpack.c.l.b16 %v265
    %v1254 = vunpack.c.h.b16 %v265
    %v1255 = vunpack.c.l.b16 %v266
    %v1256 = vunpack.c.h.b16 %v266
    %v1257 = vunpack.c.l.b16 %v267
    %v1258 = vunpack.c.h.b16 %v267
    %v1259 = vunpack.c.l.b16 %v268
    %v1260 = vunpack.c.h.b16 %v268
    %v1261 = vunpack.c.l.b16 %v269
    %v1262 = vunpack.c.h.b16 %v269
    %v1263 = vunpack.c.l.b16 %v270
    %v1264 = vunpack.c.h.b16 %v270
    %v1265 = vunpack.c.l.b16 %v271
    %v1266 = vunpack.c.h.b16 %v271
    %v1267 = vunpack.c.l.b16 %v272
    %v1268 = vunpack.c.h.b16 %v272
    %v1269 = vunpack.c.l.b16 %v273
    %v1270 = vunpack.c.h.b16 %v273
    %v1271 = vunpack.c.l.b16 %v274
    %v1272 = vunpack.c.h.b16 %v274
    %v1273 = vunpack.c.l.b16 %v275
    %v1274 = vunpack.c.h.b16 %v275
    %v1275 = vunpack.c.l.b16 %v276
    %v1276 = vunpack.c.h.b16 %v276
    %v1277 = vunpack.c.l.b16 %v277
    %v1278 = vunpack.c.h.b16 %v277
    %v1279 = vunpack.c.l.b16 %v278
    %v1280 = vunpack.c.h.b16 %v278
    %v1281 = vunpack.c.l.b16 %v279
    %v1282 = vunpack.c.h.b16 %v279
    %v1283 = vunpack.c.l.b16 %v280
    %v1284 = vunpack.c.h.b16 %v280
    %v1285 = vunpack.c.l.b16 %v281
    %v1286 = vunpack.c.h.b16 %v281
    %v1287 = vunpack.c.l.b16 %v282
    %v1288 = vunpack.c.h.b16 %v282
    %v1289 = vunpack.c.l.b16 %v283
    %v1290 = vunpack.c.h.b16 %v283
    %v1291 = vunpack.c.l.b16 %v284
    %v1292 = vunpack.c.h.b16 %v284
    %v1293 = vunpack.c.l.b16 %v285
    %v1294 = vunpack.c.h.b16 %v285
    %v1295 = vunpack.c.l.b16 %v286
    %v1296 = vunpack.c.h.b16 %v286
    %v1297 = vunpack.c.l.b16 %v287
    %v1298 = vunpack.c.h.b16 %v287
    %v1299 = vunpack.c.l.b16 %v288
    %v1300 = vunpack.c.h.b16 %v288
    %v1301 = vunpack.c.l.b16 %v289
    %v1302 = vunpack.c.h.b16 %v289
    %v1303 = vunpack.c.l.b16 %v290
    %v1304 = vunpack.c.h.b16 %v290
    %v1305 = vunpack.c.l.b16 %v291
    %v1306 = vunpack.c.h.b16 %v291
    %v1307 = vunpack.c.l.b16 %v292
    %v1308 = vunpack.c.h.b16 %v292
    %v1309 = vunpack.c.l.b16 %v293
    %v1310 = vunpack.c.h.b16 %v293
    %v1311 = vunpack.c.l.b16 %v294
    %v1312 = vunpack.c.h.b16 %v294
    %v1313 = vunpack.c.l.b16 %v295
    %v1314 = vunpack.c.h.b16 %v295
    %v1315 = vunpack.c.l.b16 %v296
    %v1316 = vunpack.c.h.b16 %v296
    %v1317 = vunpack.c.l.b16 %v297
    %v1318 = vunpack.c.h.b16 %v297
    %v1319 = vunpack.c.l.b16 %v298
    %v1320 = vunpack.c.h.b16 %v298
    %v1321 = vunpack.c.l.b16 %v299
    %v1322 = vunpack.c.h.b16 %v299
    %v1323 = vunpack.c.l.b16 %v300
    %v1324 = vunpack.c.h.b16 %v300
    %v1325 = vunpack.c.l.b16 %v301
    %v1326 = vunpack.c.h.b16 %v301
    %v1327 = vunpack.c.l.b16 %v302
    %v1328 = vunpack.c.h.b16 %v302
    %v1329 = vunpack.c.l.b16 %v303
    %v1330 = vunpack.c.h.b16 %v303
    %v1331 = vunpack.c.l.b16 %v304
    %v1332 = vunpack.c.h.b16 %v304
    %v1333 = vunpack.c.l.b16 %v305
    %v1334 = vunpack.c.h.b16 %v305
    %v1335 = vunpack.c.l.b16 %v306
    %v1336 = vunpack.c.h.b16 %v306
    %v1337 = vunpack.c.l.b16 %v307
    %v1338 = vunpack.c.h.b16 %v307
    %v1339 = vunpack.c.l.b16 %v308
    %v1340 = vunpack.c.h.b16 %v308
    %v1341 = vunpack.c.l.b16 %v309
    %v1342 = vunpack.c.h.b16 %v309
    %v1343 = vunpack.c.l.b16 %v310
    %v1344 = vunpack.c.h.b16 %v310
    %v1345 = vunpack.c.l.b16 %v311
    %v1346 = vunpack.c.h.b16 %v311
    %v1347 = vunpack.c.l.b16 %v312
    %v1348 = vunpack.c.h.b16 %v312
    %v1349 = vunpack.c.l.b16 %v313
    %v1350 = vunpack.c.h.b16 %v313
    %v1351 = vunpack.c.l.b16 %v314
    %v1352 = vunpack.c.h.b16 %v314
    %v1353 = vunpack.c.l.b16 %v315
    %v1354 = vunpack.c.h.b16 %v315
    %v1355 = vunpack.c.l.b16 %v316
    %v1356 = vunpack.c.h.b16 %v316
    %v1357 = vunpack.c.l.b16 %v317
    %v1358 = vunpack.c.h.b16 %v317
    %v1359 = vunpack.c.l.b16 %v318
    %v1360 = vunpack.c.h.b16 %v318
    %v1361 = vunpack.c.l.b16 %v319
    %v1362 = vunpack.c.h.b16 %v319
    %v1363 = vunpack.c.l.b16 %v320
    %v1364 = vunpack.c.h.b16 %v320
    %v1365 = vunpack.c.l.b16 %v321
    %v1366 = vunpack.c.h.b16 %v321
    %v1367 = vunpack.c.l.b16 %v322
    %v1368 = vunpack.c.h.b16 %v322
    %v1369 = vunpack.c.l.b16 %v323
    %v1370 = vunpack.c.h.b16 %v323
    %v1371 = vunpack.c.l.b16 %v324
    %v1372 = vunpack.c.h.b16 %v324
    %v1373 = vunpack.c.l.b16 %v325
    %v1374 = vunpack.c.h.b16 %v325
    %v1375 = vunpack.c.l.b16 %v326
    %v1376 = vunpack.c.h.b16 %v326
    %v1377 = vunpack.c.l.b16 %v327
    %v1378 = vunpack.c.h.b16 %v327
    %v1379 = vunpack.c.l.b16 %v328
    %v1380 = vunpack.c.h.b16 %v328
    %v1381 = vunpack.c.l.b16 %v329
    %v1382 = vunpack.c.h.b16 %v329
    %v1383 = vunpack.c.l.b16 %v330
    %v1384 = vunpack.c.h.b16 %v330
    %v1385 = vunpack.c.l.b16 %v331
    %v1386 = vunpack.c.h.b16 %v331
    %v1387 = vunpack.c.l.b16 %v332
    %v1388 = vunpack.c.h.b16 %v332
    %v1389 = vunpack.c.l.b16 %v333
    %v1390 = vunpack.c.h.b16 %v333
    %v1391 = vunpack.c.l.b16 %v334
    %v1392 = vunpack.c.h.b16 %v334
    %v1393 = vunpack.c.l.b16 %v335
    %v1394 = vunpack.c.h.b16 %v335
    %v1395 = vunpack.c.l.b16 %v336
    %v1396 = vunpack.c.h.b16 %v336
    %v1397 = vunpack.c.l.b16 %v337
    %v1398 = vunpack.c.h.b16 %v337
    %v1399 = vunpack.c.l.b16 %v338
    %v1400 = vunpack.c.h.b16 %v338
    %v1401 = vunpack.c.l.b16 %v339
    %v1402 = vunpack.c.h.b16 %v339
    %v1403 = vunpack.c.l.b16 %v340
    %v1404 = vunpack.c.h.b16 %v340
    %v1405 = vunpack.c.l.b16 %v341
    %v1406 = vunpack.c.h.b16 %v341
    %v1407 = vunpack.c.l.b16 %v342
    %v1408 = vunpack.c.h.b16 %v342
    %v1409 = vunpack.c.l.b16 %v343
    %v1410 = vunpack.c.h.b16 %v343
    %v1411 = vunpack.c.l.b16 %v344
    %v1412 = vunpack.c.h.b16 %v344
    %v1413 = vunpack.c.l.b16 %v345
    %v1414 = vunpack.c.h.b16 %v345
    %v1415 = vunpack.c.l.b16 %v346
    %v1416 = vunpack.c.h.b16 %v346
    %v1417 = vunpack.c.l.b16 %v347
    %v1418 = vunpack.c.h.b16 %v347
    %v1419 = vunpack.c.l.b16 %v348
    %v1420 = vunpack.c.h.b16 %v348
    %v1421 = vunpack.c.l.b16 %v349
    %v1422 = vunpack.c.h.b16 %v349
    %v1423 = vunpack.c.l.b16 %v350
    %v1424 = vunpack.c.h.b16 %v350
    %v1425 = vunpack.c.l.b16 %v351
    %v1426 = vunpack.c.h.b16 %v351
    %v1427 = vunpack.c.l.b16 %v352
    %v1428 = vunpack.c.h.b16 %v352
    %v1429 = vunpack.c.l.b16 %v353
    %v1430 = vunpack.c.h.b16 %v353
    %v1431 = vunpack.c.l.b16 %v354
    %v1432 = vunpack.c.h.b16 %v354
    %v1433 = vunpack.c.l.b16 %v355
    %v1434 = vunpack.c.h.b16 %v355
    %v1435 = vunpack.c.l.b16 %v356
    %v1436 = vunpack.c.h.b16 %v356
    %v1437 = vunpack.c.l.b16 %v357
    %v1438 = vunpack.c.h.b16 %v357
    %v1439 = vunpack.c.l.b16 %v358
    %v1440 = vunpack.c.h.b16 %v358
    %v1441 = vunpack.c.l.b16 %v359
    %v1442 = vunpack.c.h.b16 %v359
    %v1443 = vunpack.c.l.b16 %v360
    %v1444 = vunpack.c.h.b16 %v360
    %v1445 = vunpack.c.l.b16 %v361
    %v1446 = vunpack.c.h.b16 %v361
    %v1447 = vunpack.c.l.b16 %v362
    %v1448 = vunpack.c.h.b16 %v362
    %v1449 = vunpack.c.l.b16 %v363
    %v1450 = vunpack.c.h.b16 %v363
    %v1451 = vunpack.c.l.b16 %v364
    %v1452 = vunpack.c.h.b16 %v364
    %v1453 = vunpack.c.l.b16 %v365
    %v1454 = vunpack.c.h.b16 %v365
    %v1455 = vunpack.c.l.b16 %v366
    %v1456 = vunpack.c.h.b16 %v366
    %v1457 = vunpack.c.l.b16 %v367
    %v1458 = vunpack.c.h.b16 %v367
    %v1459 = vunpack.c.l.b16 %v368
    %v1460 = vunpack.c.h.b16 %v368
    %v1461 = vunpack.c.l.b16 %v369
    %v1462 = vunpack.c.h.b16 %v369
    %v1463 = vunpack.c.l.b16 %v370
    %v1464 = vunpack.c.h.b16 %v370
    %v1465 = vunpack.c.l.b16 %v371
    %v1466 = vunpack.c.h.b16 %v371
    %v1467 = vunpack.c.l.b16 %v372
    %v1468 = vunpack.c.h.b16 %v372
    %v1469 = vunpack.c.l.b16 %v373
    %v1470 = vunpack.c.h.b16 %v373
    %v1471 = vunpack.c.l.b16 %v374
    %v1472 = vunpack.c.h.b16 %v374
    %v1473 = vunpack.c.l.b16 %v375
    %v1474 = vunpack.c.h.b16 %v375
    %v1475 = vunpack.c.l.b16 %v376
    %v1476 = vunpack.c.h.b16 %v376
    %v1477 = vunpack.c.l.b16 %v377
    %v1478 = vunpack.c.h.b16 %v377
    %v1479 = vunpack.c.l.b16 %v378
    %v1480 = vunpack.c.h.b16 %v378
    %v1481 = vunpack.c.l.b16 %v379
    %v1482 = vunpack.c.h.b16 %v379
    %v1483 = vunpack.c.l.b16 %v380
    %v1484 = vunpack.c.h.b16 %v380
    %v1485 = vunpack.c.l.b16 %v381
    %v1486 = vunpack.c.h.b16 %v381
    %v1487 = vunpack.c.l.b16 %v382
    %v1488 = vunpack.c.h.b16 %v382
    %v1489 = vunpack.c.l.b16 %v383
    %v1490 = vunpack.c.h.b16 %v383
    %v1491 = vunpack.c.l.b16 %v384
    %v1492 = vunpack.c.h.b16 %v384
    %v1493 = vunpack.c.l.b16 %v385
    %v1494 = vunpack.c.h.b16 %v385
    %v1495 = vunpack.c.l.b16 %v386
    %v1496 = vunpack.c.h.b16 %v386
    %v1497 = vunpack.c.l.b16 %v387
    %v1498 = vunpack.c.h.b16 %v387
    %v1499 = vunpack.c.l.b16 %v388
    %v1500 = vunpack.c.h.b16 %v388
    %v1501 = vunpack.c.l.b16 %v389
    %v1502 = vunpack.c.h.b16 %v389
    %v1503 = vunpack.c.l.b16 %v390
    %v1504 = vunpack.c.h.b16 %v390
    %v1505 = vunpack.c.l.b16 %v391
    %v1506 = vunpack.c.h.b16 %v391
    %v1507 = vunpack.c.l.b16 %v392
    %v1508 = vunpack.c.h.b16 %v392
    %v1509 = vunpack.c.l.b16 %v393
    %v1510 = vunpack.c.h.b16 %v393
    %v1511 = vunpack.c.l.b16 %v394
    %v1512 = vunpack.c.h.b16 %v394
    %v1513 = vunpack.c.l.b16 %v395
    %v1514 = vunpack.c.h.b16 %v395
    %v1515 = vunpack.c.l.b16 %v396
    %v1516 = vunpack.c.h.b16 %v396
    %v1517 = vunpack.c.l.b16 %v397
    %v1518 = vunpack.c.h.b16 %v397
    %v1519 = vunpack.c.l.b16 %v398
    %v1520 = vunpack.c.h.b16 %v398
    %v1521 = vunpack.c.l.b16 %v399
    %v1522 = vunpack.c.h.b16 %v399
    %v1523 = vunpack.c.l.b16 %v400
    %v1524 = vunpack.c.h.b16 %v400
    %v1525 = vunpack.c.l.b16 %v401
    %v1526 = vunpack.c.h.b16 %v401
    %v1527 = vunpack.c.l.b16 %v402
    %v1528 = vunpack.c.h.b16 %v402
    %v1529 = vunpack.c.l.b16 %v403
    %v1530 = vunpack.c.h.b16 %v403
    %v1531 = vunpack.c.l.b16 %v404
    %v1532 = vunpack.c.h.b16 %v404
    %v1533 = vunpack.c.l.b16 %v405
    %v1534 = vunpack.c.h.b16 %v405
    %v1535 = vunpack.c.l.b16 %v406
    %v1536 = vunpack.c.h.b16 %v406
    %v1537 = vunpack.c.l.b16 %v407
    %v1538 = vunpack.c.h.b16 %v407
    %v1539 = vunpack.c.l.b16 %v408
    %v1540 = vunpack.c.h.b16 %v408
    %v1541 = vunpack.c.l.b16 %v409
    %v1542 = vunpack.c.h.b16 %v409
    %v1543 = vunpack.c.l.b16 %v410
    %v1544 = vunpack.c.h.b16 %v410
    %v1545 = vunpack.c.l.b16 %v411
    %v1546 = vunpack.c.h.b16 %v411
    %v1547 = vunpack.c.l.b16 %v412
    %v1548 = vunpack.c.h.b16 %v412
    %v1549 = vunpack.c.l.b16 %v413
    %v1550 = vunpack.c.h.b16 %v413
    %v1551 = vunpack.c.l.b16 %v414
    %v1552 = vunpack.c.h.b16 %v414
    %v1553 = vunpack.c.l.b16 %v415
    %v1554 = vunpack.c.h.b16 %v415
    %v1555 = vunpack.c.l.b16 %v416
    %v1556 = vunpack.c.h.b16 %v416
    %v1557 = vunpack.c.l.b16 %v417
    %v1558 = vunpack.c.h.b16 %v417
    %v1559 = vunpack.c.l.b16 %v418
    %v1560 = vunpack.c.h.b16 %v418
    %v1561 = vunpack.c.l.b16 %v419
    %v1562 = vunpack.c.h.b16 %v419
    %v1563 = vunpack.c.l.b16 %v420
    %v1564 = vunpack.c.h.b16 %v420
    %v1565 = vunpack.c.l.b16 %v421
    %v1566 = vunpack.c.h.b16 %v421
    %v1567 = vunpack.c.l.b16 %v422
    %v1568 = vunpack.c.h.b16 %v422
    %v1569 = vunpack.c.l.b16 %v423
    %v1570 = vunpack.c.h.b16 %v423
    %v1571 = vunpack.c.l.b16 %v424
    %v1572 = vunpack.c.h.b16 %v424
    %v1573 = vunpack.c.l.b16 %v425
    %v1574 = vunpack.c.h.b16 %v425
    %v1575 = vunpack.c.l.b16 %v426
    %v1576 = vunpack.c.h.b16 %v426
    %v1577 = vunpack.c.l.b16 %v427
    %v1578 = vunpack.c.h.b16 %v427
    %v1579 = vunpack.c.l.b16 %v428
    %v1580 = vunpack.c.h.b16 %v428
    %v1581 = vunpack.c.l.b16 %v429
    %v1582 = vunpack.c.h.b16 %v429
    %v1583 = vunpack.c.l.b16 %v430
    %v1584 = vunpack.c.h.b16 %v430
    %v1585 = vunpack.c.l.b16 %v431
    %v1586 = vunpack.c.h.b16 %v431
    %v1587 = vunpack.c.l.b16 %v432
    %v1588 = vunpack.c.h.b16 %v432
    %v1589 = vunpack.c.l.b16 %v433
    %v1590 = vunpack.c.h.b16 %v433
    %v1591 = vunpack.c.l.b16 %v434
    %v1592 = vunpack.c.h.b16 %v434
    %v1593 = vunpack.c.l.b16 %v435
    %v1594 = vunpack.c.h.b16 %v435
    %v1595 = vunpack.c.l.b16 %v436
    %v1596 = vunpack.c.h.b16 %v436
    %v1597 = vunpack.c.l.b16 %v437
    %v1598 = vunpack.c.h.b16 %v437
    %v1599 = vunpack.c.l.b16 %v438
    %v1600 = vunpack.c.h.b16 %v438
    %v1601 = vunpack.c.l.b16 %v439
    %v1602 = vunpack.c.h.b16 %v439
    %v1603 = vunpack.c.l.b16 %v440
    %v1604 = vunpack.c.h.b16 %v440
    %v1605 = vunpack.c.l.b16 %v441
    %v1606 = vunpack.c.h.b16 %v441
    %v1607 = vunpack.c.l.b16 %v442
    %v1608 = vunpack.c.h.b16 %v442
    %v1609 = vunpack.c.l.b16 %v443
    %v1610 = vunpack.c.h.b16 %v443
    %v1611 = vunpack.c.l.b16 %v444
    %v1612 = vunpack.c.h.b16 %v444
    %v1613 = vunpack.c.l.b16 %v445
    %v1614 = vunpack.c.h.b16 %v445
    %v1615 = vunpack.c.l.b16 %v446
    %v1616 = vunpack.c.h.b16 %v446
    %v1617 = vunpack.c.l.b16 %v447
    %v1618 = vunpack.c.h.b16 %v447
    %v1619 = vunpack.c.l.b16 %v448
    %v1620 = vunpack.c.h.b16 %v448
    %v1621 = vunpack.c.l.b16 %v449
    %v1622 = vunpack.c.h.b16 %v449
    %v1623 = vunpack.c.l.b16 %v450
    %v1624 = vunpack.c.h.b16 %v450
    %v1625 = vunpack.c.l.b16 %v451
    %v1626 = vunpack.c.h.b16 %v451
    %v1627 = vunpack.c.l.b16 %v452
    %v1628 = vunpack.c.h.b16 %v452
    %v1629 = vunpack.c.l.b16 %v453
    %v1630 = vunpack.c.h.b16 %v453
    %v1631 = vunpack.c.l.b16 %v454
    %v1632 = vunpack.c.h.b16 %v454
    %v1633 = vunpack.c.l.b16 %v455
    %v1634 = vunpack.c.h.b16 %v455
    %v1635 = vunpack.c.l.b16 %v456
    %v1636 = vunpack.c.h.b16 %v456
    %v1637 = vunpack.c.l.b16 %v457
    %v1638 = vunpack.c.h.b16 %v457
    %v1639 = vunpack.c.l.b16 %v458
    %v1640 = vunpack.c.h.b16 %v458
    %v1641 = vunpack.c.l.b16 %v459
    %v1642 = vunpack.c.h.b16 %v459
    %v1643 = vunpack.c.l.b16 %v460
    %v1644 = vunpack.c.h.b16 %v460
    %v1645 = vunpack.c.l.b16 %v461
    %v1646 = vunpack.c.h.b16 %v461
    %v1647 = vunpack.c.l.b16 %v462
    %v1648 = vunpack.c.h.b16 %v462
    %v1649 = vunpack.c.l.b16 %v463
    %v1650 = vunpack.c.h.b16 %v463
    %v1651 = vunpack.c.l.b16 %v464
    %v1652 = vunpack.c.h.b16 %v464
    %v1653 = vunpack.c.l.b16 %v465
    %v1654 = vunpack.c.h.b16 %v465
    %v1655 = vunpack.c.l.b16 %v466
    %v1656 = vunpack.c.h.b16 %v466
    %v1657 = vunpack.c.l.b16 %v467
    %v1658 = vunpack.c.h.b16 %v467
    %v1659 = vunpack.c.l.b16 %v468
    %v1660 = vunpack.c.h.b16 %v468
    %v1661 = vunpack.c.l.b16 %v469
    %v1662 = vunpack.c.h.b16 %v469
    %v1663 = vunpack.c.l.b16 %v470
    %v1664 = vunpack.c.h.b16 %v470
    %v1665 = vunpack.c.l.b16 %v471
    %v1666 = vunpack.c.h.b16 %v471
    %v1667 = vunpack.c.l.b16 %v472
    %v1668 = vunpack.c.h.b16 %v472
    %v1669 = vunpack.c.l.b16 %v473
    %v1670 = vunpack.c.h.b16 %v473
    %v1671 = vunpack.c.l.b16 %v474
    %v1672 = vunpack.c.h.b16 %v474
    %v1673 = vunpack.c.l.b16 %v475
    %v1674 = vunpack.c.h.b16 %v475
    %v1675 = vunpack.c.l.b16 %v476
    %v1676 = vunpack.c.h.b16 %v476
    %v1677 = vunpack.c.l.b16 %v477
    %v1678 = vunpack.c.h.b16 %v477
    %v1679 = vunpack.c.l.b16 %v478
    %v1680 = vunpack.c.h.b16 %v478
    %v1681 = vunpack.c.l.b16 %v479
    %v1682 = vunpack.c.h.b16 %v479
    %v1683 = vunpack.c.l.b16 %v480
    %v1684 = vunpack.c.h.b16 %v480
    %v1685 = vunpack.c.l.b16 %v481
    %v1686 = vunpack.c.h.b16 %v481
    %v1687 = vunpack.c.l.b16 %v482
    %v1688 = vunpack.c.h.b16 %v482
    %v1689 = vunpack.c.l.b16 %v483
    %v1690 = vunpack.c.h.b16 %v483
    %v1691 = vunpack.c.l.b16 %v484
    %v1692 = vunpack.c.h.b16 %v484
    %v1693 = vunpack.c.l.b16 %v485
    %v1694 = vunpack.c.h.b16 %v485
    %v1695 = vunpack.c.l.b16 %v486
    %v1696 = vunpack.c.h.b16 %v486
    %v1697 = vunpack.c.l.b16 %v487
    %v1698 = vunpack.c.h.b16 %v487
    %v1699 = vunpack.c.l.b16 %v488
    %v1700 = vunpack.c.h.b16 %v488
    %v1701 = vunpack.c.l.b16 %v489
    %v1702 = vunpack.c.h.b16 %v489
    %v1703 = vunpack.c.l.b16 %v490
    %v1704 = vunpack.c.h.b16 %v490
    %v1705 = vunpack.c.l.b16 %v491
    %v1706 = vunpack.c.h.b16 %v491
    %v1707 = vunpack.c.l.b16 %v492
    %v1708 = vunpack.c.h.b16 %v492
    %v1709 = vunpack.c.l.b16 %v493
    %v1710 = vunpack.c.h.b16 %v493
    %v1711 = vunpack.c.l.b16 %v494
    %v1712 = vunpack.c.h.b16 %v494
    %v1713 = vunpack.c.l.b16 %v495
    %v1714 = vunpack.c.h.b16 %v495
    %v1715 = vunpack.c.l.b16 %v496
    %v1716 = vunpack.c.h.b16 %v496
    %v1717 = vunpack.c.l.b16 %v497
    %v1718 = vunpack.c.h.b16 %v497
    %v1719 = vunpack.c.l.b16 %v498
    %v1720 = vunpack.c.h.b16 %v498
    %v1721 = vunpack.c.l.b16 %v499
    %v1722 = vunpack.c.h.b16 %v499
    %v1723 = vunpack.c.l.b16 %v500
    %v1724 = vunpack.c.h.b16 %v500
    %v1725 = vunpack.c.l.b16 %v501
    %v1726 = vunpack.c.h.b16 %v501
    %v1727 = vunpack.c.l.b16 %v502
    %v1728 = vunpack.c.h.b16 %v502
    %v1729 = vunpack.c.l.b16 %v503
    %v1730 = vunpack.c.h.b16 %v503
    %v1731 = vunpack.c.l.b16 %v504
    %v1732 = vunpack.c.h.b16 %v504
    %v1733 = vunpack.c.l.b16 %v505
    %v1734 = vunpack.c.h.b16 %v505
    %v1735 = vunpack.c.l.b16 %v506
    %v1736 = vunpack.c.h.b16 %v506
    %v1737 = vunpack.c.l.b16 %v507
    %v1738 = vunpack.c.h.b16 %v507
    %v1739 = vunpack.c.l.b16 %v508
    %v1740 = vunpack.c.h.b16 %v508
    %v1741 = vunpack.c.l.b16 %v509
    %v1742 = vunpack.c.h.b16 %v509
    %v1743 = vunpack.c.l.b16 %v510
    %v1744 = vunpack.c.h.b16 %v510
    %v1745 = vunpack.c.l.b16 %v511
    %v1746 = vunpack.c.h.b16 %v511
    %v1747 = vunpack.c.l.b16 %v512
    %v1748 = vunpack.c.h.b16 %v512
    %v1749 = vunpack.c.l.b16 %v513
    %v1750 = vunpack.c.h.b16 %v513
    %v1751 = vunpack.c.l.b16 %v514
    %v1752 = vunpack.c.h.b16 %v514
    %v1753 = vunpack.c.l.b16 %v515
    %v1754 = vunpack.c.h.b16 %v515
    %v1755 = vunpack.c.l.b16 %v516
    %v1756 = vunpack.c.h.b16 %v516
    %v1757 = vunpack.c.l.b16 %v517
    %v1758 = vunpack.c.h.b16 %v517
    %v1759 = vunpack.c.l.b16 %v518
    %v1760 = vunpack.c.h.b16 %v518
    %v1761 = vunpack.c.l.b16 %v519
    %v1762 = vunpack.c.h.b16 %v519
    %v1763 = vunpack.c.l.b16 %v520
    %v1764 = vunpack.c.h.b16 %v520
    %v1765 = vunpack.c.l.b16 %v521
    %v1766 = vunpack.c.h.b16 %v521
    %v1767 = vunpack.c.l.b16 %v522
    %v1768 = vunpack.c.h.b16 %v522
    %v1769 = vunpack.c.l.b16 %v523
    %v1770 = vunpack.c.h.b16 %v523
    %v1771 = vunpack.c.l.b16 %v524
    %v1772 = vunpack.c.h.b16 %v524
    %v1773 = vunpack.c.l.b16 %v525
    %v1774 = vunpack.c.h.b16 %v525
    %v1775 = vunpack.c.l.b16 %v526
    %v1776 = vunpack.c.h.b16 %v526
    %v1777 = vunpack.c.l.b16 %v527
    %v1778 = vunpack.c.h.b16 %v527
    %v1779 = vunpack.c.l.b16 %v528
    %v1780 = vunpack.c.h.b16 %v528
    %v1781 = vunpack.c.l.b16 %v529
    %v1782 = vunpack.c.h.b16 %v529
    %v1783 = vunpack.c.l.b16 %v530
    %v1784 = vunpack.c.h.b16 %v530
    %v1785 = vunpack.c.l.b16 %v531
    %v1786 = vunpack.c.h.b16 %v531
    %v1787 = vunpack.c.l.b16 %v532
    %v1788 = vunpack.c.h.b16 %v532
    %v1789 = vunpack.c.l.b16 %v533
    %v1790 = vunpack.c.h.b16 %v533
    %v1791 = vunpack.c.l.b16 %v534
    %v1792 = vunpack.c.h.b16 %v534
    %v1793 = vunpack.c.l.b16 %v535
    %v1794 = vunpack.c.h.b16 %v535
    %v1795 = vunpack.c.l.b16 %v536
    %v1796 = vunpack.c.h.b16 %v536
    %v1797 = vunpack.c.l.b16 %v537
    %v1798 = vunpack.c.h.b16 %v537
    %v1799 = vunpack.c.l.b16 %v538
    %v1800 = vunpack.c.h.b16 %v538
    %v1801 = vunpack.c.l.b16 %v539
    %v1802 = vunpack.c.h.b16 %v539
    %v1803 = vunpack.c.l.b16 %v540
    %v1804 = vunpack.c.h.b16 %v540
    %v1805 = vunpack.c.l.b16 %v541
    %v1806 = vunpack.c.h.b16 %v541
    %v1807 = vunpack.c.l.b16 %v542
    %v1808 = vunpack.c.h.b16 %v542
    %v1809 = vpack.c.b16 %v1001, %v993
    %v1810 = vpack.c.b16 %v1002, %v994
    %v1811 = vpack.c.b16 %v1003, %v995
    %v1812 = vpack.c.b16 %v1004, %v996
    %v1813 = vpack.c.b16 %v1005, %v997
    %v1814 = vpack.c.b16 %v1006, %v998
    %v1815 = vpack.c.b16 %v1007, %v999
    %v1816 = vpack.c.b16 %v1008, %v1000
    %v1817 = vpack.c.b16 %v1017, %v1009
    %v1818 = vpack.c.b16 %v1018, %v1010
    %v1819 = vpack.c.b16 %v1019, %v1011
    %v1820 = vpack.c.b16 %v1020, %v1012
    %v1821 = vpack.c.b16 %v1021, %v1013
    %v1822 = vpack.c.b16 %v1022, %v1014
    %v1823 = vpack.c.b16 %v1023, %v1015
    %v1824 = vpack.c.b16 %v1024, %v1016
    %v1825 = vpack.c.b16 %v1033, %v1025
    %v1826 = vpack.c.b16 %v1034, %v1026
    %v1827 = vpack.c.b16 %v1035, %v1027
    %v1828 = vpack.c.b16 %v1036, %v1028
    %v1829 = vpack.c.b16 %v1037, %v1029
    %v1830 = vpack.c.b16 %v1038, %v1030
    %v1831 = vpack.c.b16 %v1039, %v1031
    %v1832 = vpack.c.b16 %v1040, %v1032
    %v1833 = vpack.c.b16 %v1049, %v1041
    %v1834 = vpack.c.b16 %v1050, %v1042
    %v1835 = vpack.c.b16 %v1051, %v1043
    %v1836 = vpack.c.b16 %v1052, %v1044
    %v1837 = vpack.c.b16 %v1053, %v1045
    %v1838 = vpack.c.b16 %v1054, %v1046
    %v1839 = vpack.c.b16 %v1055, %v1047
    %v1840 = vpack.c.b16 %v1056, %v1048
    %v1841 = vpack.c.b16 %v1065, %v1057
    %v1842 = vpack.c.b16 %v1066, %v1058
    %v1843 = vpack.c.b16 %v1067, %v1059
    %v1844 = vpack.c.b16 %v1068, %v1060
    %v1845 = vpack.c.b16 %v1069, %v1061
    %v1846 = vpack.c.b16 %v1070, %v1062
    %v1847 = vpack.c.b16 %v1071, %v1063
    %v1848 = vpack.c.b16 %v1072, %v1064
    %v1849 = vpack.c.b16 %v1081, %v1073
    %v1850 = vpack.c.b16 %v1082, %v1074
    %v1851 = vpack.c.b16 %v1083, %v1075
    %v1852 = vpack.c.b16 %v1084, %v1076
    %v1853 = vpack.c.b16 %v1085, %v1077
    %v1854 = vpack.c.b16 %v1086, %v1078
    %v1855 = vpack.c.b16 %v1087, %v1079
    %v1856 = vpack.c.b16 %v1088, %v1080
    %v1857 = vpack.c.b16 %v1097, %v1089
    %v1858 = vpack.c.b16 %v1098, %v1090
    %v1859 = vpack.c.b16 %v1099, %v1091
    %v1860 = vpack.c.b16 %v1100, %v1092
    %v1861 = vpack.c.b16 %v1101, %v1093
    %v1862 = vpack.c.b16 %v1102, %v1094
    %v1863 = vpack.c.b16 %v1103, %v1095
    %v1864 = vpack.c.b16 %v1104, %v1096
    %v1865 = vpack.c.b16 %v1113, %v1105
    %v1866 = vpack.c.b16 %v1114, %v1106
    %v1867 = vpack.c.b16 %v1115, %v1107
    %v1868 = vpack.c.b16 %v1116, %v1108
    %v1869 = vpack.c.b16 %v1117, %v1109
    %v1870 = vpack.c.b16 %v1118, %v1110
    %v1871 = vpack.c.b16 %v1119, %v1111
    %v1872 = vpack.c.b16 %v1120, %v1112
    %v1873 = vpack.c.b16 %v1129, %v1121
    %v1874 = vpack.c.b16 %v1130, %v1122
    %v1875 = vpack.c.b16 %v1131, %v1123
    %v1876 = vpack.c.b16 %v1132, %v1124
    %v1877 = vpack.c.b16 %v1133, %v1125
    %v1878 = vpack.c.b16 %v1134, %v1126
    %v1879 = vpack.c.b16 %v1135, %v1127
    %v1880 = vpack.c.b16 %v1136, %v1128
    %v1881 = vpack.c.b16 %v1145, %v1137
    %v1882 = vpack.c.b16 %v1146, %v1138
    %v1883 = vpack.c.b16 %v1147, %v1139
    %v1884 = vpack.c.b16 %v1148, %v1140
    %v1885 = vpack.c.b16 %v1149, %v1141
    %v1886 = vpack.c.b16 %v1150, %v1142
    %v1887 = vpack.c.b16 %v1151, %v1143
    %v1888 = vpack.c.b16 %v1152, %v1144
    %v1889 = vpack.c.b16 %v1161, %v1153
    %v1890 = vpack.c.b16 %v1162, %v1154
    %v1891 = vpack.c.b16 %v1163, %v1155
    %v1892 = vpack.c.b16 %v1164, %v1156
    %v1893 = vpack.c.b16 %v1165, %v1157
    %v1894 = vpack.c.b16 %v1166, %v1158
    %v1895 = vpack.c.b16 %v1167, %v1159
    %v1896 = vpack.c.b16 %v1168, %v1160
    %v1897 = vpack.c.b16 %v1177, %v1169
    %v1898 = vpack.c.b16 %v1178, %v1170
    %v1899 = vpack.c.b16 %v1179, %v1171
    %v1900 = vpack.c.b16 %v1180, %v1172
    %v1901 = vpack.c.b16 %v1181, %v1173
    %v1902 = vpack.c.b16 %v1182, %v1174
    %v1903 = vpack.c.b16 %v1183, %v1175
    %v1904 = vpack.c.b16 %v1184, %v1176
    %v1905 = vpack.c.b16 %v1193, %v1185
    %v1906 = vpack.c.b16 %v1194, %v1186
    %v1907 = vpack.c.b16 %v1195, %v1187
    %v1908 = vpack.c.b16 %v1196, %v1188
    %v1909 = vpack.c.b16 %v1197, %v1189
    %v1910 = vpack.c.b16 %v1198, %v1190
    %v1911 = vpack.c.b16 %v1199, %v1191
    %v1912 = vpack.c.b16 %v1200, %v1192
    %v1913 = vpack.c.b16 %v1209, %v1201
    %v1914 = vpack.c.b16 %v1210, %v1202
    %v1915 = vpack.c.b16 %v1211, %v1203
    %v1916 = vpack.c.b16 %v1212, %v1204
    %v1917 = vpack.c.b16 %v1213, %v1205
    %v1918 = vpack.c.b16 %v1214, %v1206
    %v1919 = vpack.c.b16 %v1215, %v1207
    %v1920 = vpack.c.b16 %v1216, %v1208
    %v1921 = vpack.c.b16 %v1225, %v1217
    %v1922 = vpack.c.b16 %v1226, %v1218
    %v1923 = vpack.c.b16 %v1227, %v1219
    %v1924 = vpack.c.b16 %v1228, %v1220
    %v1925 = vpack.c.b16 %v1229, %v1221
    %v1926 = vpack.c.b16 %v1230, %v1222
    %v1927 = vpack.c.b16 %v1231, %v1223
    %v1928 = vpack.c.b16 %v1232, %v1224
    %v1929 = vpack.c.b16 %v1241, %v1233
    %v1930 = vpack.c.b16 %v1242, %v1234
    %v1931 = vpack.c.b16 %v1243, %v1235
    %v1932 = vpack.c.b16 %v1244, %v1236
    %v1933 = vpack.c.b16 %v1245, %v1237
    %v1934 = vpack.c.b16 %v1246, %v1238
    %v1935 = vpack.c.b16 %v1247, %v1239
    %v1936 = vpack.c.b16 %v1248, %v1240
    %v1937 = vpack.c.b16 %v1257, %v1249
    %v1938 = vpack.c.b16 %v1258, %v1250
    %v1939 = vpack.c.b16 %v1259, %v1251
    %v1940 = vpack.c.b16 %v1260, %v1252
    %v1941 = vpack.c.b16 %v1261, %v1253
    %v1942 = vpack.c.b16 %v1262, %v1254
    %v1943 = vpack.c.b16 %v1263, %v1255
    %v1944 = vpack.c.b16 %v1264, %v1256
    %v1945 = vpack.c.b16 %v1273, %v1265
    %v1946 = vpack.c.b16 %v1274, %v1266
    %v1947 = vpack.c.b16 %v1275, %v1267
    %v1948 = vpack.c.b16 %v1276, %v1268
    %v1949 = vpack.c.b16 %v1277, %v1269
    %v1950 = vpack.c.b16 %v1278, %v1270
    %v1951 = vpack.c.b16 %v1279, %v1271
    %v1952 = vpack.c.b16 %v1280, %v1272
    %v1953 = vpack.c.b16 %v1289, %v1281
    %v1954 = vpack.c.b16 %v1290, %v1282
    %v1955 = vpack.c.b16 %v1291, %v1283
    %v1956 = vpack.c.b16 %v1292, %v1284
    %v1957 = vpack.c.b16 %v1293, %v1285
    %v1958 = vpack.c.b16 %v1294, %v1286
    %v1959 = vpack.c.b16 %v1295, %v1287
    %v1960 = vpack.c.b16 %v1296, %v1288
    %v1961 = vpack.c.b16 %v1305, %v1297
    %v1962 = vpack.c.b16 %v1306, %v1298
    %v1963 = vpack.c.b16 %v1307, %v1299
    %v1964 = vpack.c.b16 %v1308, %v1300
    %v1965 = vpack.c.b16 %v1309, %v1301
    %v1966 = vpack.c.b16 %v1310, %v1302
    %v1967 = vpack.c.b16 %v1311, %v1303
    %v1968 = vpack.c.b16 %v1312, %v1304
    %v1969 = vpack.c.b16 %v1321, %v1313
    %v1970 = vpack.c.b16 %v1322, %v1314
    %v1971 = vpack.c.b16 %v1323, %v1315
    %v1972 = vpack.c.b16 %v1324, %v1316
    %v1973 = vpack.c.b16 %v1325, %v1317
    %v1974 = vpack.c.b16 %v1326, %v1318
    %v1975 = vpack.c.b16 %v1327, %v1319
    %v1976 = vpack.c.b16 %v1328, %v1320
    %v1977 = vpack.c.b16 %v1337, %v1329
    %v1978 = vpack.c.b16 %v1338, %v1330
    %v1979 = vpack.c.b16 %v1339, %v1331
    %v1980 = vpack.c.b16 %v1340, %v1332
    %v1981 = vpack.c.b16 %v1341, %v1333
    %v1982 = vpack.c.b16 %v1342, %v1334
    %v1983 = vpack.c.b16 %v1343, %v1335
    %v1984 = vpack.c.b16 %v1344, %v1336
    %v1985 = vpack.c.b16 %v1353, %v1345
    %v1986 = vpack.c.b16 %v1354, %v1346
    %v1987 = vpack.c.b16 %v1355, %v1347
    %v1988 = vpack.c.b16 %v1356, %v1348
    %v1989 = vpack.c.b16 %v1357, %v1349
    %v1990 = vpack.c.b16 %v1358, %v1350
    %v1991 = vpack.c.b16 %v1359, %v1351
    %v1992 = vpack.c.b16 %v1360, %v1352
    %v1993 = vpack.c.b16 %v1369, %v1361
    %v1994 = vpack.c.b16 %v1370, %v1362
    %v1995 = vpack.c.b16 %v1371, %v1363
    %v1996 = vpack.c.b16 %v1372, %v1364
    %v1997 = vpack.c.b16 %v1373, %v1365
    %v1998 = vpack.c.b16 %v1374, %v1366
    %v1999 = vpack.c.b16 %v1375, %v1367
    %v2000 = vpack.c.b16 %v1376, %v1368
    %v2001 = vpack.c.b16 %v1385, %v1377
    %v2002 = vpack.c.b16 %v1386, %v1378
    %v2003 = vpack.c.b16 %v1387, %v1379
    %v2004 = vpack.c.b16 %v1388, %v1380
    %v2005 = vpack.c.b16 %v1389, %v1381
    %v2006 = vpack.c.b16 %v1390, %v1382
    %v2007 = vpack.c.b16 %v1391, %v1383
    %v2008 = vpack.c.b16 %v1392, %v1384
    %v2009 = vpack.c.b16 %v1401, %v1393
    %v2010 = vpack.c.b16 %v1402, %v1394
    %v2011 = vpack.c.b16 %v1403, %v1395
    %v2012 = vpack.c.b16 %v1404, %v1396
    %v2013 = vpack.c.b16 %v1405, %v1397
    %v2014 = vpack.c.b16 %v1406, %v1398
    %v2015 = vpack.c.b16 %v1407, %v1399
    %v2016 = vpack.c.b16 %v1408, %v1400
    %v2017 = vpack.c.b16 %v1417, %v1409
    %v2018 = vpack.c.b16 %v1418, %v1410
    %v2019 = vpack.c.b16 %v1419, %v1411
    %v2020 = vpack.c.b16 %v1420, %v1412
    %v2021 = vpack.c.b16 %v1421, %v1413
    %v2022 = vpack.c.b16 %v1422, %v1414
    %v2023 = vpack.c.b16 %v1423, %v1415
    %v2024 = vpack.c.b16 %v1424, %v1416
    %v2025 = vpack.c.b16 %v1433, %v1425
    %v2026 = vpack.c.b16 %v1434, %v1426
    %v2027 = vpack.c.b16 %v1435, %v1427
    %v2028 = vpack.c.b16 %v1436, %v1428
    %v2029 = vpack.c.b16 %v1437, %v1429
    %v2030 = vpack.c.b16 %v1438, %v1430
    %v2031 = vpack.c.b16 %v1439, %v1431
    %v2032 = vpack.c.b16 %v1440, %v1432
    %v2033 = vpack.c.b16 %v1449, %v1441
    %v2034 = vpack.c.b16 %v1450, %v1442
    %v2035 = vpack.c.b16 %v1451, %v1443
    %v2036 = vpack.c.b16 %v1452, %v1444
    %v2037 = vpack.c.b16 %v1453, %v1445
    %v2038 = vpack.c.b16 %v1454, %v1446
    %v2039 = vpack.c.b16 %v1455, %v1447
    %v2040 = vpack.c.b16 %v1456, %v1448
    %v2041 = vpack.c.b16 %v1465, %v1457
    %v2042 = vpack.c.b16 %v1466, %v1458
    %v2043 = vpack.c.b16 %v1467, %v1459
    %v2044 = vpack.c.b16 %v1468, %v1460
    %v2045 = vpack.c.b16 %v1469, %v1461
    %v2046 = vpack.c.b16 %v1470, %v1462
    %v2047 = vpack.c.b16 %v1471, %v1463
    %v2048 = vpack.c.b16 %v1472, %v1464
    %v2049 = vpack.c.b16 %v1481, %v1473
    %v2050 = vpack.c.b16 %v1482, %v1474
    %v2051 = vpack.c.b16 %v1483, %v1475
    %v2052 = vpack.c.b16 %v1484, %v1476
    %v2053 = vpack.c.b16 %v1485, %v1477
    %v2054 = vpack.c.b16 %v1486, %v1478
    %v2055 = vpack.c.b16 %v1487, %v1479
    %v2056 = vpack.c.b16 %v1488, %v1480
    %v2057 = vpack.c.b16 %v1497, %v1489
    %v2058 = vpack.c.b16 %v1498, %v1490
    %v2059 = vpack.c.b16 %v1499, %v1491
    %v2060 = vpack.c.b16 %v1500, %v1492
    %v2061 = vpack.c.b16 %v1501, %v1493
    %v2062 = vpack.c.b16 %v1502, %v1494
    %v2063 = vpack.c.b16 %v1503, %v1495
    %v2064 = vpack.c.b16 %v1504, %v1496
    %v2065 = vpack.c.b16 %v1513, %v1505
    %v2066 = vpack.c.b16 %v1514, %v1506
    %v2067 = vpack.c.b16 %v1515, %v1507
    %v2068 = vpack.c.b16 %v1516, %v1508
    %v2069 = vpack.c.b16 %v1517, %v1509
    %v2070 = vpack.c.b16 %v1518, %v1510
    %v2071 = vpack.c.b16 %v1519, %v1511
    %v2072 = vpack.c.b16 %v1520, %v1512
    %v2073 = vpack.c.b16 %v1529, %v1521
    %v2074 = vpack.c.b16 %v1530, %v1522
    %v2075 = vpack.c.b16 %v1531, %v1523
    %v2076 = vpack.c.b16 %v1532, %v1524
    %v2077 = vpack.c.b16 %v1533, %v1525
    %v2078 = vpack.c.b16 %v1534, %v1526
    %v2079 = vpack.c.b16 %v1535, %v1527
    %v2080 = vpack.c.b16 %v1536, %v1528
    %v2081 = vpack.c.b16 %v1545, %v1537
    %v2082 = vpack.c.b16 %v1546, %v1538
    %v2083 = vpack.c.b16 %v1547, %v1539
    %v2084 = vpack.c.b16 %v1548, %v1540
    %v2085 = vpack.c.b16 %v1549, %v1541
    %v2086 = vpack.c.b16 %v1550, %v1542
    %v2087 = vpack.c.b16 %v1551, %v1543
    %v2088 = vpack.c.b16 %v1552, %v1544
    %v2089 = vpack.c.b16 %v1561, %v1553
    %v2090 = vpack.c.b16 %v1562, %v1554
    %v2091 = vpack.c.b16 %v1563, %v1555
    %v2092 = vpack.c.b16 %v1564, %v1556
    %v2093 = vpack.c.b16 %v1565, %v1557
    %v2094 = vpack.c.b16 %v1566, %v1558
    %v2095 = vpack.c.b16 %v1567, %v1559
    %v2096 = vpack.c.b16 %v1568, %v1560
    %v2097 = vpack.c.b16 %v1577, %v1569
    %v2098 = vpack.c.b16 %v1578, %v1570
    %v2099 = vpack.c.b16 %v1579, %v1571
    %v2100 = vpack.c.b16 %v1580, %v1572
    %v2101 = vpack.c.b16 %v1581, %v1573
    %v2102 = vpack.c.b16 %v1582, %v1574
    %v2103 = vpack.c.b16 %v1583, %v1575
    %v2104 = vpack.c.b16 %v1584, %v1576
    %v2105 = vpack.c.b16 %v1593, %v1585
    %v2106 = vpack.c.b16 %v1594, %v1586
    %v2107 = vpack.c.b16 %v1595, %v1587
    %v2108 = vpack.c.b16 %v1596, %v1588
    %v2109 = vpack.c.b16 %v1597, %v1589
    %v2110 = vpack.c.b16 %v1598, %v1590
    %v2111 = vpack.c.b16 %v1599, %v1591
    %v2112 = vpack.c.b16 %v1600, %v1592
    %v2113 = vpack.c.b16 %v1609, %v1601
    %v2114 = vpack.c.b16 %v1610, %v1602
    %v2115 = vpack.c.b16 %v1611, %v1603
    %v2116 = vpack.c.b16 %v1612, %v1604
    %v2117 = vpack.c.b16 %v1613, %v1605
    %v2118 = vpack.c.b16 %v1614, %v1606
    %v2119 = vpack.c.b16 %v1615, %v1607
    %v2120 = vpack.c.b16 %v1616, %v1608
    %v2121 = vpack.c.b16 %v1625, %v1617
    %v2122 = vpack.c.b16 %v1626, %v1618
    %v2123 = vpack.c.b16 %v1627, %v1619
    %v2124 = vpack.c.b16 %v1628, %v1620
    %v2125 = vpack.c.b16 %v1629, %v1621
    %v2126 = vpack.c.b16 %v1630, %v1622
    %v2127 = vpack.c.b16 %v1631, %v1623
    %v2128 = vpack.c.b16 %v1632, %v1624
    %v2129 = vpack.c.b16 %v1641, %v1633
    %v2130 = vpack.c.b16 %v1642, %v1634
    %v2131 = vpack.c.b16 %v1643, %v1635
    %v2132 = vpack.c.b16 %v1644, %v1636
    %v2133 = vpack.c.b16 %v1645, %v1637
    %v2134 = vpack.c.b16 %v1646, %v1638
    %v2135 = vpack.c.b16 %v1647, %v1639
    %v2136 = vpack.c.b16 %v1648, %v1640
    %v2137 = vpack.c.b16 %v1657, %v1649
    %v2138 = vpack.c.b16 %v1658, %v1650
    %v2139 = vpack.c.b16 %v1659, %v1651
    %v2140 = vpack.c.b16 %v1660, %v1652
    %v2141 = vpack.c.b16 %v1661, %v1653
    %v2142 = vpack.c.b16 %v1662, %v1654
    %v2143 = vpack.c.b16 %v1663, %v1655
    %v2144 = vpack.c.b16 %v1664, %v1656
    %v2145 = vpack.c.b16 %v1673, %v1665
    %v2146 = vpack.c.b16 %v1674, %v1666
    %v2147 = vpack.c.b16 %v1675, %v1667
    %v2148 = vpack.c.b16 %v1676, %v1668
    %v2149 = vpack.c.b16 %v1677, %v1669
    %v2150 = vpack.c.b16 %v1678, %v1670
    %v2151 = vpack.c.b16 %v1679, %v1671
    %v2152 = vpack.c.b16 %v1680, %v1672
    %v2153 = vpack.c.b16 %v1689, %v1681
    %v2154 = vpack.c.b16 %v1690, %v1682
    %v2155 = vpack.c.b16 %v1691, %v1683
    %v2156 = vpack.c.b16 %v1692, %v1684
    %v2157 = vpack.c.b16 %v1693, %v1685
    %v2158 = vpack.c.b16 %v1694, %v1686
    %v2159 = vpack.c.b16 %v1695, %v1687
    %v2160 = vpack.c.b16 %v1696, %v1688
    %v2161 = vpack.c.b16 %v1705, %v1697
    %v2162 = vpack.c.b16 %v1706, %v1698
    %v2163 = vpack.c.b16 %v1707, %v1699
    %v2164 = vpack.c.b16 %v1708, %v1700
    %v2165 = vpack.c.b16 %v1709, %v1701
    %v2166 = vpack.c.b16 %v1710, %v1702
    %v2167 = vpack.c.b16 %v1711, %v1703
    %v2168 = vpack.c.b16 %v1712, %v1704
    %v2169 = vpack.c.b16 %v1721, %v1713
    %v2170 = vpack.c.b16 %v1722, %v1714
    %v2171 = vpack.c.b16 %v1723, %v1715
    %v2172 = vpack.c.b16 %v1724, %v1716
    %v2173 = vpack.c.b16 %v1725, %v1717
    %v2174 = vpack.c.b16 %v1726, %v1718
    %v2175 = vpack.c.b16 %v1727, %v1719
    %v2176 = vpack.c.b16 %v1728, %v1720
    %v2177 = vpack.c.b16 %v1737, %v1729
    %v2178 = vpack.c.b16 %v1738, %v1730
    %v2179 = vpack.c.b16 %v1739, %v1731
    %v2180 = vpack.c.b16 %v1740, %v1732
    %v2181 = vpack.c.b16 %v1741, %v1733
    %v2182 = vpack.c.b16 %v1742, %v1734
    %v2183 = vpack.c.b16 %v1743, %v1735
    %v2184 = vpack.c.b16 %v1744, %v1736
    %v2185 = vpack.c.b16 %v1753, %v1745
    %v2186 = vpack.c.b16 %v1754, %v1746
    %v2187 = vpack.c.b16 %v1755, %v1747
    %v2188 = vpack.c.b16 %v1756, %v1748
    %v2189 = vpack.c.b16 %v1757, %v1749
    %v2190 = vpack.c.b16 %v1758, %v1750
    %v2191 = vpack.c.b16 %v1759, %v1751
    %v2192 = vpack.c.b16 %v1760, %v1752
    %v2193 = vpack.c.b16 %v1769, %v1761
    %v2194 = vpack.c.b16 %v1770, %v1762
    %v2195 = vpack.c.b16 %v1771, %v1763
    %v2196 = vpack.c.b16 %v1772, %v1764
    %v2197 = vpack.c.b16 %v1773, %v1765
    %v2198 = vpack.c.b16 %v1774, %v1766
    %v2199 = vpack.c.b16 %v1775, %v1767
    %v2200 = vpack.c.b16 %v1776, %v1768
    %v2201 = vpack.c.b16 %v1785, %v1777
    %v2202 = vpack.c.b16 %v1786, %v1778
    %v2203 = vpack.c.b16 %v1787, %v1779
    %v2204 = vpack.c.b16 %v1788, %v1780
    %v2205 = vpack.c.b16 %v1789, %v1781
    %v2206 = vpack.c.b16 %v1790, %v1782
    %v2207 = vpack.c.b16 %v1791, %v1783
    %v2208 = vpack.c.b16 %v1792, %v1784
    %v2209 = vpack.c.b16 %v1801, %v1793
    %v2210 = vpack.c.b16 %v1802, %v1794
    %v2211 = vpack.c.b16 %v1803, %v1795
    %v2212 = vpack.c.b16 %v1804, %v1796
    %v2213 = vpack.c.b16 %v1805, %v1797
    %v2214 = vpack.c.b16 %v1806, %v1798
    %v2215 = vpack.c.b16 %v1807, %v1799
    %v2216 = vpack.c.b16 %v1808, %v1800
    %vm2617 = vcmask 359424
    %v2619 = vsel %vm2617, %v134, 0
    %vm2621 = vcmask 1045504
    %v2623 = vsel %vm2621, %v2209, 0
    %v2626 = vsel %vm2621, %v2210, 0
    %v2629 = vsel %vm2621, %v2211, 0
    %v2632 = vsel %vm2621, %v2212, 0
    %v2635 = vsel %vm2621, %v2213, 0
    %v2638 = vsel %vm2621, %v2214, 0
    %v2641 = vsel %vm2621, %v2215, 0
    %v2644 = vsel %vm2621, %v2216, 0
    %2646 = vmatprep.subr.bf16.mxu0 %v1810
    %2647 = vmatpush1.bf16.msra.mxu0 %v1809
    %2648 = vmatprep.subr.bf16.mxu0 %v1818
    %2649 = vmatpush1.bf16.msra.mxu0 %v1817
    %2650 = vmatprep.subr.bf16.mxu0 %v1826
    %2651 = vmatpush1.bf16.msra.mxu0 %v1825
    %2652 = vmatprep.subr.bf16.mxu0 %v1834
    %2653 = vmatpush1.bf16.msra.mxu0 %v1833
    %2654 = vmatprep.subr.bf16.mxu0 %v1842
    %2655 = vmatpush1.bf16.msra.mxu0 %v1841
    %2656 = vmatprep.subr.bf16.mxu0 %v1850
    %2657 = vmatpush1.bf16.msra.mxu0 %v1849
    %2658 = vmatprep.subr.bf16.mxu0 %v1858
    %2659 = vmatpush1.bf16.msra.mxu0 %v1857
    %2660 = vmatprep.subr.bf16.mxu0 %v1866
    %2661 = vmatpush1.bf16.msra.mxu0 %v1865
    %2662 = vmatprep.subr.bf16.mxu0 %v1874
    %2663 = vmatpush1.bf16.msra.mxu0 %v1873
    %2664 = vmatprep.subr.bf16.mxu0 %v1882
    %2665 = vmatpush1.bf16.msra.mxu0 %v1881
    %2666 = vmatprep.subr.bf16.mxu0 %v1890
    %2667 = vmatpush1.bf16.msra.mxu0 %v1889
    %2668 = vmatprep.subr.bf16.mxu0 %v1898
    %2669 = vmatpush1.bf16.msra.mxu0 %v1897
    %2670 = vmatprep.subr.bf16.mxu0 %v1906
    %2671 = vmatpush1.bf16.msra.mxu0 %v1905
    %2672 = vmatprep.subr.bf16.mxu0 %v1914
    %2673 = vmatpush1.bf16.msra.mxu0 %v1913
    %2674 = vmatprep.subr.bf16.mxu0 %v1922
    %2675 = vmatpush1.bf16.msra.mxu0 %v1921
    %2676 = vmatprep.subr.bf16.mxu0 %v1930
    %2677 = vmatpush1.bf16.msra.mxu0 %v1929
    %2678 = vmatprep.mubr.bf16.mxu0 %v129
    %2679 = vmatmul.mubr.bf16.gmra.mrb[0].mxu0 %v128
    %v2680 = vpop.f32.mrb[0].mxu0
    %v2681 = vadd.f32 %v548, %v2680
    %v2682 = vpop.f32.mrb[0].mxu0
    %v2683 = vadd.f32 %v552, %v2682
    %v2684 = vpop.f32.mrb[0].mxu0
    %v2685 = vpop.f32.mrb[0].mxu0
    %2686 = vdwg.mxu0
    %2687 = vmatprep.subr.bf16.mxu0 %v1938
    %2688 = vmatpush1.bf16.msra.mxu0 %v1937
    %2689 = vmatprep.subr.bf16.mxu0 %v1946
    %2690 = vmatpush1.bf16.msra.mxu0 %v1945
    %2691 = vmatprep.subr.bf16.mxu0 %v1954
    %2692 = vmatpush1.bf16.msra.mxu0 %v1953
    %2693 = vmatprep.subr.bf16.mxu0 %v1962
    %2694 = vmatpush1.bf16.msra.mxu0 %v1961
    %2695 = vmatprep.subr.bf16.mxu0 %v1970
    %2696 = vmatpush1.bf16.msra.mxu0 %v1969
    %2697 = vmatprep.subr.bf16.mxu0 %v1978
    %2698 = vmatpush1.bf16.msra.mxu0 %v1977
    %2699 = vmatprep.subr.bf16.mxu0 %v1986
    %2700 = vmatpush1.bf16.msra.mxu0 %v1985
    %2701 = vmatprep.subr.bf16.mxu0 %v1994
    %2702 = vmatpush1.bf16.msra.mxu0 %v1993
    %2703 = vmatprep.subr.bf16.mxu0 %v2002
    %2704 = vmatpush1.bf16.msra.mxu0 %v2001
    %2705 = vmatprep.subr.bf16.mxu0 %v2010
    %2706 = vmatpush1.bf16.msra.mxu0 %v2009
    %2707 = vmatprep.subr.bf16.mxu0 %v2018
    %2708 = vmatpush1.bf16.msra.mxu0 %v2017
    %2709 = vmatprep.subr.bf16.mxu0 %v2026
    %2710 = vmatpush1.bf16.msra.mxu0 %v2025
    %2711 = vmatprep.subr.bf16.mxu0 %v2034
    %2712 = vmatpush1.bf16.msra.mxu0 %v2033
    %2713 = vmatprep.subr.bf16.mxu0 %v2042
    %2714 = vmatpush1.bf16.msra.mxu0 %v2041
    %2715 = vmatprep.subr.bf16.mxu0 %v2050
    %2716 = vmatpush1.bf16.msra.mxu0 %v2049
    %2717 = vmatprep.subr.bf16.mxu0 %v2058
    %2718 = vmatpush1.bf16.msra.mxu0 %v2057
    %2719 = vmatprep.mubr.bf16.mxu0 %v131
    %2720 = vmatmul.mubr.bf16.gmra.mrb[0].mxu0 %v130
    %v2721 = vpop.f32.mrb[0].mxu0
    %v2722 = vadd.f32 %v2681, %v2721
    %v2723 = vpop.f32.mrb[0].mxu0
    %v2724 = vadd.f32 %v2683, %v2723
    %v2725 = vpop.f32.mrb[0].mxu0
    %v2726 = vpop.f32.mrb[0].mxu0
    %2727 = vdwg.mxu0
    %2728 = vmatprep.subr.bf16.mxu0 %v2066
    %2729 = vmatpush1.bf16.msra.mxu0 %v2065
    %2730 = vmatprep.subr.bf16.mxu0 %v2074
    %2731 = vmatpush1.bf16.msra.mxu0 %v2073
    %2732 = vmatprep.subr.bf16.mxu0 %v2082
    %2733 = vmatpush1.bf16.msra.mxu0 %v2081
    %2734 = vmatprep.subr.bf16.mxu0 %v2090
    %2735 = vmatpush1.bf16.msra.mxu0 %v2089
    %2736 = vmatprep.subr.bf16.mxu0 %v2098
    %2737 = vmatpush1.bf16.msra.mxu0 %v2097
    %2738 = vmatprep.subr.bf16.mxu0 %v2106
    %2739 = vmatpush1.bf16.msra.mxu0 %v2105
    %2740 = vmatprep.subr.bf16.mxu0 %v2114
    %2741 = vmatpush1.bf16.msra.mxu0 %v2113
    %2742 = vmatprep.subr.bf16.mxu0 %v2122
    %2743 = vmatpush1.bf16.msra.mxu0 %v2121
    %2744 = vmatprep.subr.bf16.mxu0 %v2130
    %2745 = vmatpush1.bf16.msra.mxu0 %v2129
    %2746 = vmatprep.subr.bf16.mxu0 %v2138
    %2747 = vmatpush1.bf16.msra.mxu0 %v2137
    %2748 = vmatprep.subr.bf16.mxu0 %v2146
    %2749 = vmatpush1.bf16.msra.mxu0 %v2145
    %2750 = vmatprep.subr.bf16.mxu0 %v2154
    %2751 = vmatpush1.bf16.msra.mxu0 %v2153
    %2752 = vmatprep.subr.bf16.mxu0 %v2162
    %2753 = vmatpush1.bf16.msra.mxu0 %v2161
    %2754 = vmatprep.subr.bf16.mxu0 %v2170
    %2755 = vmatpush1.bf16.msra.mxu0 %v2169
    %2756 = vmatprep.subr.bf16.mxu0 %v2178
    %2757 = vmatpush1.bf16.msra.mxu0 %v2177
    %2758 = vmatprep.subr.bf16.mxu0 %v2186
    %2759 = vmatpush1.bf16.msra.mxu0 %v2185
    %2760 = vmatprep.mubr.bf16.mxu0 %v133
    %2761 = vmatmul.mubr.bf16.gmra.mrb[0].mxu0 %v132
    %v2762 = vpop.f32.mrb[0].mxu0
    %v2763 = vadd.f32 %v2722, %v2762
    %v2764 = vpop.f32.mrb[0].mxu0
    %v2765 = vadd.f32 %v2724, %v2764
    %v2766 = vpop.f32.mrb[0].mxu0
    %v2767 = vpop.f32.mrb[0].mxu0
    %2768 = vdwg.mxu0
    %2769 = vmatprep.subr.bf16.mxu0 %v2194
    %2770 = vmatpush1.bf16.msra.mxu0 %v2193
    %2771 = vmatprep.subr.bf16.mxu0 %v2202
    %2772 = vmatpush1.bf16.msra.mxu0 %v2201
    %2773 = vmatprep.subr.bf16.mxu0 %v2626
    %2774 = vmatpush1.bf16.msra.mxu0 %v2623
    %2775 = vmatprep.subr.bf16.mxu0 0
    %2776 = vmatpush1.bf16.msra.mxu0 0
    %2777 = vmatprep.subr.bf16.mxu0 0
    %2778 = vmatpush1.bf16.msra.mxu0 0
    %2779 = vmatprep.subr.bf16.mxu0 0
    %2780 = vmatpush1.bf16.msra.mxu0 0
    %2781 = vmatprep.subr.bf16.mxu0 0
    %2782 = vmatpush1.bf16.msra.mxu0 0
    %2783 = vmatprep.subr.bf16.mxu0 0
    %2784 = vmatpush1.bf16.msra.mxu0 0
    %2785 = vmatprep.subr.bf16.mxu0 0
    %2786 = vmatpush1.bf16.msra.mxu0 0
    %2787 = vmatprep.subr.bf16.mxu0 0
    %2788 = vmatpush1.bf16.msra.mxu0 0
    %2789 = vmatprep.subr.bf16.mxu0 0
    %2790 = vmatpush1.bf16.msra.mxu0 0
    %2791 = vmatprep.subr.bf16.mxu0 0
    %2792 = vmatpush1.bf16.msra.mxu0 0
    %2793 = vmatprep.subr.bf16.mxu0 0
    %2794 = vmatpush1.bf16.msra.mxu0 0
    %2795 = vmatprep.subr.bf16.mxu0 0
    %2796 = vmatpush1.bf16.msra.mxu0 0
    %2797 = vmatprep.subr.bf16.mxu0 0
    %2798 = vmatpush1.bf16.msra.mxu0 0
    %2799 = vmatprep.subr.bf16.mxu0 0
    %2800 = vmatpush1.bf16.msra.mxu0 0
    %2801 = vmatprep.mubr.bf16.mxu0 0
    %2802 = vmatmul.mubr.bf16.gmra.mrb[0].mxu0 %v2619
    %v2803 = vpop.f32.mrb[0].mxu0
    %v2804 = vadd.f32 %v2763, %v2803
    %v2805 = vpop.f32.mrb[0].mxu0
    %v2806 = vadd.f32 %v2765, %v2805
    %v2807 = vpop.f32.mrb[0].mxu0
    %v2808 = vpop.f32.mrb[0].mxu0
    %2809 = vdwg.mxu0
    %2810 = vmatprep.subr.bf16.mxu0 %v1812
    %2811 = vmatpush1.bf16.msra.mxu0 %v1811
    %2812 = vmatprep.subr.bf16.mxu0 %v1820
    %2813 = vmatpush1.bf16.msra.mxu0 %v1819
    %2814 = vmatprep.subr.bf16.mxu0 %v1828
    %2815 = vmatpush1.bf16.msra.mxu0 %v1827
    %2816 = vmatprep.subr.bf16.mxu0 %v1836
    %2817 = vmatpush1.bf16.msra.mxu0 %v1835
    %2818 = vmatprep.subr.bf16.mxu0 %v1844
    %2819 = vmatpush1.bf16.msra.mxu0 %v1843
    %2820 = vmatprep.subr.bf16.mxu0 %v1852
    %2821 = vmatpush1.bf16.msra.mxu0 %v1851
    %2822 = vmatprep.subr.bf16.mxu0 %v1860
    %2823 = vmatpush1.bf16.msra.mxu0 %v1859
    %2824 = vmatprep.subr.bf16.mxu0 %v1868
    %2825 = vmatpush1.bf16.msra.mxu0 %v1867
    %2826 = vmatprep.subr.bf16.mxu0 %v1876
    %2827 = vmatpush1.bf16.msra.mxu0 %v1875
    %2828 = vmatprep.subr.bf16.mxu0 %v1884
    %2829 = vmatpush1.bf16.msra.mxu0 %v1883
    %2830 = vmatprep.subr.bf16.mxu0 %v1892
    %2831 = vmatpush1.bf16.msra.mxu0 %v1891
    %2832 = vmatprep.subr.bf16.mxu0 %v1900
    %2833 = vmatpush1.bf16.msra.mxu0 %v1899
    %2834 = vmatprep.subr.bf16.mxu0 %v1908
    %2835 = vmatpush1.bf16.msra.mxu0 %v1907
    %2836 = vmatprep.subr.bf16.mxu0 %v1916
    %2837 = vmatpush1.bf16.msra.mxu0 %v1915
    %2838 = vmatprep.subr.bf16.mxu0 %v1924
    %2839 = vmatpush1.bf16.msra.mxu0 %v1923
    %2840 = vmatprep.subr.bf16.mxu0 %v1932
    %2841 = vmatpush1.bf16.msra.mxu0 %v1931
    %2842 = vmatprep.mubr.bf16.mxu0 %v129
    %2843 = vmatmul.mubr.bf16.gmra.mrb[0].mxu0 %v128
    %v2844 = vpop.f32.mrb[0].mxu0
    %v2845 = vadd.f32 %v556, %v2844
    %v2846 = vpop.f32.mrb[0].mxu0
    %v2847 = vadd.f32 %v560, %v2846
    %v2848 = vpop.f32.mrb[0].mxu0
    %v2849 = vpop.f32.mrb[0].mxu0
    %2850 = vdwg.mxu0
    %2851 = vmatprep.subr.bf16.mxu0 %v1940
    %2852 = vmatpush1.bf16.msra.mxu0 %v1939
    %2853 = vmatprep.subr.bf16.mxu0 %v1948
    %2854 = vmatpush1.bf16.msra.mxu0 %v1947
    %2855 = vmatprep.subr.bf16.mxu0 %v1956
    %2856 = vmatpush1.bf16.msra.mxu0 %v1955
    %2857 = vmatprep.subr.bf16.mxu0 %v1964
    %2858 = vmatpush1.bf16.msra.mxu0 %v1963
    %2859 = vmatprep.subr.bf16.mxu0 %v1972
    %2860 = vmatpush1.bf16.msra.mxu0 %v1971
    %2861 = vmatprep.subr.bf16.mxu0 %v1980
    %2862 = vmatpush1.bf16.msra.mxu0 %v1979
    %2863 = vmatprep.subr.bf16.mxu0 %v1988
    %2864 = vmatpush1.bf16.msra.mxu0 %v1987
    %2865 = vmatprep.subr.bf16.mxu0 %v1996
    %2866 = vmatpush1.bf16.msra.mxu0 %v1995
    %2867 = vmatprep.subr.bf16.mxu0 %v2004
    %2868 = vmatpush1.bf16.msra.mxu0 %v2003
    %2869 = vmatprep.subr.bf16.mxu0 %v2012
    %2870 = vmatpush1.bf16.msra.mxu0 %v2011
    %2871 = vmatprep.subr.bf16.mxu0 %v2020
    %2872 = vmatpush1.bf16.msra.mxu0 %v2019
    %2873 = vmatprep.subr.bf16.mxu0 %v2028
    %2874 = vmatpush1.bf16.msra.mxu0 %v2027
    %2875 = vmatprep.subr.bf16.mxu0 %v2036
    %2876 = vmatpush1.bf16.msra.mxu0 %v2035
    %2877 = vmatprep.subr.bf16.mxu0 %v2044
    %2878 = vmatpush1.bf16.msra.mxu0 %v2043
    %2879 = vmatprep.subr.bf16.mxu0 %v2052
    %2880 = vmatpush1.bf16.msra.mxu0 %v2051
    %2881 = vmatprep.subr.bf16.mxu0 %v2060
    %2882 = vmatpush1.bf16.msra.mxu0 %v2059
    %2883 = vmatprep.mubr.bf16.mxu0 %v131
    %2884 = vmatmul.mubr.bf16.gmra.mrb[0].mxu0 %v130
    %v2885 = vpop.f32.mrb[0].mxu0
    %v2886 = vadd.f32 %v2845, %v2885
    %v2887 = vpop.f32.mrb[0].mxu0
    %v2888 = vadd.f32 %v2847, %v2887
    %v2889 = vpop.f32.mrb[0].mxu0
    %v2890 = vpop.f32.mrb[0].mxu0
    %2891 = vdwg.mxu0
    %2892 = vmatprep.subr.bf16.mxu0 %v2068
    %2893 = vmatpush1.bf16.msra.mxu0 %v2067
    %2894 = vmatprep.subr.bf16.mxu0 %v2076
    %2895 = vmatpush1.bf16.msra.mxu0 %v2075
    %2896 = vmatprep.subr.bf16.mxu0 %v2084
    %2897 = vmatpush1.bf16.msra.mxu0 %v2083
    %2898 = vmatprep.subr.bf16.mxu0 %v2092
    %2899 = vmatpush1.bf16.msra.mxu0 %v2091
    %2900 = vmatprep.subr.bf16.mxu0 %v2100
    %2901 = vmatpush1.bf16.msra.mxu0 %v2099
    %2902 = vmatprep.subr.bf16.mxu0 %v2108
    %2903 = vmatpush1.bf16.msra.mxu0 %v2107
    %2904 = vmatprep.subr.bf16.mxu0 %v2116
    %2905 = vmatpush1.bf16.msra.mxu0 %v2115
    %2906 = vmatprep.subr.bf16.mxu0 %v2124
    %2907 = vmatpush1.bf16.msra.mxu0 %v2123
    %2908 = vmatprep.subr.bf16.mxu0 %v2132
    %2909 = vmatpush1.bf16.msra.mxu0 %v2131
    %2910 = vmatprep.subr.bf16.mxu0 %v2140
    %2911 = vmatpush1.bf16.msra.mxu0 %v2139
    %2912 = vmatprep.subr.bf16.mxu0 %v2148
    %2913 = vmatpush1.bf16.msra.mxu0 %v2147
    %2914 = vmatprep.subr.bf16.mxu0 %v2156
    %2915 = vmatpush1.bf16.msra.mxu0 %v2155
    %2916 = vmatprep.subr.bf16.mxu0 %v2164
    %2917 = vmatpush1.bf16.msra.mxu0 %v2163
    %2918 = vmatprep.subr.bf16.mxu0 %v2172
    %2919 = vmatpush1.bf16.msra.mxu0 %v2171
    %2920 = vmatprep.subr.bf16.mxu0 %v2180
    %2921 = vmatpush1.bf16.msra.mxu0 %v2179
    %2922 = vmatprep.subr.bf16.mxu0 %v2188
    %2923 = vmatpush1.bf16.msra.mxu0 %v2187
    %2924 = vmatprep.mubr.bf16.mxu0 %v133
    %2925 = vmatmul.mubr.bf16.gmra.mrb[0].mxu0 %v132
    %v2926 = vpop.f32.mrb[0].mxu0
    %v2927 = vadd.f32 %v2886, %v2926
    %v2928 = vpop.f32.mrb[0].mxu0
    %v2929 = vadd.f32 %v2888, %v2928
    %v2930 = vpop.f32.mrb[0].mxu0
    %v2931 = vpop.f32.mrb[0].mxu0
    %2932 = vdwg.mxu0
    %2933 = vmatprep.subr.bf16.mxu0 %v2196
    %2934 = vmatpush1.bf16.msra.mxu0 %v2195
    %2935 = vmatprep.subr.bf16.mxu0 %v2204
    %2936 = vmatpush1.bf16.msra.mxu0 %v2203
    %2937 = vmatprep.subr.bf16.mxu0 %v2632
    %2938 = vmatpush1.bf16.msra.mxu0 %v2629
    %2939 = vmatprep.subr.bf16.mxu0 0
    %2940 = vmatpush1.bf16.msra.mxu0 0
    %2941 = vmatprep.subr.bf16.mxu0 0
    %2942 = vmatpush1.bf16.msra.mxu0 0
    %2943 = vmatprep.subr.bf16.mxu0 0
    %2944 = vmatpush1.bf16.msra.mxu0 0
    %2945 = vmatprep.subr.bf16.mxu0 0
    %2946 = vmatpush1.bf16.msra.mxu0 0
    %2947 = vmatprep.subr.bf16.mxu0 0
    %2948 = vmatpush1.bf16.msra.mxu0 0
    %2949 = vmatprep.subr.bf16.mxu0 0
    %2950 = vmatpush1.bf16.msra.mxu0 0
    %2951 = vmatprep.subr.bf16.mxu0 0
    %2952 = vmatpush1.bf16.msra.mxu0 0
    %2953 = vmatprep.subr.bf16.mxu0 0
    %2954 = vmatpush1.bf16.msra.mxu0 0
    %2955 = vmatprep.subr.bf16.mxu0 0
    %2956 = vmatpush1.bf16.msra.mxu0 0
    %2957 = vmatprep.subr.bf16.mxu0 0
    %2958 = vmatpush1.bf16.msra.mxu0 0
    %2959 = vmatprep.subr.bf16.mxu0 0
    %2960 = vmatpush1.bf16.msra.mxu0 0
    %2961 = vmatprep.subr.bf16.mxu0 0
    %2962 = vmatpush1.bf16.msra.mxu0 0
    %2963 = vmatprep.subr.bf16.mxu0 0
    %2964 = vmatpush1.bf16.msra.mxu0 0
    %2965 = vmatprep.mubr.bf16.mxu0 0
    %2966 = vmatmul.mubr.bf16.gmra.mrb[0].mxu0 %v2619
    %v2967 = vpop.f32.mrb[0].mxu0
    %v2968 = vadd.f32 %v2927, %v2967
    %v2969 = vpop.f32.mrb[0].mxu0
    %v2970 = vadd.f32 %v2929, %v2969
    %v2971 = vpop.f32.mrb[0].mxu0
    %v2972 = vpop.f32.mrb[0].mxu0
    %2973 = vdwg.mxu0
    %2974 = vmatprep.subr.bf16.mxu0 %v1814
    %2975 = vmatpush1.bf16.msra.mxu0 %v1813
    %2976 = vmatprep.subr.bf16.mxu0 %v1822
    %2977 = vmatpush1.bf16.msra.mxu0 %v1821
    %2978 = vmatprep.subr.bf16.mxu0 %v1830
    %2979 = vmatpush1.bf16.msra.mxu0 %v1829
    %2980 = vmatprep.subr.bf16.mxu0 %v1838
    %2981 = vmatpush1.bf16.msra.mxu0 %v1837
    %2982 = vmatprep.subr.bf16.mxu0 %v1846
    %2983 = vmatpush1.bf16.msra.mxu0 %v1845
    %2984 = vmatprep.subr.bf16.mxu0 %v1854
    %2985 = vmatpush1.bf16.msra.mxu0 %v1853
    %2986 = vmatprep.subr.bf16.mxu0 %v1862
    %2987 = vmatpush1.bf16.msra.mxu0 %v1861
    %2988 = vmatprep.subr.bf16.mxu0 %v1870
    %2989 = vmatpush1.bf16.msra.mxu0 %v1869
    %2990 = vmatprep.subr.bf16.mxu0 %v1878
    %2991 = vmatpush1.bf16.msra.mxu0 %v1877
    %2992 = vmatprep.subr.bf16.mxu0 %v1886
    %2993 = vmatpush1.bf16.msra.mxu0 %v1885
    %2994 = vmatprep.subr.bf16.mxu0 %v1894
    %2995 = vmatpush1.bf16.msra.mxu0 %v1893
    %2996 = vmatprep.subr.bf16.mxu0 %v1902
    %2997 = vmatpush1.bf16.msra.mxu0 %v1901
    %2998 = vmatprep.subr.bf16.mxu0 %v1910
    %2999 = vmatpush1.bf16.msra.mxu0 %v1909
    %3000 = vmatprep.subr.bf16.mxu0 %v1918
    %3001 = vmatpush1.bf16.msra.mxu0 %v1917
    %3002 = vmatprep.subr.bf16.mxu0 %v1926
    %3003 = vmatpush1.bf16.msra.mxu0 %v1925
    %3004 = vmatprep.subr.bf16.mxu0 %v1934
    %3005 = vmatpush1.bf16.msra.mxu0 %v1933
    %3006 = vmatprep.mubr.bf16.mxu0 %v129
    %3007 = vmatmul.mubr.bf16.gmra.mrb[0].mxu0 %v128
    %v3008 = vpop.f32.mrb[0].mxu0
    %v3009 = vadd.f32 %v564, %v3008
    %v3010 = vpop.f32.mrb[0].mxu0
    %v3011 = vadd.f32 %v568, %v3010
    %v3012 = vpop.f32.mrb[0].mxu0
    %v3013 = vpop.f32.mrb[0].mxu0
    %3014 = vdwg.mxu0
    %3015 = vmatprep.subr.bf16.mxu0 %v1942
    %3016 = vmatpush1.bf16.msra.mxu0 %v1941
    %3017 = vmatprep.subr.bf16.mxu0 %v1950
    %3018 = vmatpush1.bf16.msra.mxu0 %v1949
    %3019 = vmatprep.subr.bf16.mxu0 %v1958
    %3020 = vmatpush1.bf16.msra.mxu0 %v1957
    %3021 = vmatprep.subr.bf16.mxu0 %v1966
    %3022 = vmatpush1.bf16.msra.mxu0 %v1965
    %3023 = vmatprep.subr.bf16.mxu0 %v1974
    %3024 = vmatpush1.bf16.msra.mxu0 %v1973
    %3025 = vmatprep.subr.bf16.mxu0 %v1982
    %3026 = vmatpush1.bf16.msra.mxu0 %v1981
    %3027 = vmatprep.subr.bf16.mxu0 %v1990
    %3028 = vmatpush1.bf16.msra.mxu0 %v1989
    %3029 = vmatprep.subr.bf16.mxu0 %v1998
    %3030 = vmatpush1.bf16.msra.mxu0 %v1997
    %3031 = vmatprep.subr.bf16.mxu0 %v2006
    %3032 = vmatpush1.bf16.msra.mxu0 %v2005
    %3033 = vmatprep.subr.bf16.mxu0 %v2014
    %3034 = vmatpush1.bf16.msra.mxu0 %v2013
    %3035 = vmatprep.subr.bf16.mxu0 %v2022
    %3036 = vmatpush1.bf16.msra.mxu0 %v2021
    %3037 = vmatprep.subr.bf16.mxu0 %v2030
    %3038 = vmatpush1.bf16.msra.mxu0 %v2029
    %3039 = vmatprep.subr.bf16.mxu0 %v2038
    %3040 = vmatpush1.bf16.msra.mxu0 %v2037
    %3041 = vmatprep.subr.bf16.mxu0 %v2046
    %3042 = vmatpush1.bf16.msra.mxu0 %v2045
    %3043 = vmatprep.subr.bf16.mxu0 %v2054
    %3044 = vmatpush1.bf16.msra.mxu0 %v2053
    %3045 = vmatprep.subr.bf16.mxu0 %v2062
    %3046 = vmatpush1.bf16.msra.mxu0 %v2061
    %3047 = vmatprep.mubr.bf16.mxu0 %v131
    %3048 = vmatmul.mubr.bf16.gmra.mrb[0].mxu0 %v130
    %v3049 = vpop.f32.mrb[0].mxu0
    %v3050 = vadd.f32 %v3009, %v3049
    %v3051 = vpop.f32.mrb[0].mxu0
    %v3052 = vadd.f32 %v3011, %v3051
    %v3053 = vpop.f32.mrb[0].mxu0
    %v3054 = vpop.f32.mrb[0].mxu0
    %3055 = vdwg.mxu0
    %3056 = vmatprep.subr.bf16.mxu0 %v2070
    %3057 = vmatpush1.bf16.msra.mxu0 %v2069
    %3058 = vmatprep.subr.bf16.mxu0 %v2078
    %3059 = vmatpush1.bf16.msra.mxu0 %v2077
    %3060 = vmatprep.subr.bf16.mxu0 %v2086
    %3061 = vmatpush1.bf16.msra.mxu0 %v2085
    %3062 = vmatprep.subr.bf16.mxu0 %v2094
    %3063 = vmatpush1.bf16.msra.mxu0 %v2093
    %3064 = vmatprep.subr.bf16.mxu0 %v2102
    %3065 = vmatpush1.bf16.msra.mxu0 %v2101
    %3066 = vmatprep.subr.bf16.mxu0 %v2110
    %3067 = vmatpush1.bf16.msra.mxu0 %v2109
    %3068 = vmatprep.subr.bf16.mxu0 %v2118
    %3069 = vmatpush1.bf16.msra.mxu0 %v2117
    %3070 = vmatprep.subr.bf16.mxu0 %v2126
    %3071 = vmatpush1.bf16.msra.mxu0 %v2125
    %3072 = vmatprep.subr.bf16.mxu0 %v2134
    %3073 = vmatpush1.bf16.msra.mxu0 %v2133
    %3074 = vmatprep.subr.bf16.mxu0 %v2142
    %3075 = vmatpush1.bf16.msra.mxu0 %v2141
    %3076 = vmatprep.subr.bf16.mxu0 %v2150
    %3077 = vmatpush1.bf16.msra.mxu0 %v2149
    %3078 = vmatprep.subr.bf16.mxu0 %v2158
    %3079 = vmatpush1.bf16.msra.mxu0 %v2157
    %3080 = vmatprep.subr.bf16.mxu0 %v2166
    %3081 = vmatpush1.bf16.msra.mxu0 %v2165
    %3082 = vmatprep.subr.bf16.mxu0 %v2174
    %3083 = vmatpush1.bf16.msra.mxu0 %v2173
    %3084 = vmatprep.subr.bf16.mxu0 %v2182
    %3085 = vmatpush1.bf16.msra.mxu0 %v2181
    %3086 = vmatprep.subr.bf16.mxu0 %v2190
    %3087 = vmatpush1.bf16.msra.mxu0 %v2189
    %3088 = vmatprep.mubr.bf16.mxu0 %v133
    %3089 = vmatmul.mubr.bf16.gmra.mrb[0].mxu0 %v132
    %v3090 = vpop.f32.mrb[0].mxu0
    %v3091 = vadd.f32 %v3050, %v3090
    %v3092 = vpop.f32.mrb[0].mxu0
    %v3093 = vadd.f32 %v3052, %v3092
    %v3094 = vpop.f32.mrb[0].mxu0
    %v3095 = vpop.f32.mrb[0].mxu0
    %3096 = vdwg.mxu0
    %3097 = vmatprep.subr.bf16.mxu0 %v2198
    %3098 = vmatpush1.bf16.msra.mxu0 %v2197
    %3099 = vmatprep.subr.bf16.mxu0 %v2206
    %3100 = vmatpush1.bf16.msra.mxu0 %v2205
    %3101 = vmatprep.subr.bf16.mxu0 %v2638
    %3102 = vmatpush1.bf16.msra.mxu0 %v2635
    %3103 = vmatprep.subr.bf16.mxu0 0
    %3104 = vmatpush1.bf16.msra.mxu0 0
    %3105 = vmatprep.subr.bf16.mxu0 0
    %3106 = vmatpush1.bf16.msra.mxu0 0
    %3107 = vmatprep.subr.bf16.mxu0 0
    %3108 = vmatpush1.bf16.msra.mxu0 0
    %3109 = vmatprep.subr.bf16.mxu0 0
    %3110 = vmatpush1.bf16.msra.mxu0 0
    %3111 = vmatprep.subr.bf16.mxu0 0
    %3112 = vmatpush1.bf16.msra.mxu0 0
    %3113 = vmatprep.subr.bf16.mxu0 0
    %3114 = vmatpush1.bf16.msra.mxu0 0
    %3115 = vmatprep.subr.bf16.mxu0 0
    %3116 = vmatpush1.bf16.msra.mxu0 0
    %3117 = vmatprep.subr.bf16.mxu0 0
    %3118 = vmatpush1.bf16.msra.mxu0 0
    %3119 = vmatprep.subr.bf16.mxu0 0
    %3120 = vmatpush1.bf16.msra.mxu0 0
    %3121 = vmatprep.subr.bf16.mxu0 0
    %3122 = vmatpush1.bf16.msra.mxu0 0
    %3123 = vmatprep.subr.bf16.mxu0 0
    %3124 = vmatpush1.bf16.msra.mxu0 0
    %3125 = vmatprep.subr.bf16.mxu0 0
    %3126 = vmatpush1.bf16.msra.mxu0 0
    %3127 = vmatprep.subr.bf16.mxu0 0
    %3128 = vmatpush1.bf16.msra.mxu0 0
    %3129 = vmatprep.mubr.bf16.mxu0 0
    %3130 = vmatmul.mubr.bf16.gmra.mrb[0].mxu0 %v2619
    %v3131 = vpop.f32.mrb[0].mxu0
    %v3132 = vadd.f32 %v3091, %v3131
    %v3133 = vpop.f32.mrb[0].mxu0
    %v3134 = vadd.f32 %v3093, %v3133
    %v3135 = vpop.f32.mrb[0].mxu0
    %v3136 = vpop.f32.mrb[0].mxu0
    %3137 = vdwg.mxu0
    %3138 = vmatprep.subr.bf16.mxu0 %v1816
    %3139 = vmatpush1.bf16.msra.mxu0 %v1815
    %3140 = vmatprep.subr.bf16.mxu0 %v1824
    %3141 = vmatpush1.bf16.msra.mxu0 %v1823
    %3142 = vmatprep.subr.bf16.mxu0 %v1832
    %3143 = vmatpush1.bf16.msra.mxu0 %v1831
    %3144 = vmatprep.subr.bf16.mxu0 %v1840
    %3145 = vmatpush1.bf16.msra.mxu0 %v1839
    %3146 = vmatprep.subr.bf16.mxu0 %v1848
    %3147 = vmatpush1.bf16.msra.mxu0 %v1847
    %3148 = vmatprep.subr.bf16.mxu0 %v1856
    %3149 = vmatpush1.bf16.msra.mxu0 %v1855
    %3150 = vmatprep.subr.bf16.mxu0 %v1864
    %3151 = vmatpush1.bf16.msra.mxu0 %v1863
    %3152 = vmatprep.subr.bf16.mxu0 %v1872
    %3153 = vmatpush1.bf16.msra.mxu0 %v1871
    %3154 = vmatprep.subr.bf16.mxu0 %v1880
    %3155 = vmatpush1.bf16.msra.mxu0 %v1879
    %3156 = vmatprep.subr.bf16.mxu0 %v1888
    %3157 = vmatpush1.bf16.msra.mxu0 %v1887
    %3158 = vmatprep.subr.bf16.mxu0 %v1896
    %3159 = vmatpush1.bf16.msra.mxu0 %v1895
    %3160 = vmatprep.subr.bf16.mxu0 %v1904
    %3161 = vmatpush1.bf16.msra.mxu0 %v1903
    %3162 = vmatprep.subr.bf16.mxu0 %v1912
    %3163 = vmatpush1.bf16.msra.mxu0 %v1911
    %3164 = vmatprep.subr.bf16.mxu0 %v1920
    %3165 = vmatpush1.bf16.msra.mxu0 %v1919
    %3166 = vmatprep.subr.bf16.mxu0 %v1928
    %3167 = vmatpush1.bf16.msra.mxu0 %v1927
    %3168 = vmatprep.subr.bf16.mxu0 %v1936
    %3169 = vmatpush1.bf16.msra.mxu0 %v1935
    %3170 = vmatprep.mubr.bf16.mxu0 %v129
    %3171 = vmatmul.mubr.bf16.gmra.mrb[0].mxu0 %v128
    %v3172 = vpop.f32.mrb[0].mxu0
    %v3173 = vadd.f32 %v572, %v3172
    %v3174 = vpop.f32.mrb[0].mxu0
    %v3175 = vadd.f32 %v576, %v3174
    %v3176 = vpop.f32.mrb[0].mxu0
    %v3177 = vpop.f32.mrb[0].mxu0
    %3178 = vdwg.mxu0
    %3179 = vmatprep.subr.bf16.mxu0 %v1944
    %3180 = vmatpush1.bf16.msra.mxu0 %v1943
    %3181 = vmatprep.subr.bf16.mxu0 %v1952
    %3182 = vmatpush1.bf16.msra.mxu0 %v1951
    %3183 = vmatprep.subr.bf16.mxu0 %v1960
    %3184 = vmatpush1.bf16.msra.mxu0 %v1959
    %3185 = vmatprep.subr.bf16.mxu0 %v1968
    %3186 = vmatpush1.bf16.msra.mxu0 %v1967
    %3187 = vmatprep.subr.bf16.mxu0 %v1976
    %3188 = vmatpush1.bf16.msra.mxu0 %v1975
    %3189 = vmatprep.subr.bf16.mxu0 %v1984
    %3190 = vmatpush1.bf16.msra.mxu0 %v1983
    %3191 = vmatprep.subr.bf16.mxu0 %v1992
    %3192 = vmatpush1.bf16.msra.mxu0 %v1991
    %3193 = vmatprep.subr.bf16.mxu0 %v2000
    %3194 = vmatpush1.bf16.msra.mxu0 %v1999
    %3195 = vmatprep.subr.bf16.mxu0 %v2008
    %3196 = vmatpush1.bf16.msra.mxu0 %v2007
    %3197 = vmatprep.subr.bf16.mxu0 %v2016
    %3198 = vmatpush1.bf16.msra.mxu0 %v2015
    %3199 = vmatprep.subr.bf16.mxu0 %v2024
    %3200 = vmatpush1.bf16.msra.mxu0 %v2023
    %3201 = vmatprep.subr.bf16.mxu0 %v2032
    %3202 = vmatpush1.bf16.msra.mxu0 %v2031
    %3203 = vmatprep.subr.bf16.mxu0 %v2040
    %3204 = vmatpush1.bf16.msra.mxu0 %v2039
    %3205 = vmatprep.subr.bf16.mxu0 %v2048
    %3206 = vmatpush1.bf16.msra.mxu0 %v2047
    %3207 = vmatprep.subr.bf16.mxu0 %v2056
    %3208 = vmatpush1.bf16.msra.mxu0 %v2055
    %3209 = vmatprep.subr.bf16.mxu0 %v2064
    %3210 = vmatpush1.bf16.msra.mxu0 %v2063
    %3211 = vmatprep.mubr.bf16.mxu0 %v131
    %3212 = vmatmul.mubr.bf16.gmra.mrb[0].mxu0 %v130
    %v3213 = vpop.f32.mrb[0].mxu0
    %v3214 = vadd.f32 %v3173, %v3213
    %v3215 = vpop.f32.mrb[0].mxu0
    %v3216 = vadd.f32 %v3175, %v3215
    %v3217 = vpop.f32.mrb[0].mxu0
    %v3218 = vpop.f32.mrb[0].mxu0
    %3219 = vdwg.mxu0
    %3220 = vmatprep.subr.bf16.mxu0 %v2072
    %3221 = vmatpush1.bf16.msra.mxu0 %v2071
    %3222 = vmatprep.subr.bf16.mxu0 %v2080
    %3223 = vmatpush1.bf16.msra.mxu0 %v2079
    %3224 = vmatprep.subr.bf16.mxu0 %v2088
    %3225 = vmatpush1.bf16.msra.mxu0 %v2087
    %3226 = vmatprep.subr.bf16.mxu0 %v2096
    %3227 = vmatpush1.bf16.msra.mxu0 %v2095
    %3228 = vmatprep.subr.bf16.mxu0 %v2104
    %3229 = vmatpush1.bf16.msra.mxu0 %v2103
    %3230 = vmatprep.subr.bf16.mxu0 %v2112
    %3231 = vmatpush1.bf16.msra.mxu0 %v2111
    %3232 = vmatprep.subr.bf16.mxu0 %v2120
    %3233 = vmatpush1.bf16.msra.mxu0 %v2119
    %3234 = vmatprep.subr.bf16.mxu0 %v2128
    %3235 = vmatpush1.bf16.msra.mxu0 %v2127
    %3236 = vmatprep.subr.bf16.mxu0 %v2136
    %3237 = vmatpush1.bf16.msra.mxu0 %v2135
    %3238 = vmatprep.subr.bf16.mxu0 %v2144
    %3239 = vmatpush1.bf16.msra.mxu0 %v2143
    %3240 = vmatprep.subr.bf16.mxu0 %v2152
    %3241 = vmatpush1.bf16.msra.mxu0 %v2151
    %3242 = vmatprep.subr.bf16.mxu0 %v2160
    %3243 = vmatpush1.bf16.msra.mxu0 %v2159
    %3244 = vmatprep.subr.bf16.mxu0 %v2168
    %3245 = vmatpush1.bf16.msra.mxu0 %v2167
    %3246 = vmatprep.subr.bf16.mxu0 %v2176
    %3247 = vmatpush1.bf16.msra.mxu0 %v2175
    %3248 = vmatprep.subr.bf16.mxu0 %v2184
    %3249 = vmatpush1.bf16.msra.mxu0 %v2183
    %3250 = vmatprep.subr.bf16.mxu0 %v2192
    %3251 = vmatpush1.bf16.msra.mxu0 %v2191
    %3252 = vmatprep.mubr.bf16.mxu0 %v133
    %3253 = vmatmul.mubr.bf16.gmra.mrb[0].mxu0 %v132
    %v3254 = vpop.f32.mrb[0].mxu0
    %v3255 = vadd.f32 %v3214, %v3254
    %v3256 = vpop.f32.mrb[0].mxu0
    %v3257 = vadd.f32 %v3216, %v3256
    %v3258 = vpop.f32.mrb[0].mxu0
    %v3259 = vpop.f32.mrb[0].mxu0
    %3260 = vdwg.mxu0
    %3261 = vmatprep.subr.bf16.mxu0 %v2200
    %3262 = vmatpush1.bf16.msra.mxu0 %v2199
    %3263 = vmatprep.subr.bf16.mxu0 %v2208
    %3264 = vmatpush1.bf16.msra.mxu0 %v2207
    %3265 = vmatprep.subr.bf16.mxu0 %v2644
    %3266 = vmatpush1.bf16.msra.mxu0 %v2641
    %3267 = vmatprep.subr.bf16.mxu0 0
    %3268 = vmatpush1.bf16.msra.mxu0 0
    %3269 = vmatprep.subr.bf16.mxu0 0
    %3270 = vmatpush1.bf16.msra.mxu0 0
    %3271 = vmatprep.subr.bf16.mxu0 0
    %3272 = vmatpush1.bf16.msra.mxu0 0
    %3273 = vmatprep.subr.bf16.mxu0 0
    %3274 = vmatpush1.bf16.msra.mxu0 0
    %3275 = vmatprep.subr.bf16.mxu0 0
    %3276 = vmatpush1.bf16.msra.mxu0 0
    %3277 = vmatprep.subr.bf16.mxu0 0
    %3278 = vmatpush1.bf16.msra.mxu0 0
    %3279 = vmatprep.subr.bf16.mxu0 0
    %3280 = vmatpush1.bf16.msra.mxu0 0
    %3281 = vmatprep.subr.bf16.mxu0 0
    %3282 = vmatpush1.bf16.msra.mxu0 0
    %3283 = vmatprep.subr.bf16.mxu0 0
    %3284 = vmatpush1.bf16.msra.mxu0 0
    %3285 = vmatprep.subr.bf16.mxu0 0
    %3286 = vmatpush1.bf16.msra.mxu0 0
    %3287 = vmatprep.subr.bf16.mxu0 0
    %3288 = vmatpush1.bf16.msra.mxu0 0
    %3289 = vmatprep.subr.bf16.mxu0 0
    %3290 = vmatpush1.bf16.msra.mxu0 0
    %3291 = vmatprep.subr.bf16.mxu0 0
    %3292 = vmatpush1.bf16.msra.mxu0 0
    %3293 = vmatprep.mubr.bf16.mxu0 0
    %3294 = vmatmul.mubr.bf16.gmra.mrb[0].mxu0 %v2619
    %v3295 = vpop.f32.mrb[0].mxu0
    %v3296 = vadd.f32 %v3255, %v3295
    %v3297 = vpop.f32.mrb[0].mxu0
    %v3298 = vadd.f32 %v3257, %v3297
    %v3299 = vpop.f32.mrb[0].mxu0
    %v3300 = vpop.f32.mrb[0].mxu0
    %3301 = vdwg.mxu0
    %v3302 = vmax.f32 %v2804, 0.0
    %v3303 = vmax.f32 %v2806, 0.0
    %v3304 = vmax.f32 %v2968, 0.0
    %v3305 = vmax.f32 %v2970, 0.0
    %v3306 = vmax.f32 %v3132, 0.0
    %v3307 = vmax.f32 %v3134, 0.0
    %v3308 = vmax.f32 %v3296, 0.0
    %v3309 = vmax.f32 %v3298, 0.0
    %v3310 = vpack.c.bf16 %v3302, %v3302
    %v3311 = vpack.c.bf16 %v3303, %v3303
    %v3312 = vpack.c.bf16 %v3304, %v3304
    %v3313 = vpack.c.bf16 %v3305, %v3305
    %v3314 = vpack.c.bf16 %v3306, %v3306
    %v3315 = vpack.c.bf16 %v3307, %v3307
    %v3316 = vpack.c.bf16 %v3308, %v3308
    %v3317 = vpack.c.bf16 %v3309, %v3309
    %v3318 = vld [vmem:[#allocation8] sm:$0xff]
    %v3319 = vld [vmem:[#allocation8 + $0x8] sm:$0xff]
    %v3320 = vld [vmem:[#allocation8 + $0x10] sm:$0xff]
    %v3321 = vld [vmem:[#allocation8 + $0x18] sm:$0xf]
    %v3322 = vld [vmem:[#allocation8 + $0x1c] sm:$0xff]
    %v3323 = vld [vmem:[#allocation8 + $0x24] sm:$0xff]
    %v3324 = vld [vmem:[#allocation8 + $0x2c] sm:$0xff]
    %v3325 = vld [vmem:[#allocation8 + $0x34] sm:$0xf]
    %v3326 = vld [vmem:[#allocation8 + $0x38] sm:$0xff]
    %v3327 = vld [vmem:[#allocation8 + $0x40] sm:$0xff]
    %v3328 = vld [vmem:[#allocation8 + $0x48] sm:$0xff]
    %v3329 = vld [vmem:[#allocation8 + $0x50] sm:$0xf]
    %v3330 = vld [vmem:[#allocation8 + $0x54] sm:$0xff]
    %v3331 = vld [vmem:[#allocation8 + $0x5c] sm:$0xff]
    %v3332 = vld [vmem:[#allocation8 + $0x64] sm:$0xff]
    %v3333 = vld [vmem:[#allocation8 + $0x6c] sm:$0xf]
    %v3334 = vld [vmem:[#allocation8 + $0x70] sm:$0xff]
    %v3335 = vld [vmem:[#allocation8 + $0x78] sm:$0xff]
    %v3336 = vld [vmem:[#allocation8 + $0x80] sm:$0xff]
    %v3337 = vld [vmem:[#allocation8 + $0x88] sm:$0xf]
    %v3338 = vld [vmem:[#allocation8 + $0x8c] sm:$0xff]
    %v3339 = vld [vmem:[#allocation8 + $0x94] sm:$0xff]
    %v3340 = vld [vmem:[#allocation8 + $0x9c] sm:$0xff]
    %v3341 = vld [vmem:[#allocation8 + $0xa4] sm:$0xf]
    %v3342 = vld [vmem:[#allocation8 + $0xa8] sm:$0xff]
    %v3343 = vld [vmem:[#allocation8 + $0xb0] sm:$0xff]
    %v3344 = vld [vmem:[#allocation8 + $0xb8] sm:$0xff]
    %v3345 = vld [vmem:[#allocation8 + $0xc0] sm:$0xf]
    %v3346 = vld [vmem:[#allocation8 + $0xc4] sm:$0xff]
    %v3347 = vld [vmem:[#allocation8 + $0xcc] sm:$0xff]
    %v3348 = vld [vmem:[#allocation8 + $0xd4] sm:$0xff]
    %v3349 = vld [vmem:[#allocation8 + $0xdc] sm:$0xf]
    %v3350 = vld [vmem:[#allocation8 + $0xe0] sm:$0xff]
    %v3351 = vld [vmem:[#allocation8 + $0xe8] sm:$0xff]
    %v3352 = vld [vmem:[#allocation8 + $0xf0] sm:$0xff]
    %v3353 = vld [vmem:[#allocation8 + $0xf8] sm:$0xf]
    %v3354 = vld [vmem:[#allocation8 + $0xfc] sm:$0xff]
    %v3355 = vld [vmem:[#allocation8 + $0x104] sm:$0xff]
    %v3356 = vld [vmem:[#allocation8 + $0x10c] sm:$0xff]
    %v3357 = vld [vmem:[#allocation8 + $0x114] sm:$0xf]
    %v3358 = vld [vmem:[#allocation8 + $0x118] sm:$0xff]
    %v3359 = vld [vmem:[#allocation8 + $0x120] sm:$0xff]
    %v3360 = vld [vmem:[#allocation8 + $0x128] sm:$0xff]
    %v3361 = vld [vmem:[#allocation8 + $0x130] sm:$0xf]
    %v3362 = vld [vmem:[#allocation8 + $0x134] sm:$0xff]
    %v3363 = vld [vmem:[#allocation8 + $0x13c] sm:$0xff]
    %v3364 = vld [vmem:[#allocation8 + $0x144] sm:$0xff]
    %v3365 = vld [vmem:[#allocation8 + $0x14c] sm:$0xf]
    %v3366 = vld [vmem:[#allocation8 + $0x150] sm:$0xff]
    %v3367 = vld [vmem:[#allocation8 + $0x158] sm:$0xff]
    %v3368 = vld [vmem:[#allocation8 + $0x160] sm:$0xff]
    %v3369 = vld [vmem:[#allocation8 + $0x168] sm:$0xf]
    %v3370 = vld [vmem:[#allocation8 + $0x16c] sm:$0xff]
    %v3371 = vld [vmem:[#allocation8 + $0x174] sm:$0xff]
    %v3372 = vld [vmem:[#allocation8 + $0x17c] sm:$0xff]
    %v3373 = vld [vmem:[#allocation8 + $0x184] sm:$0xf]
    %v3374 = vld [vmem:[#allocation8 + $0x188] sm:$0xff]
    %v3375 = vld [vmem:[#allocation8 + $0x190] sm:$0xff]
    %v3376 = vld [vmem:[#allocation8 + $0x198] sm:$0xff]
    %v3377 = vld [vmem:[#allocation8 + $0x1a0] sm:$0xf]
    %v3378 = vld [vmem:[#allocation8 + $0x1a4] sm:$0xff]
    %v3379 = vld [vmem:[#allocation8 + $0x1ac] sm:$0xff]
    %v3380 = vld [vmem:[#allocation8 + $0x1b4] sm:$0xff]
    %v3381 = vld [vmem:[#allocation8 + $0x1bc] sm:$0xf]
    %v3382 = vld [vmem:[#allocation8 + $0x1c0] sm:$0xff]
    %v3383 = vld [vmem:[#allocation8 + $0x1c8] sm:$0xff]
    %v3384 = vld [vmem:[#allocation8 + $0x1d0] sm:$0xff]
    %v3385 = vld [vmem:[#allocation8 + $0x1d8] sm:$0xf]
    %v3386 = vld [vmem:[#allocation8 + $0x1dc] sm:$0xff]
    %v3387 = vld [vmem:[#allocation8 + $0x1e4] sm:$0xff]
    %v3388 = vld [vmem:[#allocation8 + $0x1ec] sm:$0xff]
    %v3389 = vld [vmem:[#allocation8 + $0x1f4] sm:$0xf]
    %v3390 = vld [vmem:[#allocation8 + $0x1f8] sm:$0xff]
    %v3391 = vld [vmem:[#allocation8 + $0x200] sm:$0xff]
    %v3392 = vld [vmem:[#allocation8 + $0x208] sm:$0xff]
    %v3393 = vld [vmem:[#allocation8 + $0x210] sm:$0xf]
    %v3394 = vld [vmem:[#allocation8 + $0x214] sm:$0xff]
    %v3395 = vld [vmem:[#allocation8 + $0x21c] sm:$0xff]
    %v3396 = vld [vmem:[#allocation8 + $0x224] sm:$0xff]
    %v3397 = vld [vmem:[#allocation8 + $0x22c] sm:$0xf]
    %v3398 = vld [vmem:[#allocation8 + $0x230] sm:$0xff]
    %v3399 = vld [vmem:[#allocation8 + $0x238] sm:$0xff]
    %v3400 = vld [vmem:[#allocation8 + $0x240] sm:$0xff]
    %v3401 = vld [vmem:[#allocation8 + $0x248] sm:$0xf]
    %v3402 = vld [vmem:[#allocation8 + $0x24c] sm:$0xff]
    %v3403 = vld [vmem:[#allocation8 + $0x254] sm:$0xff]
    %v3404 = vld [vmem:[#allocation8 + $0x25c] sm:$0xff]
    %v3405 = vld [vmem:[#allocation8 + $0x264] sm:$0xf]
    %v3406 = vld [vmem:[#allocation8 + $0x268] sm:$0xff]
    %v3407 = vld [vmem:[#allocation8 + $0x270] sm:$0xff]
    %v3408 = vld [vmem:[#allocation8 + $0x278] sm:$0xff]
    %v3409 = vld [vmem:[#allocation8 + $0x280] sm:$0xf]
    %v3410 = vld [vmem:[#allocation8 + $0x284] sm:$0xff]
    %v3411 = vld [vmem:[#allocation8 + $0x28c] sm:$0xff]
    %v3412 = vld [vmem:[#allocation8 + $0x294] sm:$0xff]
    %v3413 = vld [vmem:[#allocation8 + $0x29c] sm:$0xf]
    %v3414 = vld [vmem:[#allocation8 + $0x2a0] sm:$0xff]
    %v3415 = vld [vmem:[#allocation8 + $0x2a8] sm:$0xff]
    %v3416 = vld [vmem:[#allocation8 + $0x2b0] sm:$0xff]
    %v3417 = vld [vmem:[#allocation8 + $0x2b8] sm:$0xf]
    %v3418 = vld [vmem:[#allocation8 + $0x2bc] sm:$0xff]
    %v3419 = vld [vmem:[#allocation8 + $0x2c4] sm:$0xff]
    %v3420 = vld [vmem:[#allocation8 + $0x2cc] sm:$0xff]
    %v3421 = vld [vmem:[#allocation8 + $0x2d4] sm:$0xf]
    %v3422 = vld [vmem:[#allocation8 + $0x2d8] sm:$0xff]
    %v3423 = vld [vmem:[#allocation8 + $0x2e0] sm:$0xff]
    %v3424 = vld [vmem:[#allocation8 + $0x2e8] sm:$0xff]
    %v3425 = vld [vmem:[#allocation8 + $0x2f0] sm:$0xf]
    %v3426 = vld [vmem:[#allocation8 + $0x2f4] sm:$0xff]
    %v3427 = vld [vmem:[#allocation8 + $0x2fc] sm:$0xff]
    %v3428 = vld [vmem:[#allocation8 + $0x304] sm:$0xff]
    %v3429 = vld [vmem:[#allocation8 + $0x30c] sm:$0xf]
    %v3430 = vld [vmem:[#allocation8 + $0x310] sm:$0xff]
    %v3431 = vld [vmem:[#allocation8 + $0x318] sm:$0xff]
    %v3432 = vld [vmem:[#allocation8 + $0x320] sm:$0xff]
    %v3433 = vld [vmem:[#allocation8 + $0x328] sm:$0xf]
    %v3434 = vld [vmem:[#allocation8 + $0x32c] sm:$0xff]
    %v3435 = vld [vmem:[#allocation8 + $0x334] sm:$0xff]
    %v3436 = vld [vmem:[#allocation8 + $0x33c] sm:$0xff]
    %v3437 = vld [vmem:[#allocation8 + $0x344] sm:$0xf]
    %v3438 = vld [vmem:[#allocation8 + $0x348] sm:$0xff]
    %v3439 = vld [vmem:[#allocation8 + $0x350] sm:$0xff]
    %v3440 = vld [vmem:[#allocation8 + $0x358] sm:$0xff]
    %v3441 = vld [vmem:[#allocation8 + $0x360] sm:$0xf]
    %v3442 = vld [vmem:[#allocation8 + $0x364] sm:$0xff]
    %v3443 = vld [vmem:[#allocation8 + $0x36c] sm:$0xff]
    %v3444 = vld [vmem:[#allocation8 + $0x374] sm:$0xff]
    %v3445 = vld [vmem:[#allocation8 + $0x37c] sm:$0xf]
    %v3446 = vld [vmem:[#allocation8 + $0x380] sm:$0xff]
    %v3447 = vld [vmem:[#allocation8 + $0x388] sm:$0xff]
    %v3448 = vld [vmem:[#allocation8 + $0x390] sm:$0xff]
    %v3449 = vld [vmem:[#allocation8 + $0x398] sm:$0xf]
    %v3450 = vld [vmem:[#allocation8 + $0x39c] sm:$0xff]
    %v3451 = vld [vmem:[#allocation8 + $0x3a4] sm:$0xff]
    %v3452 = vld [vmem:[#allocation8 + $0x3ac] sm:$0xff]
    %v3453 = vld [vmem:[#allocation8 + $0x3b4] sm:$0xf]
    %v3454 = vld [vmem:[#allocation8 + $0x3b8] sm:$0xff]
    %v3455 = vld [vmem:[#allocation8 + $0x3c0] sm:$0xff]
    %v3456 = vld [vmem:[#allocation8 + $0x3c8] sm:$0xff]
    %v3457 = vld [vmem:[#allocation8 + $0x3d0] sm:$0xf]
    %v3458 = vld [vmem:[#allocation8 + $0x3d4] sm:$0xff]
    %v3459 = vld [vmem:[#allocation8 + $0x3dc] sm:$0xff]
    %v3460 = vld [vmem:[#allocation8 + $0x3e4] sm:$0xff]
    %v3461 = vld [vmem:[#allocation8 + $0x3ec] sm:$0xf]
    %v3462 = vld [vmem:[#allocation8 + $0x3f0] sm:$0xff]
    %v3463 = vld [vmem:[#allocation8 + $0x3f8] sm:$0xff]
    %v3464 = vld [vmem:[#allocation8 + $0x400] sm:$0xff]
    %v3465 = vld [vmem:[#allocation8 + $0x408] sm:$0xf]
    %v3466 = vld [vmem:[#allocation8 + $0x40c] sm:$0xff]
    %v3467 = vld [vmem:[#allocation8 + $0x414] sm:$0xff]
    %v3468 = vld [vmem:[#allocation8 + $0x41c] sm:$0xff]
    %v3469 = vld [vmem:[#allocation8 + $0x424] sm:$0xf]
    %v3470 = vld [vmem:[#allocation8 + $0x428] sm:$0xff]
    %v3471 = vld [vmem:[#allocation8 + $0x430] sm:$0xff]
    %v3472 = vld [vmem:[#allocation8 + $0x438] sm:$0xff]
    %v3473 = vld [vmem:[#allocation8 + $0x440] sm:$0xf]
    %v3474 = vld [vmem:[#allocation8 + $0x444] sm:$0xff]
    %v3475 = vld [vmem:[#allocation8 + $0x44c] sm:$0xff]
    %v3476 = vld [vmem:[#allocation8 + $0x454] sm:$0xff]
    %v3477 = vld [vmem:[#allocation8 + $0x45c] sm:$0xf]
    %v3478 = vld [vmem:[#allocation8 + $0x460] sm:$0xff]
    %v3479 = vld [vmem:[#allocation8 + $0x468] sm:$0xff]
    %v3480 = vld [vmem:[#allocation8 + $0x470] sm:$0xff]
    %v3481 = vld [vmem:[#allocation8 + $0x478] sm:$0xf]
    %v3482 = vld [vmem:[#allocation8 + $0x47c] sm:$0xff]
    %v3483 = vld [vmem:[#allocation8 + $0x484] sm:$0xff]
    %v3484 = vld [vmem:[#allocation8 + $0x48c] sm:$0xff]
    %v3485 = vld [vmem:[#allocation8 + $0x494] sm:$0xf]
    %v3486 = vld [vmem:[#allocation8 + $0x498] sm:$0xff]
    %v3487 = vld [vmem:[#allocation8 + $0x4a0] sm:$0xff]
    %v3488 = vld [vmem:[#allocation8 + $0x4a8] sm:$0xff]
    %v3489 = vld [vmem:[#allocation8 + $0x4b0] sm:$0xf]
    %v3490 = vld [vmem:[#allocation8 + $0x4b4] sm:$0xff]
    %v3491 = vld [vmem:[#allocation8 + $0x4bc] sm:$0xff]
    %v3492 = vld [vmem:[#allocation8 + $0x4c4] sm:$0xff]
    %v3493 = vld [vmem:[#allocation8 + $0x4cc] sm:$0xf]
    %v3494 = vld [vmem:[#allocation8 + $0x4d0] sm:$0xff]
    %v3495 = vld [vmem:[#allocation8 + $0x4d8] sm:$0xff]
    %v3496 = vld [vmem:[#allocation8 + $0x4e0] sm:$0xff]
    %v3497 = vld [vmem:[#allocation8 + $0x4e8] sm:$0xf]
    %v3498 = vld [vmem:[#allocation8 + $0x4ec] sm:$0xff]
    %v3499 = vld [vmem:[#allocation8 + $0x4f4] sm:$0xff]
    %v3500 = vld [vmem:[#allocation8 + $0x4fc] sm:$0xff]
    %v3501 = vld [vmem:[#allocation8 + $0x504] sm:$0xf]
    %v3502 = vld [vmem:[#allocation8 + $0x508] sm:$0xff]
    %v3503 = vld [vmem:[#allocation8 + $0x510] sm:$0xff]
    %v3504 = vld [vmem:[#allocation8 + $0x518] sm:$0xff]
    %v3505 = vld [vmem:[#allocation8 + $0x520] sm:$0xf]
    %v3506 = vld [vmem:[#allocation8 + $0x524] sm:$0xff]
    %v3507 = vld [vmem:[#allocation8 + $0x52c] sm:$0xff]
    %v3508 = vld [vmem:[#allocation8 + $0x534] sm:$0xff]
    %v3509 = vld [vmem:[#allocation8 + $0x53c] sm:$0xf]
    %v3510 = vld [vmem:[#allocation8 + $0x540] sm:$0xff]
    %v3511 = vld [vmem:[#allocation8 + $0x548] sm:$0xff]
    %v3512 = vld [vmem:[#allocation8 + $0x550] sm:$0xff]
    %v3513 = vld [vmem:[#allocation8 + $0x558] sm:$0xf]
    %v3514 = vld [vmem:[#allocation8 + $0x55c] sm:$0xff]
    %v3515 = vld [vmem:[#allocation8 + $0x564] sm:$0xff]
    %v3516 = vld [vmem:[#allocation8 + $0x56c] sm:$0xff]
    %v3517 = vld [vmem:[#allocation8 + $0x574] sm:$0xf]
    %v3518 = vld [vmem:[#allocation8 + $0x578] sm:$0xff]
    %v3519 = vld [vmem:[#allocation8 + $0x580] sm:$0xff]
    %v3520 = vld [vmem:[#allocation8 + $0x588] sm:$0xff]
    %v3521 = vld [vmem:[#allocation8 + $0x590] sm:$0xf]
    %v3522 = vld [vmem:[#allocation8 + $0x594] sm:$0xff]
    %v3523 = vld [vmem:[#allocation8 + $0x59c] sm:$0xff]
    %v3524 = vld [vmem:[#allocation8 + $0x5a4] sm:$0xff]
    %v3525 = vld [vmem:[#allocation8 + $0x5ac] sm:$0xf]
    %v3526 = vld [vmem:[#allocation8 + $0x5b0] sm:$0xff]
    %v3527 = vld [vmem:[#allocation8 + $0x5b8] sm:$0xff]
    %v3528 = vld [vmem:[#allocation8 + $0x5c0] sm:$0xff]
    %v3529 = vld [vmem:[#allocation8 + $0x5c8] sm:$0xf]
    %v3530 = vld [vmem:[#allocation8 + $0x5cc] sm:$0xff]
    %v3531 = vld [vmem:[#allocation8 + $0x5d4] sm:$0xff]
    %v3532 = vld [vmem:[#allocation8 + $0x5dc] sm:$0xff]
    %v3533 = vld [vmem:[#allocation8 + $0x5e4] sm:$0xf]
    %v3534 = vld [vmem:[#allocation8 + $0x5e8] sm:$0xff]
    %v3535 = vld [vmem:[#allocation8 + $0x5f0] sm:$0xff]
    %v3536 = vld [vmem:[#allocation8 + $0x5f8] sm:$0xff]
    %v3537 = vld [vmem:[#allocation8 + $0x600] sm:$0xf]
    %v3538 = vld [vmem:[#allocation8 + $0x604] sm:$0xff]
    %v3539 = vld [vmem:[#allocation8 + $0x60c] sm:$0xff]
    %v3540 = vld [vmem:[#allocation8 + $0x614] sm:$0xff]
    %v3541 = vld [vmem:[#allocation8 + $0x61c] sm:$0xf]
    %v3542 = vld [vmem:[#allocation8 + $0x620] sm:$0xff]
    %v3543 = vld [vmem:[#allocation8 + $0x628] sm:$0xff]
    %v3544 = vld [vmem:[#allocation8 + $0x630] sm:$0xff]
    %v3545 = vld [vmem:[#allocation8 + $0x638] sm:$0xf]
    %v3546 = vld [vmem:[#allocation8 + $0x63c] sm:$0xff]
    %v3547 = vld [vmem:[#allocation8 + $0x644] sm:$0xff]
    %v3548 = vld [vmem:[#allocation8 + $0x64c] sm:$0xff]
    %v3549 = vld [vmem:[#allocation8 + $0x654] sm:$0xf]
    %v3550 = vld [vmem:[#allocation8 + $0x658] sm:$0xff]
    %v3551 = vld [vmem:[#allocation8 + $0x660] sm:$0xff]
    %v3552 = vld [vmem:[#allocation8 + $0x668] sm:$0xff]
    %v3553 = vld [vmem:[#allocation8 + $0x670] sm:$0xf]
    %v3554 = vld [vmem:[#allocation8 + $0x674] sm:$0xff]
    %v3555 = vld [vmem:[#allocation8 + $0x67c] sm:$0xff]
    %v3556 = vld [vmem:[#allocation8 + $0x684] sm:$0xff]
    %v3557 = vld [vmem:[#allocation8 + $0x68c] sm:$0xf]
    %v3558 = vld [vmem:[#allocation8 + $0x690] sm:$0xff]
    %v3559 = vld [vmem:[#allocation8 + $0x698] sm:$0xff]
    %v3560 = vld [vmem:[#allocation8 + $0x6a0] sm:$0xff]
    %v3561 = vld [vmem:[#allocation8 + $0x6a8] sm:$0xf]
    %v3562 = vld [vmem:[#allocation8 + $0x6ac] sm:$0xff]
    %v3563 = vld [vmem:[#allocation8 + $0x6b4] sm:$0xff]
    %v3564 = vld [vmem:[#allocation8 + $0x6bc] sm:$0xff]
    %v3565 = vld [vmem:[#allocation8 + $0x6c4] sm:$0xf]
    %v3566 = vld [vmem:[#allocation8 + $0x6c8] sm:$0xff]
    %v3567 = vld [vmem:[#allocation8 + $0x6d0] sm:$0xff]
    %v3568 = vld [vmem:[#allocation8 + $0x6d8] sm:$0xff]
    %v3569 = vld [vmem:[#allocation8 + $0x6e0] sm:$0xf]
    %v3570 = vld [vmem:[#allocation8 + $0x6e4] sm:$0xff]
    %v3571 = vld [vmem:[#allocation8 + $0x6ec] sm:$0xff]
    %v3572 = vld [vmem:[#allocation8 + $0x6f4] sm:$0xff]
    %v3573 = vld [vmem:[#allocation8 + $0x6fc] sm:$0xf]
    %v3574 = vld [vmem:[#allocation8 + $0x700] sm:$0xff]
    %v3575 = vld [vmem:[#allocation8 + $0x708] sm:$0xff]
    %v3576 = vld [vmem:[#allocation8 + $0x710] sm:$0xff]
    %v3577 = vld [vmem:[#allocation8 + $0x718] sm:$0xf]
    %v3578 = vld [vmem:[#allocation8 + $0x71c] sm:$0xff]
    %v3579 = vld [vmem:[#allocation8 + $0x724] sm:$0xff]
    %v3580 = vld [vmem:[#allocation8 + $0x72c] sm:$0xff]
    %v3581 = vld [vmem:[#allocation8 + $0x734] sm:$0xf]
    %v3582 = vld [vmem:[#allocation8 + $0x738] sm:$0xff]
    %v3583 = vld [vmem:[#allocation8 + $0x740] sm:$0xff]
    %v3584 = vld [vmem:[#allocation8 + $0x748] sm:$0xff]
    %v3585 = vld [vmem:[#allocation8 + $0x750] sm:$0xf]
    %v3586 = vld [vmem:[#allocation8 + $0x754] sm:$0xff]
    %v3587 = vld [vmem:[#allocation8 + $0x75c] sm:$0xff]
    %v3588 = vld [vmem:[#allocation8 + $0x764] sm:$0xff]
    %v3589 = vld [vmem:[#allocation8 + $0x76c] sm:$0xf]
    %v3590 = vld [vmem:[#allocation8 + $0x770] sm:$0xff]
    %v3591 = vld [vmem:[#allocation8 + $0x778] sm:$0xff]
    %v3592 = vld [vmem:[#allocation8 + $0x780] sm:$0xff]
    %v3593 = vld [vmem:[#allocation8 + $0x788] sm:$0xf]
    %v3594 = vld [vmem:[#allocation8 + $0x78c] sm:$0xff]
    %v3595 = vld [vmem:[#allocation8 + $0x794] sm:$0xff]
    %v3596 = vld [vmem:[#allocation8 + $0x79c] sm:$0xff]
    %v3597 = vld [vmem:[#allocation8 + $0x7a4] sm:$0xf]
    %v3598 = vld [vmem:[#allocation8 + $0x7a8] sm:$0xff]
    %v3599 = vld [vmem:[#allocation8 + $0x7b0] sm:$0xff]
    %v3600 = vld [vmem:[#allocation8 + $0x7b8] sm:$0xff]
    %v3601 = vld [vmem:[#allocation8 + $0x7c0] sm:$0xf]
    %v3602 = vld [vmem:[#allocation8 + $0x7c4] sm:$0xff]
    %v3603 = vld [vmem:[#allocation8 + $0x7cc] sm:$0xff]
    %v3604 = vld [vmem:[#allocation8 + $0x7d4] sm:$0xff]
    %v3605 = vld [vmem:[#allocation8 + $0x7dc] sm:$0xf]
    %v3606 = vld [vmem:[#allocation8 + $0x7e0] sm:$0xff]
    %v3607 = vld [vmem:[#allocation8 + $0x7e8] sm:$0xff]
    %v3608 = vld [vmem:[#allocation8 + $0x7f0] sm:$0xff]
    %v3609 = vld [vmem:[#allocation8 + $0x7f8] sm:$0xf]
    %v3610 = vld [vmem:[#allocation8 + $0x7fc] sm:$0xff]
    %v3611 = vld [vmem:[#allocation8 + $0x804] sm:$0xff]
    %v3612 = vld [vmem:[#allocation8 + $0x80c] sm:$0xff]
    %v3613 = vld [vmem:[#allocation8 + $0x814] sm:$0xf]
    %v3614 = vld [vmem:[#allocation8 + $0x818] sm:$0xff]
    %v3615 = vld [vmem:[#allocation8 + $0x820] sm:$0xff]
    %v3616 = vld [vmem:[#allocation8 + $0x828] sm:$0xff]
    %v3617 = vld [vmem:[#allocation8 + $0x830] sm:$0xf]
    %v3618 = vld [vmem:[#allocation8 + $0x834] sm:$0xff]
    %v3619 = vld [vmem:[#allocation8 + $0x83c] sm:$0xff]
    %v3620 = vld [vmem:[#allocation8 + $0x844] sm:$0xff]
    %v3621 = vld [vmem:[#allocation8 + $0x84c] sm:$0xf]
    %v3622 = vld [vmem:[#allocation8 + $0x850] sm:$0xff]
    %v3623 = vld [vmem:[#allocation8 + $0x858] sm:$0xff]
    %v3624 = vld [vmem:[#allocation8 + $0x860] sm:$0xff]
    %v3625 = vld [vmem:[#allocation8 + $0x868] sm:$0xf]
    %v3626 = vld [vmem:[#allocation8 + $0x86c] sm:$0xff]
    %v3627 = vld [vmem:[#allocation8 + $0x874] sm:$0xff]
    %v3628 = vld [vmem:[#allocation8 + $0x87c] sm:$0xff]
    %v3629 = vld [vmem:[#allocation8 + $0x884] sm:$0xf]
    %v3630 = vld [vmem:[#allocation8 + $0x888] sm:$0xff]
    %v3631 = vld [vmem:[#allocation8 + $0x890] sm:$0xff]
    %v3632 = vld [vmem:[#allocation8 + $0x898] sm:$0xff]
    %v3633 = vld [vmem:[#allocation8 + $0x8a0] sm:$0xf]
    %v3634 = vld [vmem:[#allocation8 + $0x8a4] sm:$0xff]
    %v3635 = vld [vmem:[#allocation8 + $0x8ac] sm:$0xff]
    %v3636 = vld [vmem:[#allocation8 + $0x8b4] sm:$0xff]
    %v3637 = vld [vmem:[#allocation8 + $0x8bc] sm:$0xf]
    %v3638 = vld [vmem:[#allocation8 + $0x8c0] sm:$0xff]
    %v3639 = vld [vmem:[#allocation8 + $0x8c8] sm:$0xff]
    %v3640 = vld [vmem:[#allocation8 + $0x8d0] sm:$0xff]
    %v3641 = vld [vmem:[#allocation8 + $0x8d8] sm:$0xf]
    %v3642 = vld [vmem:[#allocation8 + $0x8dc] sm:$0xff]
    %v3643 = vld [vmem:[#allocation8 + $0x8e4] sm:$0xff]
    %v3644 = vld [vmem:[#allocation8 + $0x8ec] sm:$0xff]
    %v3645 = vld [vmem:[#allocation8 + $0x8f4] sm:$0xf]
    %v3646 = vld [vmem:[#allocation8 + $0x8f8] sm:$0xff]
    %v3647 = vld [vmem:[#allocation8 + $0x900] sm:$0xff]
    %v3648 = vld [vmem:[#allocation8 + $0x908] sm:$0xff]
    %v3649 = vld [vmem:[#allocation8 + $0x910] sm:$0xf]
    %v3650 = vld [vmem:[#allocation8 + $0x914] sm:$0xff]
    %v3651 = vld [vmem:[#allocation8 + $0x91c] sm:$0xff]
    %v3652 = vld [vmem:[#allocation8 + $0x924] sm:$0xff]
    %v3653 = vld [vmem:[#allocation8 + $0x92c] sm:$0xf]
    %v3654 = vld [vmem:[#allocation8 + $0x930] sm:$0xff]
    %v3655 = vld [vmem:[#allocation8 + $0x938] sm:$0xff]
    %v3656 = vld [vmem:[#allocation8 + $0x940] sm:$0xff]
    %v3657 = vld [vmem:[#allocation8 + $0x948] sm:$0xf]
    %v3658 = vld [vmem:[#allocation8 + $0x94c] sm:$0xff]
    %v3659 = vld [vmem:[#allocation8 + $0x954] sm:$0xff]
    %v3660 = vld [vmem:[#allocation8 + $0x95c] sm:$0xff]
    %v3661 = vld [vmem:[#allocation8 + $0x964] sm:$0xf]
    %v3662 = vld [vmem:[#allocation8 + $0x968] sm:$0xff]
    %v3663 = vld [vmem:[#allocation8 + $0x970] sm:$0xff]
    %v3664 = vld [vmem:[#allocation8 + $0x978] sm:$0xff]
    %v3665 = vld [vmem:[#allocation8 + $0x980] sm:$0xf]
    %v3666 = vld [vmem:[#allocation8 + $0x984] sm:$0xff]
    %v3667 = vld [vmem:[#allocation8 + $0x98c] sm:$0xff]
    %v3668 = vld [vmem:[#allocation8 + $0x994] sm:$0xff]
    %v3669 = vld [vmem:[#allocation8 + $0x99c] sm:$0xf]
    %v3670 = vld [vmem:[#allocation8 + $0x9a0] sm:$0xff]
    %v3671 = vld [vmem:[#allocation8 + $0x9a8] sm:$0xff]
    %v3672 = vld [vmem:[#allocation8 + $0x9b0] sm:$0xff]
    %v3673 = vld [vmem:[#allocation8 + $0x9b8] sm:$0xf]
    %v3674 = vld [vmem:[#allocation8 + $0x9bc] sm:$0xff]
    %v3675 = vld [vmem:[#allocation8 + $0x9c4] sm:$0xff]
    %v3676 = vld [vmem:[#allocation8 + $0x9cc] sm:$0xff]
    %v3677 = vld [vmem:[#allocation8 + $0x9d4] sm:$0xf]
    %v3678 = vld [vmem:[#allocation8 + $0x9d8] sm:$0xff]
    %v3679 = vld [vmem:[#allocation8 + $0x9e0] sm:$0xff]
    %v3680 = vld [vmem:[#allocation8 + $0x9e8] sm:$0xff]
    %v3681 = vld [vmem:[#allocation8 + $0x9f0] sm:$0xf]
    %v3682 = vld [vmem:[#allocation8 + $0x9f4] sm:$0xff]
    %v3683 = vld [vmem:[#allocation8 + $0x9fc] sm:$0xff]
    %v3684 = vld [vmem:[#allocation8 + $0xa04] sm:$0xff]
    %v3685 = vld [vmem:[#allocation8 + $0xa0c] sm:$0xf]
    %v3686 = vld [vmem:[#allocation8 + $0xa10] sm:$0xff]
    %v3687 = vld [vmem:[#allocation8 + $0xa18] sm:$0xff]
    %v3688 = vld [vmem:[#allocation8 + $0xa20] sm:$0xff]
    %v3689 = vld [vmem:[#allocation8 + $0xa28] sm:$0xf]
    %v3690 = vld [vmem:[#allocation8 + $0xa2c] sm:$0xff]
    %v3691 = vld [vmem:[#allocation8 + $0xa34] sm:$0xff]
    %v3692 = vld [vmem:[#allocation8 + $0xa3c] sm:$0xff]
    %v3693 = vld [vmem:[#allocation8 + $0xa44] sm:$0xf]
    %v3694 = vld [vmem:[#allocation8 + $0xa48] sm:$0xff]
    %v3695 = vld [vmem:[#allocation8 + $0xa50] sm:$0xff]
    %v3696 = vld [vmem:[#allocation8 + $0xa58] sm:$0xff]
    %v3697 = vld [vmem:[#allocation8 + $0xa60] sm:$0xf]
    %v3698 = vld [vmem:[#allocation8 + $0xa64] sm:$0xff]
    %v3699 = vld [vmem:[#allocation8 + $0xa6c] sm:$0xff]
    %v3700 = vld [vmem:[#allocation8 + $0xa74] sm:$0xff]
    %v3701 = vld [vmem:[#allocation8 + $0xa7c] sm:$0xf]
    %v3702 = vld [vmem:[#allocation8 + $0xa80] sm:$0xff]
    %v3703 = vld [vmem:[#allocation8 + $0xa88] sm:$0xff]
    %v3704 = vld [vmem:[#allocation8 + $0xa90] sm:$0xff]
    %v3705 = vld [vmem:[#allocation8 + $0xa98] sm:$0xf]
    %v3706 = vld [vmem:[#allocation8 + $0xa9c] sm:$0xff]
    %v3707 = vld [vmem:[#allocation8 + $0xaa4] sm:$0xff]
    %v3708 = vld [vmem:[#allocation8 + $0xaac] sm:$0xff]
    %v3709 = vld [vmem:[#allocation8 + $0xab4] sm:$0xf]
    %v3710 = vld [vmem:[#allocation8 + $0xab8] sm:$0xff]
    %v3711 = vld [vmem:[#allocation8 + $0xac0] sm:$0xff]
    %v3712 = vld [vmem:[#allocation8 + $0xac8] sm:$0xff]
    %v3713 = vld [vmem:[#allocation8 + $0xad0] sm:$0xf]
    %v3714 = vld [vmem:[#allocation8 + $0xad4] sm:$0xff]
    %v3715 = vld [vmem:[#allocation8 + $0xadc] sm:$0xff]
    %v3716 = vld [vmem:[#allocation8 + $0xae4] sm:$0xff]
    %v3717 = vld [vmem:[#allocation8 + $0xaec] sm:$0xf]
    %v3718 = vld [vmem:[#allocation8 + $0xaf0] sm:$0xff]
    %v3719 = vld [vmem:[#allocation8 + $0xaf8] sm:$0xff]
    %v3720 = vld [vmem:[#allocation8 + $0xb00] sm:$0xff]
    %v3721 = vld [vmem:[#allocation8 + $0xb08] sm:$0xf]
    %v3722 = vld [vmem:[#allocation8 + $0xb0c] sm:$0xff]
    %v3723 = vld [vmem:[#allocation8 + $0xb14] sm:$0xff]
    %v3724 = vld [vmem:[#allocation8 + $0xb1c] sm:$0xff]
    %v3725 = vld [vmem:[#allocation8 + $0xb24] sm:$0xf]
    %v3726 = vld [vmem:[#allocation8 + $0xb28] sm:$0xff]
    %v3727 = vld [vmem:[#allocation8 + $0xb30] sm:$0xff]
    %v3728 = vld [vmem:[#allocation8 + $0xb38] sm:$0xff]
    %v3729 = vld [vmem:[#allocation8 + $0xb40] sm:$0xf]
    %v3730 = vld [vmem:[#allocation8 + $0xb44] sm:$0xff]
    %v3731 = vld [vmem:[#allocation8 + $0xb4c] sm:$0xff]
    %v3732 = vld [vmem:[#allocation8 + $0xb54] sm:$0xff]
    %v3733 = vld [vmem:[#allocation8 + $0xb5c] sm:$0xf]
    %v3734 = vld [vmem:[#allocation8 + $0xb60] sm:$0xff]
    %v3735 = vld [vmem:[#allocation8 + $0xb68] sm:$0xff]
    %v3736 = vld [vmem:[#allocation8 + $0xb70] sm:$0xff]
    %v3737 = vld [vmem:[#allocation8 + $0xb78] sm:$0xf]
    %v3738 = vld [vmem:[#allocation8 + $0xb7c] sm:$0xff]
    %v3739 = vld [vmem:[#allocation8 + $0xb84] sm:$0xff]
    %v3740 = vld [vmem:[#allocation8 + $0xb8c] sm:$0xff]
    %v3741 = vld [vmem:[#allocation8 + $0xb94] sm:$0xf]
    %v3742 = vld [vmem:[#allocation8 + $0xb98] sm:$0xff]
    %v3743 = vld [vmem:[#allocation8 + $0xba0] sm:$0xff]
    %v3744 = vld [vmem:[#allocation8 + $0xba8] sm:$0xff]
    %v3745 = vld [vmem:[#allocation8 + $0xbb0] sm:$0xf]
    %v3746 = vld [vmem:[#allocation8 + $0xbb4] sm:$0xff]
    %v3747 = vld [vmem:[#allocation8 + $0xbbc] sm:$0xff]
    %v3748 = vld [vmem:[#allocation8 + $0xbc4] sm:$0xff]
    %v3749 = vld [vmem:[#allocation8 + $0xbcc] sm:$0xf]
    %v3750 = vld [vmem:[#allocation8 + $0xbd0] sm:$0xff]
    %v3751 = vld [vmem:[#allocation8 + $0xbd8] sm:$0xff]
    %v3752 = vld [vmem:[#allocation8 + $0xbe0] sm:$0xff]
    %v3753 = vld [vmem:[#allocation8 + $0xbe8] sm:$0xf]
    %v3754 = vld [vmem:[#allocation8 + $0xbec] sm:$0xff]
    %v3755 = vld [vmem:[#allocation8 + $0xbf4] sm:$0xff]
    %v3756 = vld [vmem:[#allocation8 + $0xbfc] sm:$0xff]
    %v3757 = vld [vmem:[#allocation8 + $0xc04] sm:$0xf]
    %v3758 = vld [vmem:[#allocation8 + $0xc08] sm:$0xff]
    %v3759 = vld [vmem:[#allocation8 + $0xc10] sm:$0xff]
    %v3760 = vld [vmem:[#allocation8 + $0xc18] sm:$0xff]
    %v3761 = vld [vmem:[#allocation8 + $0xc20] sm:$0xf]
    %v3762 = vld [vmem:[#allocation8 + $0xc24] sm:$0xff]
    %v3763 = vld [vmem:[#allocation8 + $0xc2c] sm:$0xff]
    %v3764 = vld [vmem:[#allocation8 + $0xc34] sm:$0xff]
    %v3765 = vld [vmem:[#allocation8 + $0xc3c] sm:$0xf]
    %v3766 = vld [vmem:[#allocation8 + $0xc40] sm:$0xff]
    %v3767 = vld [vmem:[#allocation8 + $0xc48] sm:$0xff]
    %v3768 = vld [vmem:[#allocation8 + $0xc50] sm:$0xff]
    %v3769 = vld [vmem:[#allocation8 + $0xc58] sm:$0xf]
    %v3770 = vld [vmem:[#allocation8 + $0xc5c] sm:$0xff]
    %v3771 = vld [vmem:[#allocation8 + $0xc64] sm:$0xff]
    %v3772 = vld [vmem:[#allocation8 + $0xc6c] sm:$0xff]
    %v3773 = vld [vmem:[#allocation8 + $0xc74] sm:$0xf]
    %v3774 = vld [vmem:[#allocation8 + $0xc78] sm:$0xff]
    %v3775 = vld [vmem:[#allocation8 + $0xc80] sm:$0xff]
    %v3776 = vld [vmem:[#allocation8 + $0xc88] sm:$0xff]
    %v3777 = vld [vmem:[#allocation8 + $0xc90] sm:$0xf]
    %v3778 = vld [vmem:[#allocation8 + $0xc94] sm:$0xff]
    %v3779 = vld [vmem:[#allocation8 + $0xc9c] sm:$0xff]
    %v3780 = vld [vmem:[#allocation8 + $0xca4] sm:$0xff]
    %v3781 = vld [vmem:[#allocation8 + $0xcac] sm:$0xf]
    %v3782 = vld [vmem:[#allocation8 + $0xcb0] sm:$0xff]
    %v3783 = vld [vmem:[#allocation8 + $0xcb8] sm:$0xff]
    %v3784 = vld [vmem:[#allocation8 + $0xcc0] sm:$0xff]
    %v3785 = vld [vmem:[#allocation8 + $0xcc8] sm:$0xf]
    %v3786 = vld [vmem:[#allocation8 + $0xccc] sm:$0xff]
    %v3787 = vld [vmem:[#allocation8 + $0xcd4] sm:$0xff]
    %v3788 = vld [vmem:[#allocation8 + $0xcdc] sm:$0xff]
    %v3789 = vld [vmem:[#allocation8 + $0xce4] sm:$0xf]
    %v3790 = vld [vmem:[#allocation8 + $0xce8] sm:$0xff]
    %v3791 = vld [vmem:[#allocation8 + $0xcf0] sm:$0xff]
    %v3792 = vld [vmem:[#allocation8 + $0xcf8] sm:$0xff]
    %v3793 = vld [vmem:[#allocation8 + $0xd00] sm:$0xf]
    %v3794 = vld [vmem:[#allocation8 + $0xd04] sm:$0xff]
    %v3795 = vld [vmem:[#allocation8 + $0xd0c] sm:$0xff]
    %v3796 = vld [vmem:[#allocation8 + $0xd14] sm:$0xff]
    %v3797 = vld [vmem:[#allocation8 + $0xd1c] sm:$0xf]
    %v3798 = vld [vmem:[#allocation8 + $0xd20] sm:$0xff]
    %v3799 = vld [vmem:[#allocation8 + $0xd28] sm:$0xff]
    %v3800 = vld [vmem:[#allocation8 + $0xd30] sm:$0xff]
    %v3801 = vld [vmem:[#allocation8 + $0xd38] sm:$0xf]
    %v3802 = vld [vmem:[#allocation8 + $0xd3c] sm:$0xff]
    %v3803 = vld [vmem:[#allocation8 + $0xd44] sm:$0xff]
    %v3804 = vld [vmem:[#allocation8 + $0xd4c] sm:$0xff]
    %v3805 = vld [vmem:[#allocation8 + $0xd54] sm:$0xf]
    %v3806 = vld [vmem:[#allocation8 + $0xd58] sm:$0xff]
    %v3807 = vld [vmem:[#allocation8 + $0xd60] sm:$0xff]
    %v3808 = vld [vmem:[#allocation8 + $0xd68] sm:$0xff]
    %v3809 = vld [vmem:[#allocation8 + $0xd70] sm:$0xf]
    %v3810 = vld [vmem:[#allocation8 + $0xd74] sm:$0xff]
    %v3811 = vld [vmem:[#allocation8 + $0xd7c] sm:$0xff]
    %v3812 = vld [vmem:[#allocation8 + $0xd84] sm:$0xff]
    %v3813 = vld [vmem:[#allocation8 + $0xd8c] sm:$0xf]
    %v3814 = vld [vmem:[#allocation8 + $0xd90] sm:$0xff]
    %v3815 = vld [vmem:[#allocation8 + $0xd98] sm:$0xff]
    %v3816 = vld [vmem:[#allocation8 + $0xda0] sm:$0xff]
    %v3817 = vld [vmem:[#allocation8 + $0xda8] sm:$0xf]
    %v3818 = vld [vmem:[#allocation8 + $0xdac] sm:$0xff]
    %v3819 = vld [vmem:[#allocation8 + $0xdb4] sm:$0xff]
    %v3820 = vld [vmem:[#allocation8 + $0xdbc] sm:$0xff]
    %v3821 = vld [vmem:[#allocation8 + $0xdc4] sm:$0xf]
    %v3822 = vld [vmem:[#allocation8 + $0xdc8] sm:$0xff]
    %v3823 = vld [vmem:[#allocation8 + $0xdd0] sm:$0xff]
    %v3824 = vld [vmem:[#allocation8 + $0xdd8] sm:$0xff]
    %v3825 = vld [vmem:[#allocation8 + $0xde0] sm:$0xf]
    %v3826 = vld [vmem:[#allocation8 + $0xde4] sm:$0xff]
    %v3827 = vld [vmem:[#allocation8 + $0xdec] sm:$0xff]
    %v3828 = vld [vmem:[#allocation8 + $0xdf4] sm:$0xff]
    %v3829 = vld [vmem:[#allocation8 + $0xdfc] sm:$0xf]
    %v3830 = vld [vmem:[#allocation10] sm:$0xff]
    %v3832 = vlaneseq
    %v3833 = vshrl.u32 %v3832, 7
    %v3834 = vsub.s32 0, %v3833
    %v3835 = vrot.slane %v3830, %v3834
    %v3836 = vlaneseq
    %v3837 = vshrl.u32 %v3836, 7
    %v3838 = vsub.s32 1, %v3837
    %v3839 = vrot.slane %v3830, %v3838
    %v3840 = vlaneseq
    %v3841 = vshrl.u32 %v3840, 7
    %v3842 = vsub.s32 2, %v3841
    %v3843 = vrot.slane %v3830, %v3842
    %v3844 = vlaneseq
    %v3845 = vshrl.u32 %v3844, 7
    %v3846 = vsub.s32 3, %v3845
    %v3847 = vrot.slane %v3830, %v3846
    %v3848 = vlaneseq
    %v3849 = vshrl.u32 %v3848, 7
    %v3850 = vsub.s32 4, %v3849
    %v3851 = vrot.slane %v3830, %v3850
    %v3852 = vlaneseq
    %v3853 = vshrl.u32 %v3852, 7
    %v3854 = vsub.s32 5, %v3853
    %v3855 = vrot.slane %v3830, %v3854
    %v3856 = vlaneseq
    %v3857 = vshrl.u32 %v3856, 7
    %v3858 = vsub.s32 6, %v3857
    %v3859 = vrot.slane %v3830, %v3858
    %v4379 = vunpack.c.l.b16 %v3318
    %v4380 = vunpack.c.h.b16 %v3318
    %v4381 = vunpack.c.l.b16 %v3319
    %v4382 = vunpack.c.h.b16 %v3319
    %v4383 = vunpack.c.l.b16 %v3320
    %v4384 = vunpack.c.h.b16 %v3320
    %v4385 = vunpack.c.l.b16 %v3321
    %v4386 = vunpack.c.l.b16 %v3322
    %v4387 = vunpack.c.h.b16 %v3322
    %v4388 = vunpack.c.l.b16 %v3323
    %v4389 = vunpack.c.h.b16 %v3323
    %v4390 = vunpack.c.l.b16 %v3324
    %v4391 = vunpack.c.h.b16 %v3324
    %v4392 = vunpack.c.l.b16 %v3325
    %v4393 = vunpack.c.l.b16 %v3326
    %v4394 = vunpack.c.h.b16 %v3326
    %v4395 = vunpack.c.l.b16 %v3327
    %v4396 = vunpack.c.h.b16 %v3327
    %v4397 = vunpack.c.l.b16 %v3328
    %v4398 = vunpack.c.h.b16 %v3328
    %v4399 = vunpack.c.l.b16 %v3329
    %v4400 = vunpack.c.l.b16 %v3330
    %v4401 = vunpack.c.h.b16 %v3330
    %v4402 = vunpack.c.l.b16 %v3331
    %v4403 = vunpack.c.h.b16 %v3331
    %v4404 = vunpack.c.l.b16 %v3332
    %v4405 = vunpack.c.h.b16 %v3332
    %v4406 = vunpack.c.l.b16 %v3333
    %v4407 = vunpack.c.l.b16 %v3334
    %v4408 = vunpack.c.h.b16 %v3334
    %v4409 = vunpack.c.l.b16 %v3335
    %v4410 = vunpack.c.h.b16 %v3335
    %v4411 = vunpack.c.l.b16 %v3336
    %v4412 = vunpack.c.h.b16 %v3336
    %v4413 = vunpack.c.l.b16 %v3337
    %v4414 = vunpack.c.l.b16 %v3338
    %v4415 = vunpack.c.h.b16 %v3338
    %v4416 = vunpack.c.l.b16 %v3339
    %v4417 = vunpack.c.h.b16 %v3339
    %v4418 = vunpack.c.l.b16 %v3340
    %v4419 = vunpack.c.h.b16 %v3340
    %v4420 = vunpack.c.l.b16 %v3341
    %v4421 = vunpack.c.l.b16 %v3342
    %v4422 = vunpack.c.h.b16 %v3342
    %v4423 = vunpack.c.l.b16 %v3343
    %v4424 = vunpack.c.h.b16 %v3343
    %v4425 = vunpack.c.l.b16 %v3344
    %v4426 = vunpack.c.h.b16 %v3344
    %v4427 = vunpack.c.l.b16 %v3345
    %v4428 = vunpack.c.l.b16 %v3346
    %v4429 = vunpack.c.h.b16 %v3346
    %v4430 = vunpack.c.l.b16 %v3347
    %v4431 = vunpack.c.h.b16 %v3347
    %v4432 = vunpack.c.l.b16 %v3348
    %v4433 = vunpack.c.h.b16 %v3348
    %v4434 = vunpack.c.l.b16 %v3349
    %v4435 = vunpack.c.l.b16 %v3350
    %v4436 = vunpack.c.h.b16 %v3350
    %v4437 = vunpack.c.l.b16 %v3351
    %v4438 = vunpack.c.h.b16 %v3351
    %v4439 = vunpack.c.l.b16 %v3352
    %v4440 = vunpack.c.h.b16 %v3352
    %v4441 = vunpack.c.l.b16 %v3353
    %v4442 = vunpack.c.l.b16 %v3354
    %v4443 = vunpack.c.h.b16 %v3354
    %v4444 = vunpack.c.l.b16 %v3355
    %v4445 = vunpack.c.h.b16 %v3355
    %v4446 = vunpack.c.l.b16 %v3356
    %v4447 = vunpack.c.h.b16 %v3356
    %v4448 = vunpack.c.l.b16 %v3357
    %v4449 = vunpack.c.l.b16 %v3358
    %v4450 = vunpack.c.h.b16 %v3358
    %v4451 = vunpack.c.l.b16 %v3359
    %v4452 = vunpack.c.h.b16 %v3359
    %v4453 = vunpack.c.l.b16 %v3360
    %v4454 = vunpack.c.h.b16 %v3360
    %v4455 = vunpack.c.l.b16 %v3361
    %v4456 = vunpack.c.l.b16 %v3362
    %v4457 = vunpack.c.h.b16 %v3362
    %v4458 = vunpack.c.l.b16 %v3363
    %v4459 = vunpack.c.h.b16 %v3363
    %v4460 = vunpack.c.l.b16 %v3364
    %v4461 = vunpack.c.h.b16 %v3364
    %v4462 = vunpack.c.l.b16 %v3365
    %v4463 = vunpack.c.l.b16 %v3366
    %v4464 = vunpack.c.h.b16 %v3366
    %v4465 = vunpack.c.l.b16 %v3367
    %v4466 = vunpack.c.h.b16 %v3367
    %v4467 = vunpack.c.l.b16 %v3368
    %v4468 = vunpack.c.h.b16 %v3368
    %v4469 = vunpack.c.l.b16 %v3369
    %v4470 = vunpack.c.l.b16 %v3370
    %v4471 = vunpack.c.h.b16 %v3370
    %v4472 = vunpack.c.l.b16 %v3371
    %v4473 = vunpack.c.h.b16 %v3371
    %v4474 = vunpack.c.l.b16 %v3372
    %v4475 = vunpack.c.h.b16 %v3372
    %v4476 = vunpack.c.l.b16 %v3373
    %v4477 = vunpack.c.l.b16 %v3374
    %v4478 = vunpack.c.h.b16 %v3374
    %v4479 = vunpack.c.l.b16 %v3375
    %v4480 = vunpack.c.h.b16 %v3375
    %v4481 = vunpack.c.l.b16 %v3376
    %v4482 = vunpack.c.h.b16 %v3376
    %v4483 = vunpack.c.l.b16 %v3377
    %v4484 = vunpack.c.l.b16 %v3378
    %v4485 = vunpack.c.h.b16 %v3378
    %v4486 = vunpack.c.l.b16 %v3379
    %v4487 = vunpack.c.h.b16 %v3379
    %v4488 = vunpack.c.l.b16 %v3380
    %v4489 = vunpack.c.h.b16 %v3380
    %v4490 = vunpack.c.l.b16 %v3381
    %v4491 = vunpack.c.l.b16 %v3382
    %v4492 = vunpack.c.h.b16 %v3382
    %v4493 = vunpack.c.l.b16 %v3383
    %v4494 = vunpack.c.h.b16 %v3383
    %v4495 = vunpack.c.l.b16 %v3384
    %v4496 = vunpack.c.h.b16 %v3384
    %v4497 = vunpack.c.l.b16 %v3385
    %v4498 = vunpack.c.l.b16 %v3386
    %v4499 = vunpack.c.h.b16 %v3386
    %v4500 = vunpack.c.l.b16 %v3387
    %v4501 = vunpack.c.h.b16 %v3387
    %v4502 = vunpack.c.l.b16 %v3388
    %v4503 = vunpack.c.h.b16 %v3388
    %v4504 = vunpack.c.l.b16 %v3389
    %v4505 = vunpack.c.l.b16 %v3390
    %v4506 = vunpack.c.h.b16 %v3390
    %v4507 = vunpack.c.l.b16 %v3391
    %v4508 = vunpack.c.h.b16 %v3391
    %v4509 = vunpack.c.l.b16 %v3392
    %v4510 = vunpack.c.h.b16 %v3392
    %v4511 = vunpack.c.l.b16 %v3393
    %v4512 = vunpack.c.l.b16 %v3394
    %v4513 = vunpack.c.h.b16 %v3394
    %v4514 = vunpack.c.l.b16 %v3395
    %v4515 = vunpack.c.h.b16 %v3395
    %v4516 = vunpack.c.l.b16 %v3396
    %v4517 = vunpack.c.h.b16 %v3396
    %v4518 = vunpack.c.l.b16 %v3397
    %v4519 = vunpack.c.l.b16 %v3398
    %v4520 = vunpack.c.h.b16 %v3398
    %v4521 = vunpack.c.l.b16 %v3399
    %v4522 = vunpack.c.h.b16 %v3399
    %v4523 = vunpack.c.l.b16 %v3400
    %v4524 = vunpack.c.h.b16 %v3400
    %v4525 = vunpack.c.l.b16 %v3401
    %v4526 = vunpack.c.l.b16 %v3402
    %v4527 = vunpack.c.h.b16 %v3402
    %v4528 = vunpack.c.l.b16 %v3403
    %v4529 = vunpack.c.h.b16 %v3403
    %v4530 = vunpack.c.l.b16 %v3404
    %v4531 = vunpack.c.h.b16 %v3404
    %v4532 = vunpack.c.l.b16 %v3405
    %v4533 = vunpack.c.l.b16 %v3406
    %v4534 = vunpack.c.h.b16 %v3406
    %v4535 = vunpack.c.l.b16 %v3407
    %v4536 = vunpack.c.h.b16 %v3407
    %v4537 = vunpack.c.l.b16 %v3408
    %v4538 = vunpack.c.h.b16 %v3408
    %v4539 = vunpack.c.l.b16 %v3409
    %v4540 = vunpack.c.l.b16 %v3410
    %v4541 = vunpack.c.h.b16 %v3410
    %v4542 = vunpack.c.l.b16 %v3411
    %v4543 = vunpack.c.h.b16 %v3411
    %v4544 = vunpack.c.l.b16 %v3412
    %v4545 = vunpack.c.h.b16 %v3412
    %v4546 = vunpack.c.l.b16 %v3413
    %v4547 = vunpack.c.l.b16 %v3414
    %v4548 = vunpack.c.h.b16 %v3414
    %v4549 = vunpack.c.l.b16 %v3415
    %v4550 = vunpack.c.h.b16 %v3415
    %v4551 = vunpack.c.l.b16 %v3416
    %v4552 = vunpack.c.h.b16 %v3416
    %v4553 = vunpack.c.l.b16 %v3417
    %v4554 = vunpack.c.l.b16 %v3418
    %v4555 = vunpack.c.h.b16 %v3418
    %v4556 = vunpack.c.l.b16 %v3419
    %v4557 = vunpack.c.h.b16 %v3419
    %v4558 = vunpack.c.l.b16 %v3420
    %v4559 = vunpack.c.h.b16 %v3420
    %v4560 = vunpack.c.l.b16 %v3421
    %v4561 = vunpack.c.l.b16 %v3422
    %v4562 = vunpack.c.h.b16 %v3422
    %v4563 = vunpack.c.l.b16 %v3423
    %v4564 = vunpack.c.h.b16 %v3423
    %v4565 = vunpack.c.l.b16 %v3424
    %v4566 = vunpack.c.h.b16 %v3424
    %v4567 = vunpack.c.l.b16 %v3425
    %v4568 = vunpack.c.l.b16 %v3426
    %v4569 = vunpack.c.h.b16 %v3426
    %v4570 = vunpack.c.l.b16 %v3427
    %v4571 = vunpack.c.h.b16 %v3427
    %v4572 = vunpack.c.l.b16 %v3428
    %v4573 = vunpack.c.h.b16 %v3428
    %v4574 = vunpack.c.l.b16 %v3429
    %v4575 = vunpack.c.l.b16 %v3430
    %v4576 = vunpack.c.h.b16 %v3430
    %v4577 = vunpack.c.l.b16 %v3431
    %v4578 = vunpack.c.h.b16 %v3431
    %v4579 = vunpack.c.l.b16 %v3432
    %v4580 = vunpack.c.h.b16 %v3432
    %v4581 = vunpack.c.l.b16 %v3433
    %v4582 = vunpack.c.l.b16 %v3434
    %v4583 = vunpack.c.h.b16 %v3434
    %v4584 = vunpack.c.l.b16 %v3435
    %v4585 = vunpack.c.h.b16 %v3435
    %v4586 = vunpack.c.l.b16 %v3436
    %v4587 = vunpack.c.h.b16 %v3436
    %v4588 = vunpack.c.l.b16 %v3437
    %v4589 = vunpack.c.l.b16 %v3438
    %v4590 = vunpack.c.h.b16 %v3438
    %v4591 = vunpack.c.l.b16 %v3439
    %v4592 = vunpack.c.h.b16 %v3439
    %v4593 = vunpack.c.l.b16 %v3440
    %v4594 = vunpack.c.h.b16 %v3440
    %v4595 = vunpack.c.l.b16 %v3441
    %v4596 = vunpack.c.l.b16 %v3442
    %v4597 = vunpack.c.h.b16 %v3442
    %v4598 = vunpack.c.l.b16 %v3443
    %v4599 = vunpack.c.h.b16 %v3443
    %v4600 = vunpack.c.l.b16 %v3444
    %v4601 = vunpack.c.h.b16 %v3444
    %v4602 = vunpack.c.l.b16 %v3445
    %v4603 = vunpack.c.l.b16 %v3446
    %v4604 = vunpack.c.h.b16 %v3446
    %v4605 = vunpack.c.l.b16 %v3447
    %v4606 = vunpack.c.h.b16 %v3447
    %v4607 = vunpack.c.l.b16 %v3448
    %v4608 = vunpack.c.h.b16 %v3448
    %v4609 = vunpack.c.l.b16 %v3449
    %v4610 = vunpack.c.l.b16 %v3450
    %v4611 = vunpack.c.h.b16 %v3450
    %v4612 = vunpack.c.l.b16 %v3451
    %v4613 = vunpack.c.h.b16 %v3451
    %v4614 = vunpack.c.l.b16 %v3452
    %v4615 = vunpack.c.h.b16 %v3452
    %v4616 = vunpack.c.l.b16 %v3453
    %v4617 = vunpack.c.l.b16 %v3454
    %v4618 = vunpack.c.h.b16 %v3454
    %v4619 = vunpack.c.l.b16 %v3455
    %v4620 = vunpack.c.h.b16 %v3455
    %v4621 = vunpack.c.l.b16 %v3456
    %v4622 = vunpack.c.h.b16 %v3456
    %v4623 = vunpack.c.l.b16 %v3457
    %v4624 = vunpack.c.l.b16 %v3458
    %v4625 = vunpack.c.h.b16 %v3458
    %v4626 = vunpack.c.l.b16 %v3459
    %v4627 = vunpack.c.h.b16 %v3459
    %v4628 = vunpack.c.l.b16 %v3460
    %v4629 = vunpack.c.h.b16 %v3460
    %v4630 = vunpack.c.l.b16 %v3461
    %v4631 = vunpack.c.l.b16 %v3462
    %v4632 = vunpack.c.h.b16 %v3462
    %v4633 = vunpack.c.l.b16 %v3463
    %v4634 = vunpack.c.h.b16 %v3463
    %v4635 = vunpack.c.l.b16 %v3464
    %v4636 = vunpack.c.h.b16 %v3464
    %v4637 = vunpack.c.l.b16 %v3465
    %v4638 = vunpack.c.l.b16 %v3466
    %v4639 = vunpack.c.h.b16 %v3466
    %v4640 = vunpack.c.l.b16 %v3467
    %v4641 = vunpack.c.h.b16 %v3467
    %v4642 = vunpack.c.l.b16 %v3468
    %v4643 = vunpack.c.h.b16 %v3468
    %v4644 = vunpack.c.l.b16 %v3469
    %v4645 = vunpack.c.l.b16 %v3470
    %v4646 = vunpack.c.h.b16 %v3470
    %v4647 = vunpack.c.l.b16 %v3471
    %v4648 = vunpack.c.h.b16 %v3471
    %v4649 = vunpack.c.l.b16 %v3472
    %v4650 = vunpack.c.h.b16 %v3472
    %v4651 = vunpack.c.l.b16 %v3473
    %v4652 = vunpack.c.l.b16 %v3474
    %v4653 = vunpack.c.h.b16 %v3474
    %v4654 = vunpack.c.l.b16 %v3475
    %v4655 = vunpack.c.h.b16 %v3475
    %v4656 = vunpack.c.l.b16 %v3476
    %v4657 = vunpack.c.h.b16 %v3476
    %v4658 = vunpack.c.l.b16 %v3477
    %v4659 = vunpack.c.l.b16 %v3478
    %v4660 = vunpack.c.h.b16 %v3478
    %v4661 = vunpack.c.l.b16 %v3479
    %v4662 = vunpack.c.h.b16 %v3479
    %v4663 = vunpack.c.l.b16 %v3480
    %v4664 = vunpack.c.h.b16 %v3480
    %v4665 = vunpack.c.l.b16 %v3481
    %v4666 = vunpack.c.l.b16 %v3482
    %v4667 = vunpack.c.h.b16 %v3482
    %v4668 = vunpack.c.l.b16 %v3483
    %v4669 = vunpack.c.h.b16 %v3483
    %v4670 = vunpack.c.l.b16 %v3484
    %v4671 = vunpack.c.h.b16 %v3484
    %v4672 = vunpack.c.l.b16 %v3485
    %v4673 = vunpack.c.l.b16 %v3486
    %v4674 = vunpack.c.h.b16 %v3486
    %v4675 = vunpack.c.l.b16 %v3487
    %v4676 = vunpack.c.h.b16 %v3487
    %v4677 = vunpack.c.l.b16 %v3488
    %v4678 = vunpack.c.h.b16 %v3488
    %v4679 = vunpack.c.l.b16 %v3489
    %v4680 = vunpack.c.l.b16 %v3490
    %v4681 = vunpack.c.h.b16 %v3490
    %v4682 = vunpack.c.l.b16 %v3491
    %v4683 = vunpack.c.h.b16 %v3491
    %v4684 = vunpack.c.l.b16 %v3492
    %v4685 = vunpack.c.h.b16 %v3492
    %v4686 = vunpack.c.l.b16 %v3493
    %v4687 = vunpack.c.l.b16 %v3494
    %v4688 = vunpack.c.h.b16 %v3494
    %v4689 = vunpack.c.l.b16 %v3495
    %v4690 = vunpack.c.h.b16 %v3495
    %v4691 = vunpack.c.l.b16 %v3496
    %v4692 = vunpack.c.h.b16 %v3496
    %v4693 = vunpack.c.l.b16 %v3497
    %v4694 = vunpack.c.l.b16 %v3498
    %v4695 = vunpack.c.h.b16 %v3498
    %v4696 = vunpack.c.l.b16 %v3499
    %v4697 = vunpack.c.h.b16 %v3499
    %v4698 = vunpack.c.l.b16 %v3500
    %v4699 = vunpack.c.h.b16 %v3500
    %v4700 = vunpack.c.l.b16 %v3501
    %v4701 = vunpack.c.l.b16 %v3502
    %v4702 = vunpack.c.h.b16 %v3502
    %v4703 = vunpack.c.l.b16 %v3503
    %v4704 = vunpack.c.h.b16 %v3503
    %v4705 = vunpack.c.l.b16 %v3504
    %v4706 = vunpack.c.h.b16 %v3504
    %v4707 = vunpack.c.l.b16 %v3505
    %v4708 = vunpack.c.l.b16 %v3506
    %v4709 = vunpack.c.h.b16 %v3506
    %v4710 = vunpack.c.l.b16 %v3507
    %v4711 = vunpack.c.h.b16 %v3507
    %v4712 = vunpack.c.l.b16 %v3508
    %v4713 = vunpack.c.h.b16 %v3508
    %v4714 = vunpack.c.l.b16 %v3509
    %v4715 = vunpack.c.l.b16 %v3510
    %v4716 = vunpack.c.h.b16 %v3510
    %v4717 = vunpack.c.l.b16 %v3511
    %v4718 = vunpack.c.h.b16 %v3511
    %v4719 = vunpack.c.l.b16 %v3512
    %v4720 = vunpack.c.h.b16 %v3512
    %v4721 = vunpack.c.l.b16 %v3513
    %v4722 = vunpack.c.l.b16 %v3514
    %v4723 = vunpack.c.h.b16 %v3514
    %v4724 = vunpack.c.l.b16 %v3515
    %v4725 = vunpack.c.h.b16 %v3515
    %v4726 = vunpack.c.l.b16 %v3516
    %v4727 = vunpack.c.h.b16 %v3516
    %v4728 = vunpack.c.l.b16 %v3517
    %v4729 = vunpack.c.l.b16 %v3518
    %v4730 = vunpack.c.h.b16 %v3518
    %v4731 = vunpack.c.l.b16 %v3519
    %v4732 = vunpack.c.h.b16 %v3519
    %v4733 = vunpack.c.l.b16 %v3520
    %v4734 = vunpack.c.h.b16 %v3520
    %v4735 = vunpack.c.l.b16 %v3521
    %v4736 = vunpack.c.l.b16 %v3522
    %v4737 = vunpack.c.h.b16 %v3522
    %v4738 = vunpack.c.l.b16 %v3523
    %v4739 = vunpack.c.h.b16 %v3523
    %v4740 = vunpack.c.l.b16 %v3524
    %v4741 = vunpack.c.h.b16 %v3524
    %v4742 = vunpack.c.l.b16 %v3525
    %v4743 = vunpack.c.l.b16 %v3526
    %v4744 = vunpack.c.h.b16 %v3526
    %v4745 = vunpack.c.l.b16 %v3527
    %v4746 = vunpack.c.h.b16 %v3527
    %v4747 = vunpack.c.l.b16 %v3528
    %v4748 = vunpack.c.h.b16 %v3528
    %v4749 = vunpack.c.l.b16 %v3529
    %v4750 = vunpack.c.l.b16 %v3530
    %v4751 = vunpack.c.h.b16 %v3530
    %v4752 = vunpack.c.l.b16 %v3531
    %v4753 = vunpack.c.h.b16 %v3531
    %v4754 = vunpack.c.l.b16 %v3532
    %v4755 = vunpack.c.h.b16 %v3532
    %v4756 = vunpack.c.l.b16 %v3533
    %v4757 = vunpack.c.l.b16 %v3534
    %v4758 = vunpack.c.h.b16 %v3534
    %v4759 = vunpack.c.l.b16 %v3535
    %v4760 = vunpack.c.h.b16 %v3535
    %v4761 = vunpack.c.l.b16 %v3536
    %v4762 = vunpack.c.h.b16 %v3536
    %v4763 = vunpack.c.l.b16 %v3537
    %v4764 = vunpack.c.l.b16 %v3538
    %v4765 = vunpack.c.h.b16 %v3538
    %v4766 = vunpack.c.l.b16 %v3539
    %v4767 = vunpack.c.h.b16 %v3539
    %v4768 = vunpack.c.l.b16 %v3540
    %v4769 = vunpack.c.h.b16 %v3540
    %v4770 = vunpack.c.l.b16 %v3541
    %v4771 = vunpack.c.l.b16 %v3542
    %v4772 = vunpack.c.h.b16 %v3542
    %v4773 = vunpack.c.l.b16 %v3543
    %v4774 = vunpack.c.h.b16 %v3543
    %v4775 = vunpack.c.l.b16 %v3544
    %v4776 = vunpack.c.h.b16 %v3544
    %v4777 = vunpack.c.l.b16 %v3545
    %v4778 = vunpack.c.l.b16 %v3546
    %v4779 = vunpack.c.h.b16 %v3546
    %v4780 = vunpack.c.l.b16 %v3547
    %v4781 = vunpack.c.h.b16 %v3547
    %v4782 = vunpack.c.l.b16 %v3548
    %v4783 = vunpack.c.h.b16 %v3548
    %v4784 = vunpack.c.l.b16 %v3549
    %v4785 = vunpack.c.l.b16 %v3550
    %v4786 = vunpack.c.h.b16 %v3550
    %v4787 = vunpack.c.l.b16 %v3551
    %v4788 = vunpack.c.h.b16 %v3551
    %v4789 = vunpack.c.l.b16 %v3552
    %v4790 = vunpack.c.h.b16 %v3552
    %v4791 = vunpack.c.l.b16 %v3553
    %v4792 = vunpack.c.l.b16 %v3554
    %v4793 = vunpack.c.h.b16 %v3554
    %v4794 = vunpack.c.l.b16 %v3555
    %v4795 = vunpack.c.h.b16 %v3555
    %v4796 = vunpack.c.l.b16 %v3556
    %v4797 = vunpack.c.h.b16 %v3556
    %v4798 = vunpack.c.l.b16 %v3557
    %v4799 = vunpack.c.l.b16 %v3558
    %v4800 = vunpack.c.h.b16 %v3558
    %v4801 = vunpack.c.l.b16 %v3559
    %v4802 = vunpack.c.h.b16 %v3559
    %v4803 = vunpack.c.l.b16 %v3560
    %v4804 = vunpack.c.h.b16 %v3560
    %v4805 = vunpack.c.l.b16 %v3561
    %v4806 = vunpack.c.l.b16 %v3562
    %v4807 = vunpack.c.h.b16 %v3562
    %v4808 = vunpack.c.l.b16 %v3563
    %v4809 = vunpack.c.h.b16 %v3563
    %v4810 = vunpack.c.l.b16 %v3564
    %v4811 = vunpack.c.h.b16 %v3564
    %v4812 = vunpack.c.l.b16 %v3565
    %v4813 = vunpack.c.l.b16 %v3566
    %v4814 = vunpack.c.h.b16 %v3566
    %v4815 = vunpack.c.l.b16 %v3567
    %v4816 = vunpack.c.h.b16 %v3567
    %v4817 = vunpack.c.l.b16 %v3568
    %v4818 = vunpack.c.h.b16 %v3568
    %v4819 = vunpack.c.l.b16 %v3569
    %v4820 = vunpack.c.l.b16 %v3570
    %v4821 = vunpack.c.h.b16 %v3570
    %v4822 = vunpack.c.l.b16 %v3571
    %v4823 = vunpack.c.h.b16 %v3571
    %v4824 = vunpack.c.l.b16 %v3572
    %v4825 = vunpack.c.h.b16 %v3572
    %v4826 = vunpack.c.l.b16 %v3573
    %v4827 = vunpack.c.l.b16 %v3574
    %v4828 = vunpack.c.h.b16 %v3574
    %v4829 = vunpack.c.l.b16 %v3575
    %v4830 = vunpack.c.h.b16 %v3575
    %v4831 = vunpack.c.l.b16 %v3576
    %v4832 = vunpack.c.h.b16 %v3576
    %v4833 = vunpack.c.l.b16 %v3577
    %v4834 = vunpack.c.l.b16 %v3578
    %v4835 = vunpack.c.h.b16 %v3578
    %v4836 = vunpack.c.l.b16 %v3579
    %v4837 = vunpack.c.h.b16 %v3579
    %v4838 = vunpack.c.l.b16 %v3580
    %v4839 = vunpack.c.h.b16 %v3580
    %v4840 = vunpack.c.l.b16 %v3581
    %v4841 = vunpack.c.l.b16 %v3582
    %v4842 = vunpack.c.h.b16 %v3582
    %v4843 = vunpack.c.l.b16 %v3583
    %v4844 = vunpack.c.h.b16 %v3583
    %v4845 = vunpack.c.l.b16 %v3584
    %v4846 = vunpack.c.h.b16 %v3584
    %v4847 = vunpack.c.l.b16 %v3585
    %v4848 = vunpack.c.l.b16 %v3586
    %v4849 = vunpack.c.h.b16 %v3586
    %v4850 = vunpack.c.l.b16 %v3587
    %v4851 = vunpack.c.h.b16 %v3587
    %v4852 = vunpack.c.l.b16 %v3588
    %v4853 = vunpack.c.h.b16 %v3588
    %v4854 = vunpack.c.l.b16 %v3589
    %v4855 = vunpack.c.l.b16 %v3590
    %v4856 = vunpack.c.h.b16 %v3590
    %v4857 = vunpack.c.l.b16 %v3591
    %v4858 = vunpack.c.h.b16 %v3591
    %v4859 = vunpack.c.l.b16 %v3592
    %v4860 = vunpack.c.h.b16 %v3592
    %v4861 = vunpack.c.l.b16 %v3593
    %v4862 = vunpack.c.l.b16 %v3594
    %v4863 = vunpack.c.h.b16 %v3594
    %v4864 = vunpack.c.l.b16 %v3595
    %v4865 = vunpack.c.h.b16 %v3595
    %v4866 = vunpack.c.l.b16 %v3596
    %v4867 = vunpack.c.h.b16 %v3596
    %v4868 = vunpack.c.l.b16 %v3597
    %v4869 = vunpack.c.l.b16 %v3598
    %v4870 = vunpack.c.h.b16 %v3598
    %v4871 = vunpack.c.l.b16 %v3599
    %v4872 = vunpack.c.h.b16 %v3599
    %v4873 = vunpack.c.l.b16 %v3600
    %v4874 = vunpack.c.h.b16 %v3600
    %v4875 = vunpack.c.l.b16 %v3601
    %v4876 = vunpack.c.l.b16 %v3602
    %v4877 = vunpack.c.h.b16 %v3602
    %v4878 = vunpack.c.l.b16 %v3603
    %v4879 = vunpack.c.h.b16 %v3603
    %v4880 = vunpack.c.l.b16 %v3604
    %v4881 = vunpack.c.h.b16 %v3604
    %v4882 = vunpack.c.l.b16 %v3605
    %v4883 = vunpack.c.l.b16 %v3606
    %v4884 = vunpack.c.h.b16 %v3606
    %v4885 = vunpack.c.l.b16 %v3607
    %v4886 = vunpack.c.h.b16 %v3607
    %v4887 = vunpack.c.l.b16 %v3608
    %v4888 = vunpack.c.h.b16 %v3608
    %v4889 = vunpack.c.l.b16 %v3609
    %v4890 = vunpack.c.l.b16 %v3610
    %v4891 = vunpack.c.h.b16 %v3610
    %v4892 = vunpack.c.l.b16 %v3611
    %v4893 = vunpack.c.h.b16 %v3611
    %v4894 = vunpack.c.l.b16 %v3612
    %v4895 = vunpack.c.h.b16 %v3612
    %v4896 = vunpack.c.l.b16 %v3613
    %v4897 = vunpack.c.l.b16 %v3614
    %v4898 = vunpack.c.h.b16 %v3614
    %v4899 = vunpack.c.l.b16 %v3615
    %v4900 = vunpack.c.h.b16 %v3615
    %v4901 = vunpack.c.l.b16 %v3616
    %v4902 = vunpack.c.h.b16 %v3616
    %v4903 = vunpack.c.l.b16 %v3617
    %v4904 = vunpack.c.l.b16 %v3618
    %v4905 = vunpack.c.h.b16 %v3618
    %v4906 = vunpack.c.l.b16 %v3619
    %v4907 = vunpack.c.h.b16 %v3619
    %v4908 = vunpack.c.l.b16 %v3620
    %v4909 = vunpack.c.h.b16 %v3620
    %v4910 = vunpack.c.l.b16 %v3621
    %v4911 = vunpack.c.l.b16 %v3622
    %v4912 = vunpack.c.h.b16 %v3622
    %v4913 = vunpack.c.l.b16 %v3623
    %v4914 = vunpack.c.h.b16 %v3623
    %v4915 = vunpack.c.l.b16 %v3624
    %v4916 = vunpack.c.h.b16 %v3624
    %v4917 = vunpack.c.l.b16 %v3625
    %v4918 = vunpack.c.l.b16 %v3626
    %v4919 = vunpack.c.h.b16 %v3626
    %v4920 = vunpack.c.l.b16 %v3627
    %v4921 = vunpack.c.h.b16 %v3627
    %v4922 = vunpack.c.l.b16 %v3628
    %v4923 = vunpack.c.h.b16 %v3628
    %v4924 = vunpack.c.l.b16 %v3629
    %v4925 = vunpack.c.l.b16 %v3630
    %v4926 = vunpack.c.h.b16 %v3630
    %v4927 = vunpack.c.l.b16 %v3631
    %v4928 = vunpack.c.h.b16 %v3631
    %v4929 = vunpack.c.l.b16 %v3632
    %v4930 = vunpack.c.h.b16 %v3632
    %v4931 = vunpack.c.l.b16 %v3633
    %v4932 = vunpack.c.l.b16 %v3634
    %v4933 = vunpack.c.h.b16 %v3634
    %v4934 = vunpack.c.l.b16 %v3635
    %v4935 = vunpack.c.h.b16 %v3635
    %v4936 = vunpack.c.l.b16 %v3636
    %v4937 = vunpack.c.h.b16 %v3636
    %v4938 = vunpack.c.l.b16 %v3637
    %v4939 = vunpack.c.l.b16 %v3638
    %v4940 = vunpack.c.h.b16 %v3638
    %v4941 = vunpack.c.l.b16 %v3639
    %v4942 = vunpack.c.h.b16 %v3639
    %v4943 = vunpack.c.l.b16 %v3640
    %v4944 = vunpack.c.h.b16 %v3640
    %v4945 = vunpack.c.l.b16 %v3641
    %v4946 = vunpack.c.l.b16 %v3642
    %v4947 = vunpack.c.h.b16 %v3642
    %v4948 = vunpack.c.l.b16 %v3643
    %v4949 = vunpack.c.h.b16 %v3643
    %v4950 = vunpack.c.l.b16 %v3644
    %v4951 = vunpack.c.h.b16 %v3644
    %v4952 = vunpack.c.l.b16 %v3645
    %v4953 = vunpack.c.l.b16 %v3646
    %v4954 = vunpack.c.h.b16 %v3646
    %v4955 = vunpack.c.l.b16 %v3647
    %v4956 = vunpack.c.h.b16 %v3647
    %v4957 = vunpack.c.l.b16 %v3648
    %v4958 = vunpack.c.h.b16 %v3648
    %v4959 = vunpack.c.l.b16 %v3649
    %v4960 = vunpack.c.l.b16 %v3650
    %v4961 = vunpack.c.h.b16 %v3650
    %v4962 = vunpack.c.l.b16 %v3651
    %v4963 = vunpack.c.h.b16 %v3651
    %v4964 = vunpack.c.l.b16 %v3652
    %v4965 = vunpack.c.h.b16 %v3652
    %v4966 = vunpack.c.l.b16 %v3653
    %v4967 = vunpack.c.l.b16 %v3654
    %v4968 = vunpack.c.h.b16 %v3654
    %v4969 = vunpack.c.l.b16 %v3655
    %v4970 = vunpack.c.h.b16 %v3655
    %v4971 = vunpack.c.l.b16 %v3656
    %v4972 = vunpack.c.h.b16 %v3656
    %v4973 = vunpack.c.l.b16 %v3657
    %v4974 = vunpack.c.l.b16 %v3658
    %v4975 = vunpack.c.h.b16 %v3658
    %v4976 = vunpack.c.l.b16 %v3659
    %v4977 = vunpack.c.h.b16 %v3659
    %v4978 = vunpack.c.l.b16 %v3660
    %v4979 = vunpack.c.h.b16 %v3660
    %v4980 = vunpack.c.l.b16 %v3661
    %v4981 = vunpack.c.l.b16 %v3662
    %v4982 = vunpack.c.h.b16 %v3662
    %v4983 = vunpack.c.l.b16 %v3663
    %v4984 = vunpack.c.h.b16 %v3663
    %v4985 = vunpack.c.l.b16 %v3664
    %v4986 = vunpack.c.h.b16 %v3664
    %v4987 = vunpack.c.l.b16 %v3665
    %v4988 = vunpack.c.l.b16 %v3666
    %v4989 = vunpack.c.h.b16 %v3666
    %v4990 = vunpack.c.l.b16 %v3667
    %v4991 = vunpack.c.h.b16 %v3667
    %v4992 = vunpack.c.l.b16 %v3668
    %v4993 = vunpack.c.h.b16 %v3668
    %v4994 = vunpack.c.l.b16 %v3669
    %v4995 = vunpack.c.l.b16 %v3670
    %v4996 = vunpack.c.h.b16 %v3670
    %v4997 = vunpack.c.l.b16 %v3671
    %v4998 = vunpack.c.h.b16 %v3671
    %v4999 = vunpack.c.l.b16 %v3672
    %v5000 = vunpack.c.h.b16 %v3672
    %v5001 = vunpack.c.l.b16 %v3673
    %v5002 = vunpack.c.l.b16 %v3674
    %v5003 = vunpack.c.h.b16 %v3674
    %v5004 = vunpack.c.l.b16 %v3675
    %v5005 = vunpack.c.h.b16 %v3675
    %v5006 = vunpack.c.l.b16 %v3676
    %v5007 = vunpack.c.h.b16 %v3676
    %v5008 = vunpack.c.l.b16 %v3677
    %v5009 = vunpack.c.l.b16 %v3678
    %v5010 = vunpack.c.h.b16 %v3678
    %v5011 = vunpack.c.l.b16 %v3679
    %v5012 = vunpack.c.h.b16 %v3679
    %v5013 = vunpack.c.l.b16 %v3680
    %v5014 = vunpack.c.h.b16 %v3680
    %v5015 = vunpack.c.l.b16 %v3681
    %v5016 = vunpack.c.l.b16 %v3682
    %v5017 = vunpack.c.h.b16 %v3682
    %v5018 = vunpack.c.l.b16 %v3683
    %v5019 = vunpack.c.h.b16 %v3683
    %v5020 = vunpack.c.l.b16 %v3684
    %v5021 = vunpack.c.h.b16 %v3684
    %v5022 = vunpack.c.l.b16 %v3685
    %v5023 = vunpack.c.l.b16 %v3686
    %v5024 = vunpack.c.h.b16 %v3686
    %v5025 = vunpack.c.l.b16 %v3687
    %v5026 = vunpack.c.h.b16 %v3687
    %v5027 = vunpack.c.l.b16 %v3688
    %v5028 = vunpack.c.h.b16 %v3688
    %v5029 = vunpack.c.l.b16 %v3689
    %v5030 = vunpack.c.l.b16 %v3690
    %v5031 = vunpack.c.h.b16 %v3690
    %v5032 = vunpack.c.l.b16 %v3691
    %v5033 = vunpack.c.h.b16 %v3691
    %v5034 = vunpack.c.l.b16 %v3692
    %v5035 = vunpack.c.h.b16 %v3692
    %v5036 = vunpack.c.l.b16 %v3693
    %v5037 = vunpack.c.l.b16 %v3694
    %v5038 = vunpack.c.h.b16 %v3694
    %v5039 = vunpack.c.l.b16 %v3695
    %v5040 = vunpack.c.h.b16 %v3695
    %v5041 = vunpack.c.l.b16 %v3696
    %v5042 = vunpack.c.h.b16 %v3696
    %v5043 = vunpack.c.l.b16 %v3697
    %v5044 = vunpack.c.l.b16 %v3698
    %v5045 = vunpack.c.h.b16 %v3698
    %v5046 = vunpack.c.l.b16 %v3699
    %v5047 = vunpack.c.h.b16 %v3699
    %v5048 = vunpack.c.l.b16 %v3700
    %v5049 = vunpack.c.h.b16 %v3700
    %v5050 = vunpack.c.l.b16 %v3701
    %v5051 = vunpack.c.l.b16 %v3702
    %v5052 = vunpack.c.h.b16 %v3702
    %v5053 = vunpack.c.l.b16 %v3703
    %v5054 = vunpack.c.h.b16 %v3703
    %v5055 = vunpack.c.l.b16 %v3704
    %v5056 = vunpack.c.h.b16 %v3704
    %v5057 = vunpack.c.l.b16 %v3705
    %v5058 = vunpack.c.l.b16 %v3706
    %v5059 = vunpack.c.h.b16 %v3706
    %v5060 = vunpack.c.l.b16 %v3707
    %v5061 = vunpack.c.h.b16 %v3707
    %v5062 = vunpack.c.l.b16 %v3708
    %v5063 = vunpack.c.h.b16 %v3708
    %v5064 = vunpack.c.l.b16 %v3709
    %v5065 = vunpack.c.l.b16 %v3710
    %v5066 = vunpack.c.h.b16 %v3710
    %v5067 = vunpack.c.l.b16 %v3711
    %v5068 = vunpack.c.h.b16 %v3711
    %v5069 = vunpack.c.l.b16 %v3712
    %v5070 = vunpack.c.h.b16 %v3712
    %v5071 = vunpack.c.l.b16 %v3713
    %v5072 = vunpack.c.l.b16 %v3714
    %v5073 = vunpack.c.h.b16 %v3714
    %v5074 = vunpack.c.l.b16 %v3715
    %v5075 = vunpack.c.h.b16 %v3715
    %v5076 = vunpack.c.l.b16 %v3716
    %v5077 = vunpack.c.h.b16 %v3716
    %v5078 = vunpack.c.l.b16 %v3717
    %v5079 = vunpack.c.l.b16 %v3718
    %v5080 = vunpack.c.h.b16 %v3718
    %v5081 = vunpack.c.l.b16 %v3719
    %v5082 = vunpack.c.h.b16 %v3719
    %v5083 = vunpack.c.l.b16 %v3720
    %v5084 = vunpack.c.h.b16 %v3720
    %v5085 = vunpack.c.l.b16 %v3721
    %v5086 = vunpack.c.l.b16 %v3722
    %v5087 = vunpack.c.h.b16 %v3722
    %v5088 = vunpack.c.l.b16 %v3723
    %v5089 = vunpack.c.h.b16 %v3723
    %v5090 = vunpack.c.l.b16 %v3724
    %v5091 = vunpack.c.h.b16 %v3724
    %v5092 = vunpack.c.l.b16 %v3725
    %v5093 = vunpack.c.l.b16 %v3726
    %v5094 = vunpack.c.h.b16 %v3726
    %v5095 = vunpack.c.l.b16 %v3727
    %v5096 = vunpack.c.h.b16 %v3727
    %v5097 = vunpack.c.l.b16 %v3728
    %v5098 = vunpack.c.h.b16 %v3728
    %v5099 = vunpack.c.l.b16 %v3729
    %v5100 = vunpack.c.l.b16 %v3730
    %v5101 = vunpack.c.h.b16 %v3730
    %v5102 = vunpack.c.l.b16 %v3731
    %v5103 = vunpack.c.h.b16 %v3731
    %v5104 = vunpack.c.l.b16 %v3732
    %v5105 = vunpack.c.h.b16 %v3732
    %v5106 = vunpack.c.l.b16 %v3733
    %v5107 = vunpack.c.l.b16 %v3734
    %v5108 = vunpack.c.h.b16 %v3734
    %v5109 = vunpack.c.l.b16 %v3735
    %v5110 = vunpack.c.h.b16 %v3735
    %v5111 = vunpack.c.l.b16 %v3736
    %v5112 = vunpack.c.h.b16 %v3736
    %v5113 = vunpack.c.l.b16 %v3737
    %v5114 = vunpack.c.l.b16 %v3738
    %v5115 = vunpack.c.h.b16 %v3738
    %v5116 = vunpack.c.l.b16 %v3739
    %v5117 = vunpack.c.h.b16 %v3739
    %v5118 = vunpack.c.l.b16 %v3740
    %v5119 = vunpack.c.h.b16 %v3740
    %v5120 = vunpack.c.l.b16 %v3741
    %v5121 = vunpack.c.l.b16 %v3742
    %v5122 = vunpack.c.h.b16 %v3742
    %v5123 = vunpack.c.l.b16 %v3743
    %v5124 = vunpack.c.h.b16 %v3743
    %v5125 = vunpack.c.l.b16 %v3744
    %v5126 = vunpack.c.h.b16 %v3744
    %v5127 = vunpack.c.l.b16 %v3745
    %v5128 = vunpack.c.l.b16 %v3746
    %v5129 = vunpack.c.h.b16 %v3746
    %v5130 = vunpack.c.l.b16 %v3747
    %v5131 = vunpack.c.h.b16 %v3747
    %v5132 = vunpack.c.l.b16 %v3748
    %v5133 = vunpack.c.h.b16 %v3748
    %v5134 = vunpack.c.l.b16 %v3749
    %v5135 = vunpack.c.l.b16 %v3750
    %v5136 = vunpack.c.h.b16 %v3750
    %v5137 = vunpack.c.l.b16 %v3751
    %v5138 = vunpack.c.h.b16 %v3751
    %v5139 = vunpack.c.l.b16 %v3752
    %v5140 = vunpack.c.h.b16 %v3752
    %v5141 = vunpack.c.l.b16 %v3753
    %v5142 = vunpack.c.l.b16 %v3754
    %v5143 = vunpack.c.h.b16 %v3754
    %v5144 = vunpack.c.l.b16 %v3755
    %v5145 = vunpack.c.h.b16 %v3755
    %v5146 = vunpack.c.l.b16 %v3756
    %v5147 = vunpack.c.h.b16 %v3756
    %v5148 = vunpack.c.l.b16 %v3757
    %v5149 = vunpack.c.l.b16 %v3758
    %v5150 = vunpack.c.h.b16 %v3758
    %v5151 = vunpack.c.l.b16 %v3759
    %v5152 = vunpack.c.h.b16 %v3759
    %v5153 = vunpack.c.l.b16 %v3760
    %v5154 = vunpack.c.h.b16 %v3760
    %v5155 = vunpack.c.l.b16 %v3761
    %v5156 = vunpack.c.l.b16 %v3762
    %v5157 = vunpack.c.h.b16 %v3762
    %v5158 = vunpack.c.l.b16 %v3763
    %v5159 = vunpack.c.h.b16 %v3763
    %v5160 = vunpack.c.l.b16 %v3764
    %v5161 = vunpack.c.h.b16 %v3764
    %v5162 = vunpack.c.l.b16 %v3765
    %v5163 = vunpack.c.l.b16 %v3766
    %v5164 = vunpack.c.h.b16 %v3766
    %v5165 = vunpack.c.l.b16 %v3767
    %v5166 = vunpack.c.h.b16 %v3767
    %v5167 = vunpack.c.l.b16 %v3768
    %v5168 = vunpack.c.h.b16 %v3768
    %v5169 = vunpack.c.l.b16 %v3769
    %v5170 = vunpack.c.l.b16 %v3770
    %v5171 = vunpack.c.h.b16 %v3770
    %v5172 = vunpack.c.l.b16 %v3771
    %v5173 = vunpack.c.h.b16 %v3771
    %v5174 = vunpack.c.l.b16 %v3772
    %v5175 = vunpack.c.h.b16 %v3772
    %v5176 = vunpack.c.l.b16 %v3773
    %v5177 = vunpack.c.l.b16 %v3774
    %v5178 = vunpack.c.h.b16 %v3774
    %v5179 = vunpack.c.l.b16 %v3775
    %v5180 = vunpack.c.h.b16 %v3775
    %v5181 = vunpack.c.l.b16 %v3776
    %v5182 = vunpack.c.h.b16 %v3776
    %v5183 = vunpack.c.l.b16 %v3777
    %v5184 = vunpack.c.l.b16 %v3778
    %v5185 = vunpack.c.h.b16 %v3778
    %v5186 = vunpack.c.l.b16 %v3779
    %v5187 = vunpack.c.h.b16 %v3779
    %v5188 = vunpack.c.l.b16 %v3780
    %v5189 = vunpack.c.h.b16 %v3780
    %v5190 = vunpack.c.l.b16 %v3781
    %v5191 = vunpack.c.l.b16 %v3782
    %v5192 = vunpack.c.h.b16 %v3782
    %v5193 = vunpack.c.l.b16 %v3783
    %v5194 = vunpack.c.h.b16 %v3783
    %v5195 = vunpack.c.l.b16 %v3784
    %v5196 = vunpack.c.h.b16 %v3784
    %v5197 = vunpack.c.l.b16 %v3785
    %v5198 = vunpack.c.l.b16 %v3786
    %v5199 = vunpack.c.h.b16 %v3786
    %v5200 = vunpack.c.l.b16 %v3787
    %v5201 = vunpack.c.h.b16 %v3787
    %v5202 = vunpack.c.l.b16 %v3788
    %v5203 = vunpack.c.h.b16 %v3788
    %v5204 = vunpack.c.l.b16 %v3789
    %v5205 = vunpack.c.l.b16 %v3790
    %v5206 = vunpack.c.h.b16 %v3790
    %v5207 = vunpack.c.l.b16 %v3791
    %v5208 = vunpack.c.h.b16 %v3791
    %v5209 = vunpack.c.l.b16 %v3792
    %v5210 = vunpack.c.h.b16 %v3792
    %v5211 = vunpack.c.l.b16 %v3793
    %v5212 = vunpack.c.l.b16 %v3794
    %v5213 = vunpack.c.h.b16 %v3794
    %v5214 = vunpack.c.l.b16 %v3795
    %v5215 = vunpack.c.h.b16 %v3795
    %v5216 = vunpack.c.l.b16 %v3796
    %v5217 = vunpack.c.h.b16 %v3796
    %v5218 = vunpack.c.l.b16 %v3797
    %v5219 = vunpack.c.l.b16 %v3798
    %v5220 = vunpack.c.h.b16 %v3798
    %v5221 = vunpack.c.l.b16 %v3799
    %v5222 = vunpack.c.h.b16 %v3799
    %v5223 = vunpack.c.l.b16 %v3800
    %v5224 = vunpack.c.h.b16 %v3800
    %v5225 = vunpack.c.l.b16 %v3801
    %v5226 = vunpack.c.l.b16 %v3802
    %v5227 = vunpack.c.h.b16 %v3802
    %v5228 = vunpack.c.l.b16 %v3803
    %v5229 = vunpack.c.h.b16 %v3803
    %v5230 = vunpack.c.l.b16 %v3804
    %v5231 = vunpack.c.h.b16 %v3804
    %v5232 = vunpack.c.l.b16 %v3805
    %v5233 = vunpack.c.l.b16 %v3806
    %v5234 = vunpack.c.h.b16 %v3806
    %v5235 = vunpack.c.l.b16 %v3807
    %v5236 = vunpack.c.h.b16 %v3807
    %v5237 = vunpack.c.l.b16 %v3808
    %v5238 = vunpack.c.h.b16 %v3808
    %v5239 = vunpack.c.l.b16 %v3809
    %v5240 = vunpack.c.l.b16 %v3810
    %v5241 = vunpack.c.h.b16 %v3810
    %v5242 = vunpack.c.l.b16 %v3811
    %v5243 = vunpack.c.h.b16 %v3811
    %v5244 = vunpack.c.l.b16 %v3812
    %v5245 = vunpack.c.h.b16 %v3812
    %v5246 = vunpack.c.l.b16 %v3813
    %v5247 = vunpack.c.l.b16 %v3814
    %v5248 = vunpack.c.h.b16 %v3814
    %v5249 = vunpack.c.l.b16 %v3815
    %v5250 = vunpack.c.h.b16 %v3815
    %v5251 = vunpack.c.l.b16 %v3816
    %v5252 = vunpack.c.h.b16 %v3816
    %v5253 = vunpack.c.l.b16 %v3817
    %v5254 = vunpack.c.l.b16 %v3818
    %v5255 = vunpack.c.h.b16 %v3818
    %v5256 = vunpack.c.l.b16 %v3819
    %v5257 = vunpack.c.h.b16 %v3819
    %v5258 = vunpack.c.l.b16 %v3820
    %v5259 = vunpack.c.h.b16 %v3820
    %v5260 = vunpack.c.l.b16 %v3821
    %v5261 = vunpack.c.l.b16 %v3822
    %v5262 = vunpack.c.h.b16 %v3822
    %v5263 = vunpack.c.l.b16 %v3823
    %v5264 = vunpack.c.h.b16 %v3823
    %v5265 = vunpack.c.l.b16 %v3824
    %v5266 = vunpack.c.h.b16 %v3824
    %v5267 = vunpack.c.l.b16 %v3825
    %v5268 = vunpack.c.l.b16 %v3826
    %v5269 = vunpack.c.h.b16 %v3826
    %v5270 = vunpack.c.l.b16 %v3827
    %v5271 = vunpack.c.h.b16 %v3827
    %v5272 = vunpack.c.l.b16 %v3828
    %v5273 = vunpack.c.h.b16 %v3828
    %v5274 = vunpack.c.l.b16 %v3829
    %v5275 = vpack.c.b16 %v4386, %v4379
    %v5276 = vpack.c.b16 %v4387, %v4380
    %v5277 = vpack.c.b16 %v4388, %v4381
    %v5278 = vpack.c.b16 %v4389, %v4382
    %v5279 = vpack.c.b16 %v4390, %v4383
    %v5280 = vpack.c.b16 %v4391, %v4384
    %v5281 = vpack.c.b16 %v4392, %v4385
    %v5282 = vpack.c.b16 %v4400, %v4393
    %v5283 = vpack.c.b16 %v4401, %v4394
    %v5284 = vpack.c.b16 %v4402, %v4395
    %v5285 = vpack.c.b16 %v4403, %v4396
    %v5286 = vpack.c.b16 %v4404, %v4397
    %v5287 = vpack.c.b16 %v4405, %v4398
    %v5288 = vpack.c.b16 %v4406, %v4399
    %v5289 = vpack.c.b16 %v4414, %v4407
    %v5290 = vpack.c.b16 %v4415, %v4408
    %v5291 = vpack.c.b16 %v4416, %v4409
    %v5292 = vpack.c.b16 %v4417, %v4410
    %v5293 = vpack.c.b16 %v4418, %v4411
    %v5294 = vpack.c.b16 %v4419, %v4412
    %v5295 = vpack.c.b16 %v4420, %v4413
    %v5296 = vpack.c.b16 %v4428, %v4421
    %v5297 = vpack.c.b16 %v4429, %v4422
    %v5298 = vpack.c.b16 %v4430, %v4423
    %v5299 = vpack.c.b16 %v4431, %v4424
    %v5300 = vpack.c.b16 %v4432, %v4425
    %v5301 = vpack.c.b16 %v4433, %v4426
    %v5302 = vpack.c.b16 %v4434, %v4427
    %v5303 = vpack.c.b16 %v4442, %v4435
    %v5304 = vpack.c.b16 %v4443, %v4436
    %v5305 = vpack.c.b16 %v4444, %v4437
    %v5306 = vpack.c.b16 %v4445, %v4438
    %v5307 = vpack.c.b16 %v4446, %v4439
    %v5308 = vpack.c.b16 %v4447, %v4440
    %v5309 = vpack.c.b16 %v4448, %v4441
    %v5310 = vpack.c.b16 %v4456, %v4449
    %v5311 = vpack.c.b16 %v4457, %v4450
    %v5312 = vpack.c.b16 %v4458, %v4451
    %v5313 = vpack.c.b16 %v4459, %v4452
    %v5314 = vpack.c.b16 %v4460, %v4453
    %v5315 = vpack.c.b16 %v4461, %v4454
    %v5316 = vpack.c.b16 %v4462, %v4455
    %v5317 = vpack.c.b16 %v4470, %v4463
    %v5318 = vpack.c.b16 %v4471, %v4464
    %v5319 = vpack.c.b16 %v4472, %v4465
    %v5320 = vpack.c.b16 %v4473, %v4466
    %v5321 = vpack.c.b16 %v4474, %v4467
    %v5322 = vpack.c.b16 %v4475, %v4468
    %v5323 = vpack.c.b16 %v4476, %v4469
    %v5324 = vpack.c.b16 %v4484, %v4477
    %v5325 = vpack.c.b16 %v4485, %v4478
    %v5326 = vpack.c.b16 %v4486, %v4479
    %v5327 = vpack.c.b16 %v4487, %v4480
    %v5328 = vpack.c.b16 %v4488, %v4481
    %v5329 = vpack.c.b16 %v4489, %v4482
    %v5330 = vpack.c.b16 %v4490, %v4483
    %v5331 = vpack.c.b16 %v4498, %v4491
    %v5332 = vpack.c.b16 %v4499, %v4492
    %v5333 = vpack.c.b16 %v4500, %v4493
    %v5334 = vpack.c.b16 %v4501, %v4494
    %v5335 = vpack.c.b16 %v4502, %v4495
    %v5336 = vpack.c.b16 %v4503, %v4496
    %v5337 = vpack.c.b16 %v4504, %v4497
    %v5338 = vpack.c.b16 %v4512, %v4505
    %v5339 = vpack.c.b16 %v4513, %v4506
    %v5340 = vpack.c.b16 %v4514, %v4507
    %v5341 = vpack.c.b16 %v4515, %v4508
    %v5342 = vpack.c.b16 %v4516, %v4509
    %v5343 = vpack.c.b16 %v4517, %v4510
    %v5344 = vpack.c.b16 %v4518, %v4511
    %v5345 = vpack.c.b16 %v4526, %v4519
    %v5346 = vpack.c.b16 %v4527, %v4520
    %v5347 = vpack.c.b16 %v4528, %v4521
    %v5348 = vpack.c.b16 %v4529, %v4522
    %v5349 = vpack.c.b16 %v4530, %v4523
    %v5350 = vpack.c.b16 %v4531, %v4524
    %v5351 = vpack.c.b16 %v4532, %v4525
    %v5352 = vpack.c.b16 %v4540, %v4533
    %v5353 = vpack.c.b16 %v4541, %v4534
    %v5354 = vpack.c.b16 %v4542, %v4535
    %v5355 = vpack.c.b16 %v4543, %v4536
    %v5356 = vpack.c.b16 %v4544, %v4537
    %v5357 = vpack.c.b16 %v4545, %v4538
    %v5358 = vpack.c.b16 %v4546, %v4539
    %v5359 = vpack.c.b16 %v4554, %v4547
    %v5360 = vpack.c.b16 %v4555, %v4548
    %v5361 = vpack.c.b16 %v4556, %v4549
    %v5362 = vpack.c.b16 %v4557, %v4550
    %v5363 = vpack.c.b16 %v4558, %v4551
    %v5364 = vpack.c.b16 %v4559, %v4552
    %v5365 = vpack.c.b16 %v4560, %v4553
    %v5366 = vpack.c.b16 %v4568, %v4561
    %v5367 = vpack.c.b16 %v4569, %v4562
    %v5368 = vpack.c.b16 %v4570, %v4563
    %v5369 = vpack.c.b16 %v4571, %v4564
    %v5370 = vpack.c.b16 %v4572, %v4565
    %v5371 = vpack.c.b16 %v4573, %v4566
    %v5372 = vpack.c.b16 %v4574, %v4567
    %v5373 = vpack.c.b16 %v4582, %v4575
    %v5374 = vpack.c.b16 %v4583, %v4576
    %v5375 = vpack.c.b16 %v4584, %v4577
    %v5376 = vpack.c.b16 %v4585, %v4578
    %v5377 = vpack.c.b16 %v4586, %v4579
    %v5378 = vpack.c.b16 %v4587, %v4580
    %v5379 = vpack.c.b16 %v4588, %v4581
    %v5380 = vpack.c.b16 %v4596, %v4589
    %v5381 = vpack.c.b16 %v4597, %v4590
    %v5382 = vpack.c.b16 %v4598, %v4591
    %v5383 = vpack.c.b16 %v4599, %v4592
    %v5384 = vpack.c.b16 %v4600, %v4593
    %v5385 = vpack.c.b16 %v4601, %v4594
    %v5386 = vpack.c.b16 %v4602, %v4595
    %v5387 = vpack.c.b16 %v4610, %v4603
    %v5388 = vpack.c.b16 %v4611, %v4604
    %v5389 = vpack.c.b16 %v4612, %v4605
    %v5390 = vpack.c.b16 %v4613, %v4606
    %v5391 = vpack.c.b16 %v4614, %v4607
    %v5392 = vpack.c.b16 %v4615, %v4608
    %v5393 = vpack.c.b16 %v4616, %v4609
    %v5394 = vpack.c.b16 %v4624, %v4617
    %v5395 = vpack.c.b16 %v4625, %v4618
    %v5396 = vpack.c.b16 %v4626, %v4619
    %v5397 = vpack.c.b16 %v4627, %v4620
    %v5398 = vpack.c.b16 %v4628, %v4621
    %v5399 = vpack.c.b16 %v4629, %v4622
    %v5400 = vpack.c.b16 %v4630, %v4623
    %v5401 = vpack.c.b16 %v4638, %v4631
    %v5402 = vpack.c.b16 %v4639, %v4632
    %v5403 = vpack.c.b16 %v4640, %v4633
    %v5404 = vpack.c.b16 %v4641, %v4634
    %v5405 = vpack.c.b16 %v4642, %v4635
    %v5406 = vpack.c.b16 %v4643, %v4636
    %v5407 = vpack.c.b16 %v4644, %v4637
    %v5408 = vpack.c.b16 %v4652, %v4645
    %v5409 = vpack.c.b16 %v4653, %v4646
    %v5410 = vpack.c.b16 %v4654, %v4647
    %v5411 = vpack.c.b16 %v4655, %v4648
    %v5412 = vpack.c.b16 %v4656, %v4649
    %v5413 = vpack.c.b16 %v4657, %v4650
    %v5414 = vpack.c.b16 %v4658, %v4651
    %v5415 = vpack.c.b16 %v4666, %v4659
    %v5416 = vpack.c.b16 %v4667, %v4660
    %v5417 = vpack.c.b16 %v4668, %v4661
    %v5418 = vpack.c.b16 %v4669, %v4662
    %v5419 = vpack.c.b16 %v4670, %v4663
    %v5420 = vpack.c.b16 %v4671, %v4664
    %v5421 = vpack.c.b16 %v4672, %v4665
    %v5422 = vpack.c.b16 %v4680, %v4673
    %v5423 = vpack.c.b16 %v4681, %v4674
    %v5424 = vpack.c.b16 %v4682, %v4675
    %v5425 = vpack.c.b16 %v4683, %v4676
    %v5426 = vpack.c.b16 %v4684, %v4677
    %v5427 = vpack.c.b16 %v4685, %v4678
    %v5428 = vpack.c.b16 %v4686, %v4679
    %v5429 = vpack.c.b16 %v4694, %v4687
    %v5430 = vpack.c.b16 %v4695, %v4688
    %v5431 = vpack.c.b16 %v4696, %v4689
    %v5432 = vpack.c.b16 %v4697, %v4690
    %v5433 = vpack.c.b16 %v4698, %v4691
    %v5434 = vpack.c.b16 %v4699, %v4692
    %v5435 = vpack.c.b16 %v4700, %v4693
    %v5436 = vpack.c.b16 %v4708, %v4701
    %v5437 = vpack.c.b16 %v4709, %v4702
    %v5438 = vpack.c.b16 %v4710, %v4703
    %v5439 = vpack.c.b16 %v4711, %v4704
    %v5440 = vpack.c.b16 %v4712, %v4705
    %v5441 = vpack.c.b16 %v4713, %v4706
    %v5442 = vpack.c.b16 %v4714, %v4707
    %v5443 = vpack.c.b16 %v4722, %v4715
    %v5444 = vpack.c.b16 %v4723, %v4716
    %v5445 = vpack.c.b16 %v4724, %v4717
    %v5446 = vpack.c.b16 %v4725, %v4718
    %v5447 = vpack.c.b16 %v4726, %v4719
    %v5448 = vpack.c.b16 %v4727, %v4720
    %v5449 = vpack.c.b16 %v4728, %v4721
    %v5450 = vpack.c.b16 %v4736, %v4729
    %v5451 = vpack.c.b16 %v4737, %v4730
    %v5452 = vpack.c.b16 %v4738, %v4731
    %v5453 = vpack.c.b16 %v4739, %v4732
    %v5454 = vpack.c.b16 %v4740, %v4733
    %v5455 = vpack.c.b16 %v4741, %v4734
    %v5456 = vpack.c.b16 %v4742, %v4735
    %v5457 = vpack.c.b16 %v4750, %v4743
    %v5458 = vpack.c.b16 %v4751, %v4744
    %v5459 = vpack.c.b16 %v4752, %v4745
    %v5460 = vpack.c.b16 %v4753, %v4746
    %v5461 = vpack.c.b16 %v4754, %v4747
    %v5462 = vpack.c.b16 %v4755, %v4748
    %v5463 = vpack.c.b16 %v4756, %v4749
    %v5464 = vpack.c.b16 %v4764, %v4757
    %v5465 = vpack.c.b16 %v4765, %v4758
    %v5466 = vpack.c.b16 %v4766, %v4759
    %v5467 = vpack.c.b16 %v4767, %v4760
    %v5468 = vpack.c.b16 %v4768, %v4761
    %v5469 = vpack.c.b16 %v4769, %v4762
    %v5470 = vpack.c.b16 %v4770, %v4763
    %v5471 = vpack.c.b16 %v4778, %v4771
    %v5472 = vpack.c.b16 %v4779, %v4772
    %v5473 = vpack.c.b16 %v4780, %v4773
    %v5474 = vpack.c.b16 %v4781, %v4774
    %v5475 = vpack.c.b16 %v4782, %v4775
    %v5476 = vpack.c.b16 %v4783, %v4776
    %v5477 = vpack.c.b16 %v4784, %v4777
    %v5478 = vpack.c.b16 %v4792, %v4785
    %v5479 = vpack.c.b16 %v4793, %v4786
    %v5480 = vpack.c.b16 %v4794, %v4787
    %v5481 = vpack.c.b16 %v4795, %v4788
    %v5482 = vpack.c.b16 %v4796, %v4789
    %v5483 = vpack.c.b16 %v4797, %v4790
    %v5484 = vpack.c.b16 %v4798, %v4791
    %v5485 = vpack.c.b16 %v4806, %v4799
    %v5486 = vpack.c.b16 %v4807, %v4800
    %v5487 = vpack.c.b16 %v4808, %v4801
    %v5488 = vpack.c.b16 %v4809, %v4802
    %v5489 = vpack.c.b16 %v4810, %v4803
    %v5490 = vpack.c.b16 %v4811, %v4804
    %v5491 = vpack.c.b16 %v4812, %v4805
    %v5492 = vpack.c.b16 %v4820, %v4813
    %v5493 = vpack.c.b16 %v4821, %v4814
    %v5494 = vpack.c.b16 %v4822, %v4815
    %v5495 = vpack.c.b16 %v4823, %v4816
    %v5496 = vpack.c.b16 %v4824, %v4817
    %v5497 = vpack.c.b16 %v4825, %v4818
    %v5498 = vpack.c.b16 %v4826, %v4819
    %v5499 = vpack.c.b16 %v4834, %v4827
    %v5500 = vpack.c.b16 %v4835, %v4828
    %v5501 = vpack.c.b16 %v4836, %v4829
    %v5502 = vpack.c.b16 %v4837, %v4830
    %v5503 = vpack.c.b16 %v4838, %v4831
    %v5504 = vpack.c.b16 %v4839, %v4832
    %v5505 = vpack.c.b16 %v4840, %v4833
    %v5506 = vpack.c.b16 %v4848, %v4841
    %v5507 = vpack.c.b16 %v4849, %v4842
    %v5508 = vpack.c.b16 %v4850, %v4843
    %v5509 = vpack.c.b16 %v4851, %v4844
    %v5510 = vpack.c.b16 %v4852, %v4845
    %v5511 = vpack.c.b16 %v4853, %v4846
    %v5512 = vpack.c.b16 %v4854, %v4847
    %v5513 = vpack.c.b16 %v4862, %v4855
    %v5514 = vpack.c.b16 %v4863, %v4856
    %v5515 = vpack.c.b16 %v4864, %v4857
    %v5516 = vpack.c.b16 %v4865, %v4858
    %v5517 = vpack.c.b16 %v4866, %v4859
    %v5518 = vpack.c.b16 %v4867, %v4860
    %v5519 = vpack.c.b16 %v4868, %v4861
    %v5520 = vpack.c.b16 %v4876, %v4869
    %v5521 = vpack.c.b16 %v4877, %v4870
    %v5522 = vpack.c.b16 %v4878, %v4871
    %v5523 = vpack.c.b16 %v4879, %v4872
    %v5524 = vpack.c.b16 %v4880, %v4873
    %v5525 = vpack.c.b16 %v4881, %v4874
    %v5526 = vpack.c.b16 %v4882, %v4875
    %v5527 = vpack.c.b16 %v4890, %v4883
    %v5528 = vpack.c.b16 %v4891, %v4884
    %v5529 = vpack.c.b16 %v4892, %v4885
    %v5530 = vpack.c.b16 %v4893, %v4886
    %v5531 = vpack.c.b16 %v4894, %v4887
    %v5532 = vpack.c.b16 %v4895, %v4888
    %v5533 = vpack.c.b16 %v4896, %v4889
    %v5534 = vpack.c.b16 %v4904, %v4897
    %v5535 = vpack.c.b16 %v4905, %v4898
    %v5536 = vpack.c.b16 %v4906, %v4899
    %v5537 = vpack.c.b16 %v4907, %v4900
    %v5538 = vpack.c.b16 %v4908, %v4901
    %v5539 = vpack.c.b16 %v4909, %v4902
    %v5540 = vpack.c.b16 %v4910, %v4903
    %v5541 = vpack.c.b16 %v4918, %v4911
    %v5542 = vpack.c.b16 %v4919, %v4912
    %v5543 = vpack.c.b16 %v4920, %v4913
    %v5544 = vpack.c.b16 %v4921, %v4914
    %v5545 = vpack.c.b16 %v4922, %v4915
    %v5546 = vpack.c.b16 %v4923, %v4916
    %v5547 = vpack.c.b16 %v4924, %v4917
    %v5548 = vpack.c.b16 %v4932, %v4925
    %v5549 = vpack.c.b16 %v4933, %v4926
    %v5550 = vpack.c.b16 %v4934, %v4927
    %v5551 = vpack.c.b16 %v4935, %v4928
    %v5552 = vpack.c.b16 %v4936, %v4929
    %v5553 = vpack.c.b16 %v4937, %v4930
    %v5554 = vpack.c.b16 %v4938, %v4931
    %v5555 = vpack.c.b16 %v4946, %v4939
    %v5556 = vpack.c.b16 %v4947, %v4940
    %v5557 = vpack.c.b16 %v4948, %v4941
    %v5558 = vpack.c.b16 %v4949, %v4942
    %v5559 = vpack.c.b16 %v4950, %v4943
    %v5560 = vpack.c.b16 %v4951, %v4944
    %v5561 = vpack.c.b16 %v4952, %v4945
    %v5562 = vpack.c.b16 %v4960, %v4953
    %v5563 = vpack.c.b16 %v4961, %v4954
    %v5564 = vpack.c.b16 %v4962, %v4955
    %v5565 = vpack.c.b16 %v4963, %v4956
    %v5566 = vpack.c.b16 %v4964, %v4957
    %v5567 = vpack.c.b16 %v4965, %v4958
    %v5568 = vpack.c.b16 %v4966, %v4959
    %v5569 = vpack.c.b16 %v4974, %v4967
    %v5570 = vpack.c.b16 %v4975, %v4968
    %v5571 = vpack.c.b16 %v4976, %v4969
    %v5572 = vpack.c.b16 %v4977, %v4970
    %v5573 = vpack.c.b16 %v4978, %v4971
    %v5574 = vpack.c.b16 %v4979, %v4972
    %v5575 = vpack.c.b16 %v4980, %v4973
    %v5576 = vpack.c.b16 %v4988, %v4981
    %v5577 = vpack.c.b16 %v4989, %v4982
    %v5578 = vpack.c.b16 %v4990, %v4983
    %v5579 = vpack.c.b16 %v4991, %v4984
    %v5580 = vpack.c.b16 %v4992, %v4985
    %v5581 = vpack.c.b16 %v4993, %v4986
    %v5582 = vpack.c.b16 %v4994, %v4987
    %v5583 = vpack.c.b16 %v5002, %v4995
    %v5584 = vpack.c.b16 %v5003, %v4996
    %v5585 = vpack.c.b16 %v5004, %v4997
    %v5586 = vpack.c.b16 %v5005, %v4998
    %v5587 = vpack.c.b16 %v5006, %v4999
    %v5588 = vpack.c.b16 %v5007, %v5000
    %v5589 = vpack.c.b16 %v5008, %v5001
    %v5590 = vpack.c.b16 %v5016, %v5009
    %v5591 = vpack.c.b16 %v5017, %v5010
    %v5592 = vpack.c.b16 %v5018, %v5011
    %v5593 = vpack.c.b16 %v5019, %v5012
    %v5594 = vpack.c.b16 %v5020, %v5013
    %v5595 = vpack.c.b16 %v5021, %v5014
    %v5596 = vpack.c.b16 %v5022, %v5015
    %v5597 = vpack.c.b16 %v5030, %v5023
    %v5598 = vpack.c.b16 %v5031, %v5024
    %v5599 = vpack.c.b16 %v5032, %v5025
    %v5600 = vpack.c.b16 %v5033, %v5026
    %v5601 = vpack.c.b16 %v5034, %v5027
    %v5602 = vpack.c.b16 %v5035, %v5028
    %v5603 = vpack.c.b16 %v5036, %v5029
    %v5604 = vpack.c.b16 %v5044, %v5037
    %v5605 = vpack.c.b16 %v5045, %v5038
    %v5606 = vpack.c.b16 %v5046, %v5039
    %v5607 = vpack.c.b16 %v5047, %v5040
    %v5608 = vpack.c.b16 %v5048, %v5041
    %v5609 = vpack.c.b16 %v5049, %v5042
    %v5610 = vpack.c.b16 %v5050, %v5043
    %v5611 = vpack.c.b16 %v5058, %v5051
    %v5612 = vpack.c.b16 %v5059, %v5052
    %v5613 = vpack.c.b16 %v5060, %v5053
    %v5614 = vpack.c.b16 %v5061, %v5054
    %v5615 = vpack.c.b16 %v5062, %v5055
    %v5616 = vpack.c.b16 %v5063, %v5056
    %v5617 = vpack.c.b16 %v5064, %v5057
    %v5618 = vpack.c.b16 %v5072, %v5065
    %v5619 = vpack.c.b16 %v5073, %v5066
    %v5620 = vpack.c.b16 %v5074, %v5067
    %v5621 = vpack.c.b16 %v5075, %v5068
    %v5622 = vpack.c.b16 %v5076, %v5069
    %v5623 = vpack.c.b16 %v5077, %v5070
    %v5624 = vpack.c.b16 %v5078, %v5071
    %v5625 = vpack.c.b16 %v5086, %v5079
    %v5626 = vpack.c.b16 %v5087, %v5080
    %v5627 = vpack.c.b16 %v5088, %v5081
    %v5628 = vpack.c.b16 %v5089, %v5082
    %v5629 = vpack.c.b16 %v5090, %v5083
    %v5630 = vpack.c.b16 %v5091, %v5084
    %v5631 = vpack.c.b16 %v5092, %v5085
    %v5632 = vpack.c.b16 %v5100, %v5093
    %v5633 = vpack.c.b16 %v5101, %v5094
    %v5634 = vpack.c.b16 %v5102, %v5095
    %v5635 = vpack.c.b16 %v5103, %v5096
    %v5636 = vpack.c.b16 %v5104, %v5097
    %v5637 = vpack.c.b16 %v5105, %v5098
    %v5638 = vpack.c.b16 %v5106, %v5099
    %v5639 = vpack.c.b16 %v5114, %v5107
    %v5640 = vpack.c.b16 %v5115, %v5108
    %v5641 = vpack.c.b16 %v5116, %v5109
    %v5642 = vpack.c.b16 %v5117, %v5110
    %v5643 = vpack.c.b16 %v5118, %v5111
    %v5644 = vpack.c.b16 %v5119, %v5112
    %v5645 = vpack.c.b16 %v5120, %v5113
    %v5646 = vpack.c.b16 %v5128, %v5121
    %v5647 = vpack.c.b16 %v5129, %v5122
    %v5648 = vpack.c.b16 %v5130, %v5123
    %v5649 = vpack.c.b16 %v5131, %v5124
    %v5650 = vpack.c.b16 %v5132, %v5125
    %v5651 = vpack.c.b16 %v5133, %v5126
    %v5652 = vpack.c.b16 %v5134, %v5127
    %v5653 = vpack.c.b16 %v5142, %v5135
    %v5654 = vpack.c.b16 %v5143, %v5136
    %v5655 = vpack.c.b16 %v5144, %v5137
    %v5656 = vpack.c.b16 %v5145, %v5138
    %v5657 = vpack.c.b16 %v5146, %v5139
    %v5658 = vpack.c.b16 %v5147, %v5140
    %v5659 = vpack.c.b16 %v5148, %v5141
    %v5660 = vpack.c.b16 %v5156, %v5149
    %v5661 = vpack.c.b16 %v5157, %v5150
    %v5662 = vpack.c.b16 %v5158, %v5151
    %v5663 = vpack.c.b16 %v5159, %v5152
    %v5664 = vpack.c.b16 %v5160, %v5153
    %v5665 = vpack.c.b16 %v5161, %v5154
    %v5666 = vpack.c.b16 %v5162, %v5155
    %v5667 = vpack.c.b16 %v5170, %v5163
    %v5668 = vpack.c.b16 %v5171, %v5164
    %v5669 = vpack.c.b16 %v5172, %v5165
    %v5670 = vpack.c.b16 %v5173, %v5166
    %v5671 = vpack.c.b16 %v5174, %v5167
    %v5672 = vpack.c.b16 %v5175, %v5168
    %v5673 = vpack.c.b16 %v5176, %v5169
    %v5674 = vpack.c.b16 %v5184, %v5177
    %v5675 = vpack.c.b16 %v5185, %v5178
    %v5676 = vpack.c.b16 %v5186, %v5179
    %v5677 = vpack.c.b16 %v5187, %v5180
    %v5678 = vpack.c.b16 %v5188, %v5181
    %v5679 = vpack.c.b16 %v5189, %v5182
    %v5680 = vpack.c.b16 %v5190, %v5183
    %v5681 = vpack.c.b16 %v5198, %v5191
    %v5682 = vpack.c.b16 %v5199, %v5192
    %v5683 = vpack.c.b16 %v5200, %v5193
    %v5684 = vpack.c.b16 %v5201, %v5194
    %v5685 = vpack.c.b16 %v5202, %v5195
    %v5686 = vpack.c.b16 %v5203, %v5196
    %v5687 = vpack.c.b16 %v5204, %v5197
    %v5688 = vpack.c.b16 %v5212, %v5205
    %v5689 = vpack.c.b16 %v5213, %v5206
    %v5690 = vpack.c.b16 %v5214, %v5207
    %v5691 = vpack.c.b16 %v5215, %v5208
    %v5692 = vpack.c.b16 %v5216, %v5209
    %v5693 = vpack.c.b16 %v5217, %v5210
    %v5694 = vpack.c.b16 %v5218, %v5211
    %v5695 = vpack.c.b16 %v5226, %v5219
    %v5696 = vpack.c.b16 %v5227, %v5220
    %v5697 = vpack.c.b16 %v5228, %v5221
    %v5698 = vpack.c.b16 %v5229, %v5222
    %v5699 = vpack.c.b16 %v5230, %v5223
    %v5700 = vpack.c.b16 %v5231, %v5224
    %v5701 = vpack.c.b16 %v5232, %v5225
    %v5702 = vpack.c.b16 %v5240, %v5233
    %v5703 = vpack.c.b16 %v5241, %v5234
    %v5704 = vpack.c.b16 %v5242, %v5235
    %v5705 = vpack.c.b16 %v5243, %v5236
    %v5706 = vpack.c.b16 %v5244, %v5237
    %v5707 = vpack.c.b16 %v5245, %v5238
    %v5708 = vpack.c.b16 %v5246, %v5239
    %v5709 = vpack.c.b16 %v5254, %v5247
    %v5710 = vpack.c.b16 %v5255, %v5248
    %v5711 = vpack.c.b16 %v5256, %v5249
    %v5712 = vpack.c.b16 %v5257, %v5250
    %v5713 = vpack.c.b16 %v5258, %v5251
    %v5714 = vpack.c.b16 %v5259, %v5252
    %v5715 = vpack.c.b16 %v5260, %v5253
    %v5716 = vpack.c.b16 %v5268, %v5261
    %v5717 = vpack.c.b16 %v5269, %v5262
    %v5718 = vpack.c.b16 %v5270, %v5263
    %v5719 = vpack.c.b16 %v5271, %v5264
    %v5720 = vpack.c.b16 %v5272, %v5265
    %v5721 = vpack.c.b16 %v5273, %v5266
    %v5722 = vpack.c.b16 %v5274, %v5267
    %6171 = vmatprep.subr.bf16.mxu0 %v5276
    %6172 = vmatpush1.bf16.msra.mxu0 %v5275
    %6173 = vmatprep.subr.bf16.mxu0 %v5283
    %6174 = vmatpush1.bf16.msra.mxu0 %v5282
    %6175 = vmatprep.subr.bf16.mxu0 %v5290
    %6176 = vmatpush1.bf16.msra.mxu0 %v5289
    %6177 = vmatprep.subr.bf16.mxu0 %v5297
    %6178 = vmatpush1.bf16.msra.mxu0 %v5296
    %6179 = vmatprep.subr.bf16.mxu0 %v5304
    %6180 = vmatpush1.bf16.msra.mxu0 %v5303
    %6181 = vmatprep.subr.bf16.mxu0 %v5311
    %6182 = vmatpush1.bf16.msra.mxu0 %v5310
    %6183 = vmatprep.subr.bf16.mxu0 %v5318
    %6184 = vmatpush1.bf16.msra.mxu0 %v5317
    %6185 = vmatprep.subr.bf16.mxu0 %v5325
    %6186 = vmatpush1.bf16.msra.mxu0 %v5324
    %6187 = vmatprep.subr.bf16.mxu0 %v5332
    %6188 = vmatpush1.bf16.msra.mxu0 %v5331
    %6189 = vmatprep.subr.bf16.mxu0 %v5339
    %6190 = vmatpush1.bf16.msra.mxu0 %v5338
    %6191 = vmatprep.subr.bf16.mxu0 %v5346
    %6192 = vmatpush1.bf16.msra.mxu0 %v5345
    %6193 = vmatprep.subr.bf16.mxu0 %v5353
    %6194 = vmatpush1.bf16.msra.mxu0 %v5352
    %6195 = vmatprep.subr.bf16.mxu0 %v5360
    %6196 = vmatpush1.bf16.msra.mxu0 %v5359
    %6197 = vmatprep.subr.bf16.mxu0 %v5367
    %6198 = vmatpush1.bf16.msra.mxu0 %v5366
    %6199 = vmatprep.subr.bf16.mxu0 %v5374
    %6200 = vmatpush1.bf16.msra.mxu0 %v5373
    %6201 = vmatprep.subr.bf16.mxu0 %v5381
    %6202 = vmatpush1.bf16.msra.mxu0 %v5380
    %6203 = vmatprep.mubr.bf16.mxu0 %v3311
    %6204 = vmatmul.mubr.bf16.gmra.mrb[0].mxu0 %v3310
    %v6205 = vpop.f32.mrb[0].mxu0
    %v6206 = vadd.f32 %v3835, %v6205
    %v6207 = vpop.f32.mrb[0].mxu0
    %v6208 = vadd.f32 %v3839, %v6207
    %v6209 = vpop.f32.mrb[0].mxu0
    %v6210 = vpop.f32.mrb[0].mxu0
    %6211 = vdwg.mxu0
    %6212 = vmatprep.subr.bf16.mxu0 %v5388
    %6213 = vmatpush1.bf16.msra.mxu0 %v5387
    %6214 = vmatprep.subr.bf16.mxu0 %v5395
    %6215 = vmatpush1.bf16.msra.mxu0 %v5394
    %6216 = vmatprep.subr.bf16.mxu0 %v5402
    %6217 = vmatpush1.bf16.msra.mxu0 %v5401
    %6218 = vmatprep.subr.bf16.mxu0 %v5409
    %6219 = vmatpush1.bf16.msra.mxu0 %v5408
    %6220 = vmatprep.subr.bf16.mxu0 %v5416
    %6221 = vmatpush1.bf16.msra.mxu0 %v5415
    %6222 = vmatprep.subr.bf16.mxu0 %v5423
    %6223 = vmatpush1.bf16.msra.mxu0 %v5422
    %6224 = vmatprep.subr.bf16.mxu0 %v5430
    %6225 = vmatpush1.bf16.msra.mxu0 %v5429
    %6226 = vmatprep.subr.bf16.mxu0 %v5437
    %6227 = vmatpush1.bf16.msra.mxu0 %v5436
    %6228 = vmatprep.subr.bf16.mxu0 %v5444
    %6229 = vmatpush1.bf16.msra.mxu0 %v5443
    %6230 = vmatprep.subr.bf16.mxu0 %v5451
    %6231 = vmatpush1.bf16.msra.mxu0 %v5450
    %6232 = vmatprep.subr.bf16.mxu0 %v5458
    %6233 = vmatpush1.bf16.msra.mxu0 %v5457
    %6234 = vmatprep.subr.bf16.mxu0 %v5465
    %6235 = vmatpush1.bf16.msra.mxu0 %v5464
    %6236 = vmatprep.subr.bf16.mxu0 %v5472
    %6237 = vmatpush1.bf16.msra.mxu0 %v5471
    %6238 = vmatprep.subr.bf16.mxu0 %v5479
    %6239 = vmatpush1.bf16.msra.mxu0 %v5478
    %6240 = vmatprep.subr.bf16.mxu0 %v5486
    %6241 = vmatpush1.bf16.msra.mxu0 %v5485
    %6242 = vmatprep.subr.bf16.mxu0 %v5493
    %6243 = vmatpush1.bf16.msra.mxu0 %v5492
    %6244 = vmatprep.mubr.bf16.mxu0 %v3313
    %6245 = vmatmul.mubr.bf16.gmra.mrb[0].mxu0 %v3312
    %v6246 = vpop.f32.mrb[0].mxu0
    %v6247 = vadd.f32 %v6206, %v6246
    %v6248 = vpop.f32.mrb[0].mxu0
    %v6249 = vadd.f32 %v6208, %v6248
    %v6250 = vpop.f32.mrb[0].mxu0
    %v6251 = vpop.f32.mrb[0].mxu0
    %6252 = vdwg.mxu0
    %6253 = vmatprep.subr.bf16.mxu0 %v5500
    %6254 = vmatpush1.bf16.msra.mxu0 %v5499
    %6255 = vmatprep.subr.bf16.mxu0 %v5507
    %6256 = vmatpush1.bf16.msra.mxu0 %v5506
    %6257 = vmatprep.subr.bf16.mxu0 %v5514
    %6258 = vmatpush1.bf16.msra.mxu0 %v5513
    %6259 = vmatprep.subr.bf16.mxu0 %v5521
    %6260 = vmatpush1.bf16.msra.mxu0 %v5520
    %6261 = vmatprep.subr.bf16.mxu0 %v5528
    %6262 = vmatpush1.bf16.msra.mxu0 %v5527
    %6263 = vmatprep.subr.bf16.mxu0 %v5535
    %6264 = vmatpush1.bf16.msra.mxu0 %v5534
    %6265 = vmatprep.subr.bf16.mxu0 %v5542
    %6266 = vmatpush1.bf16.msra.mxu0 %v5541
    %6267 = vmatprep.subr.bf16.mxu0 %v5549
    %6268 = vmatpush1.bf16.msra.mxu0 %v5548
    %6269 = vmatprep.subr.bf16.mxu0 %v5556
    %6270 = vmatpush1.bf16.msra.mxu0 %v5555
    %6271 = vmatprep.subr.bf16.mxu0 %v5563
    %6272 = vmatpush1.bf16.msra.mxu0 %v5562
    %6273 = vmatprep.subr.bf16.mxu0 %v5570
    %6274 = vmatpush1.bf16.msra.mxu0 %v5569
    %6275 = vmatprep.subr.bf16.mxu0 %v5577
    %6276 = vmatpush1.bf16.msra.mxu0 %v5576
    %6277 = vmatprep.subr.bf16.mxu0 %v5584
    %6278 = vmatpush1.bf16.msra.mxu0 %v5583
    %6279 = vmatprep.subr.bf16.mxu0 %v5591
    %6280 = vmatpush1.bf16.msra.mxu0 %v5590
    %6281 = vmatprep.subr.bf16.mxu0 %v5598
    %6282 = vmatpush1.bf16.msra.mxu0 %v5597
    %6283 = vmatprep.subr.bf16.mxu0 %v5605
    %6284 = vmatpush1.bf16.msra.mxu0 %v5604
    %6285 = vmatprep.mubr.bf16.mxu0 %v3315
    %6286 = vmatmul.mubr.bf16.gmra.mrb[0].mxu0 %v3314
    %v6287 = vpop.f32.mrb[0].mxu0
    %v6288 = vadd.f32 %v6247, %v6287
    %v6289 = vpop.f32.mrb[0].mxu0
    %v6290 = vadd.f32 %v6249, %v6289
    %v6291 = vpop.f32.mrb[0].mxu0
    %v6292 = vpop.f32.mrb[0].mxu0
    %6293 = vdwg.mxu0
    %6294 = vmatprep.subr.bf16.mxu0 %v5612
    %6295 = vmatpush1.bf16.msra.mxu0 %v5611
    %6296 = vmatprep.subr.bf16.mxu0 %v5619
    %6297 = vmatpush1.bf16.msra.mxu0 %v5618
    %6298 = vmatprep.subr.bf16.mxu0 %v5626
    %6299 = vmatpush1.bf16.msra.mxu0 %v5625
    %6300 = vmatprep.subr.bf16.mxu0 %v5633
    %6301 = vmatpush1.bf16.msra.mxu0 %v5632
    %6302 = vmatprep.subr.bf16.mxu0 %v5640
    %6303 = vmatpush1.bf16.msra.mxu0 %v5639
    %6304 = vmatprep.subr.bf16.mxu0 %v5647
    %6305 = vmatpush1.bf16.msra.mxu0 %v5646
    %6306 = vmatprep.subr.bf16.mxu0 %v5654
    %6307 = vmatpush1.bf16.msra.mxu0 %v5653
    %6308 = vmatprep.subr.bf16.mxu0 %v5661
    %6309 = vmatpush1.bf16.msra.mxu0 %v5660
    %6310 = vmatprep.subr.bf16.mxu0 %v5668
    %6311 = vmatpush1.bf16.msra.mxu0 %v5667
    %6312 = vmatprep.subr.bf16.mxu0 %v5675
    %6313 = vmatpush1.bf16.msra.mxu0 %v5674
    %6314 = vmatprep.subr.bf16.mxu0 %v5682
    %6315 = vmatpush1.bf16.msra.mxu0 %v5681
    %6316 = vmatprep.subr.bf16.mxu0 %v5689
    %6317 = vmatpush1.bf16.msra.mxu0 %v5688
    %6318 = vmatprep.subr.bf16.mxu0 %v5696
    %6319 = vmatpush1.bf16.msra.mxu0 %v5695
    %6320 = vmatprep.subr.bf16.mxu0 %v5703
    %6321 = vmatpush1.bf16.msra.mxu0 %v5702
    %6322 = vmatprep.subr.bf16.mxu0 %v5710
    %6323 = vmatpush1.bf16.msra.mxu0 %v5709
    %6324 = vmatprep.subr.bf16.mxu0 %v5717
    %6325 = vmatpush1.bf16.msra.mxu0 %v5716
    %6326 = vmatprep.mubr.bf16.mxu0 %v3317
    %6327 = vmatmul.mubr.bf16.gmra.mrb[0].mxu0 %v3316
    %v6328 = vpop.f32.mrb[0].mxu0
    %v6329 = vadd.f32 %v6288, %v6328
    %v6330 = vpop.f32.mrb[0].mxu0
    %v6331 = vadd.f32 %v6290, %v6330
    %v6332 = vpop.f32.mrb[0].mxu0
    %v6333 = vpop.f32.mrb[0].mxu0
    %6334 = vdwg.mxu0
    %6335 = vmatprep.subr.bf16.mxu0 %v5278
    %6336 = vmatpush1.bf16.msra.mxu0 %v5277
    %6337 = vmatprep.subr.bf16.mxu0 %v5285
    %6338 = vmatpush1.bf16.msra.mxu0 %v5284
    %6339 = vmatprep.subr.bf16.mxu0 %v5292
    %6340 = vmatpush1.bf16.msra.mxu0 %v5291
    %6341 = vmatprep.subr.bf16.mxu0 %v5299
    %6342 = vmatpush1.bf16.msra.mxu0 %v5298
    %6343 = vmatprep.subr.bf16.mxu0 %v5306
    %6344 = vmatpush1.bf16.msra.mxu0 %v5305
    %6345 = vmatprep.subr.bf16.mxu0 %v5313
    %6346 = vmatpush1.bf16.msra.mxu0 %v5312
    %6347 = vmatprep.subr.bf16.mxu0 %v5320
    %6348 = vmatpush1.bf16.msra.mxu0 %v5319
    %6349 = vmatprep.subr.bf16.mxu0 %v5327
    %6350 = vmatpush1.bf16.msra.mxu0 %v5326
    %6351 = vmatprep.subr.bf16.mxu0 %v5334
    %6352 = vmatpush1.bf16.msra.mxu0 %v5333
    %6353 = vmatprep.subr.bf16.mxu0 %v5341
    %6354 = vmatpush1.bf16.msra.mxu0 %v5340
    %6355 = vmatprep.subr.bf16.mxu0 %v5348
    %6356 = vmatpush1.bf16.msra.mxu0 %v5347
    %6357 = vmatprep.subr.bf16.mxu0 %v5355
    %6358 = vmatpush1.bf16.msra.mxu0 %v5354
    %6359 = vmatprep.subr.bf16.mxu0 %v5362
    %6360 = vmatpush1.bf16.msra.mxu0 %v5361
    %6361 = vmatprep.subr.bf16.mxu0 %v5369
    %6362 = vmatpush1.bf16.msra.mxu0 %v5368
    %6363 = vmatprep.subr.bf16.mxu0 %v5376
    %6364 = vmatpush1.bf16.msra.mxu0 %v5375
    %6365 = vmatprep.subr.bf16.mxu0 %v5383
    %6366 = vmatpush1.bf16.msra.mxu0 %v5382
    %6367 = vmatprep.mubr.bf16.mxu0 %v3311
    %6368 = vmatmul.mubr.bf16.gmra.mrb[0].mxu0 %v3310
    %v6369 = vpop.f32.mrb[0].mxu0
    %v6370 = vadd.f32 %v3843, %v6369
    %v6371 = vpop.f32.mrb[0].mxu0
    %v6372 = vadd.f32 %v3847, %v6371
    %v6373 = vpop.f32.mrb[0].mxu0
    %v6374 = vpop.f32.mrb[0].mxu0
    %6375 = vdwg.mxu0
    %6376 = vmatprep.subr.bf16.mxu0 %v5390
    %6377 = vmatpush1.bf16.msra.mxu0 %v5389
    %6378 = vmatprep.subr.bf16.mxu0 %v5397
    %6379 = vmatpush1.bf16.msra.mxu0 %v5396
    %6380 = vmatprep.subr.bf16.mxu0 %v5404
    %6381 = vmatpush1.bf16.msra.mxu0 %v5403
    %6382 = vmatprep.subr.bf16.mxu0 %v5411
    %6383 = vmatpush1.bf16.msra.mxu0 %v5410
    %6384 = vmatprep.subr.bf16.mxu0 %v5418
    %6385 = vmatpush1.bf16.msra.mxu0 %v5417
    %6386 = vmatprep.subr.bf16.mxu0 %v5425
    %6387 = vmatpush1.bf16.msra.mxu0 %v5424
    %6388 = vmatprep.subr.bf16.mxu0 %v5432
    %6389 = vmatpush1.bf16.msra.mxu0 %v5431
    %6390 = vmatprep.subr.bf16.mxu0 %v5439
    %6391 = vmatpush1.bf16.msra.mxu0 %v5438
    %6392 = vmatprep.subr.bf16.mxu0 %v5446
    %6393 = vmatpush1.bf16.msra.mxu0 %v5445
    %6394 = vmatprep.subr.bf16.mxu0 %v5453
    %6395 = vmatpush1.bf16.msra.mxu0 %v5452
    %6396 = vmatprep.subr.bf16.mxu0 %v5460
    %6397 = vmatpush1.bf16.msra.mxu0 %v5459
    %6398 = vmatprep.subr.bf16.mxu0 %v5467
    %6399 = vmatpush1.bf16.msra.mxu0 %v5466
    %6400 = vmatprep.subr.bf16.mxu0 %v5474
    %6401 = vmatpush1.bf16.msra.mxu0 %v5473
    %6402 = vmatprep.subr.bf16.mxu0 %v5481
    %6403 = vmatpush1.bf16.msra.mxu0 %v5480
    %6404 = vmatprep.subr.bf16.mxu0 %v5488
    %6405 = vmatpush1.bf16.msra.mxu0 %v5487
    %6406 = vmatprep.subr.bf16.mxu0 %v5495
    %6407 = vmatpush1.bf16.msra.mxu0 %v5494
    %6408 = vmatprep.mubr.bf16.mxu0 %v3313
    %6409 = vmatmul.mubr.bf16.gmra.mrb[0].mxu0 %v3312
    %v6410 = vpop.f32.mrb[0].mxu0
    %v6411 = vadd.f32 %v6370, %v6410
    %v6412 = vpop.f32.mrb[0].mxu0
    %v6413 = vadd.f32 %v6372, %v6412
    %v6414 = vpop.f32.mrb[0].mxu0
    %v6415 = vpop.f32.mrb[0].mxu0
    %6416 = vdwg.mxu0
    %6417 = vmatprep.subr.bf16.mxu0 %v5502
    %6418 = vmatpush1.bf16.msra.mxu0 %v5501
    %6419 = vmatprep.subr.bf16.mxu0 %v5509
    %6420 = vmatpush1.bf16.msra.mxu0 %v5508
    %6421 = vmatprep.subr.bf16.mxu0 %v5516
    %6422 = vmatpush1.bf16.msra.mxu0 %v5515
    %6423 = vmatprep.subr.bf16.mxu0 %v5523
    %6424 = vmatpush1.bf16.msra.mxu0 %v5522
    %6425 = vmatprep.subr.bf16.mxu0 %v5530
    %6426 = vmatpush1.bf16.msra.mxu0 %v5529
    %6427 = vmatprep.subr.bf16.mxu0 %v5537
    %6428 = vmatpush1.bf16.msra.mxu0 %v5536
    %6429 = vmatprep.subr.bf16.mxu0 %v5544
    %6430 = vmatpush1.bf16.msra.mxu0 %v5543
    %6431 = vmatprep.subr.bf16.mxu0 %v5551
    %6432 = vmatpush1.bf16.msra.mxu0 %v5550
    %6433 = vmatprep.subr.bf16.mxu0 %v5558
    %6434 = vmatpush1.bf16.msra.mxu0 %v5557
    %6435 = vmatprep.subr.bf16.mxu0 %v5565
    %6436 = vmatpush1.bf16.msra.mxu0 %v5564
    %6437 = vmatprep.subr.bf16.mxu0 %v5572
    %6438 = vmatpush1.bf16.msra.mxu0 %v5571
    %6439 = vmatprep.subr.bf16.mxu0 %v5579
    %6440 = vmatpush1.bf16.msra.mxu0 %v5578
    %6441 = vmatprep.subr.bf16.mxu0 %v5586
    %6442 = vmatpush1.bf16.msra.mxu0 %v5585
    %6443 = vmatprep.subr.bf16.mxu0 %v5593
    %6444 = vmatpush1.bf16.msra.mxu0 %v5592
    %6445 = vmatprep.subr.bf16.mxu0 %v5600
    %6446 = vmatpush1.bf16.msra.mxu0 %v5599
    %6447 = vmatprep.subr.bf16.mxu0 %v5607
    %6448 = vmatpush1.bf16.msra.mxu0 %v5606
    %6449 = vmatprep.mubr.bf16.mxu0 %v3315
    %6450 = vmatmul.mubr.bf16.gmra.mrb[0].mxu0 %v3314
    %v6451 = vpop.f32.mrb[0].mxu0
    %v6452 = vadd.f32 %v6411, %v6451
    %v6453 = vpop.f32.mrb[0].mxu0
    %v6454 = vadd.f32 %v6413, %v6453
    %v6455 = vpop.f32.mrb[0].mxu0
    %v6456 = vpop.f32.mrb[0].mxu0
    %6457 = vdwg.mxu0
    %6458 = vmatprep.subr.bf16.mxu0 %v5614
    %6459 = vmatpush1.bf16.msra.mxu0 %v5613
    %6460 = vmatprep.subr.bf16.mxu0 %v5621
    %6461 = vmatpush1.bf16.msra.mxu0 %v5620
    %6462 = vmatprep.subr.bf16.mxu0 %v5628
    %6463 = vmatpush1.bf16.msra.mxu0 %v5627
    %6464 = vmatprep.subr.bf16.mxu0 %v5635
    %6465 = vmatpush1.bf16.msra.mxu0 %v5634
    %6466 = vmatprep.subr.bf16.mxu0 %v5642
    %6467 = vmatpush1.bf16.msra.mxu0 %v5641
    %6468 = vmatprep.subr.bf16.mxu0 %v5649
    %6469 = vmatpush1.bf16.msra.mxu0 %v5648
    %6470 = vmatprep.subr.bf16.mxu0 %v5656
    %6471 = vmatpush1.bf16.msra.mxu0 %v5655
    %6472 = vmatprep.subr.bf16.mxu0 %v5663
    %6473 = vmatpush1.bf16.msra.mxu0 %v5662
    %6474 = vmatprep.subr.bf16.mxu0 %v5670
    %6475 = vmatpush1.bf16.msra.mxu0 %v5669
    %6476 = vmatprep.subr.bf16.mxu0 %v5677
    %6477 = vmatpush1.bf16.msra.mxu0 %v5676
    %6478 = vmatprep.subr.bf16.mxu0 %v5684
    %6479 = vmatpush1.bf16.msra.mxu0 %v5683
    %6480 = vmatprep.subr.bf16.mxu0 %v5691
    %6481 = vmatpush1.bf16.msra.mxu0 %v5690
    %6482 = vmatprep.subr.bf16.mxu0 %v5698
    %6483 = vmatpush1.bf16.msra.mxu0 %v5697
    %6484 = vmatprep.subr.bf16.mxu0 %v5705
    %6485 = vmatpush1.bf16.msra.mxu0 %v5704
    %6486 = vmatprep.subr.bf16.mxu0 %v5712
    %6487 = vmatpush1.bf16.msra.mxu0 %v5711
    %6488 = vmatprep.subr.bf16.mxu0 %v5719
    %6489 = vmatpush1.bf16.msra.mxu0 %v5718
    %6490 = vmatprep.mubr.bf16.mxu0 %v3317
    %6491 = vmatmul.mubr.bf16.gmra.mrb[0].mxu0 %v3316
    %v6492 = vpop.f32.mrb[0].mxu0
    %v6493 = vadd.f32 %v6452, %v6492
    %v6494 = vpop.f32.mrb[0].mxu0
    %v6495 = vadd.f32 %v6454, %v6494
    %v6496 = vpop.f32.mrb[0].mxu0
    %v6497 = vpop.f32.mrb[0].mxu0
    %6498 = vdwg.mxu0
    %6499 = vmatprep.subr.bf16.mxu0 %v5280
    %6500 = vmatpush1.bf16.msra.mxu0 %v5279
    %6501 = vmatprep.subr.bf16.mxu0 %v5287
    %6502 = vmatpush1.bf16.msra.mxu0 %v5286
    %6503 = vmatprep.subr.bf16.mxu0 %v5294
    %6504 = vmatpush1.bf16.msra.mxu0 %v5293
    %6505 = vmatprep.subr.bf16.mxu0 %v5301
    %6506 = vmatpush1.bf16.msra.mxu0 %v5300
    %6507 = vmatprep.subr.bf16.mxu0 %v5308
    %6508 = vmatpush1.bf16.msra.mxu0 %v5307
    %6509 = vmatprep.subr.bf16.mxu0 %v5315
    %6510 = vmatpush1.bf16.msra.mxu0 %v5314
    %6511 = vmatprep.subr.bf16.mxu0 %v5322
    %6512 = vmatpush1.bf16.msra.mxu0 %v5321
    %6513 = vmatprep.subr.bf16.mxu0 %v5329
    %6514 = vmatpush1.bf16.msra.mxu0 %v5328
    %6515 = vmatprep.subr.bf16.mxu0 %v5336
    %6516 = vmatpush1.bf16.msra.mxu0 %v5335
    %6517 = vmatprep.subr.bf16.mxu0 %v5343
    %6518 = vmatpush1.bf16.msra.mxu0 %v5342
    %6519 = vmatprep.subr.bf16.mxu0 %v5350
    %6520 = vmatpush1.bf16.msra.mxu0 %v5349
    %6521 = vmatprep.subr.bf16.mxu0 %v5357
    %6522 = vmatpush1.bf16.msra.mxu0 %v5356
    %6523 = vmatprep.subr.bf16.mxu0 %v5364
    %6524 = vmatpush1.bf16.msra.mxu0 %v5363
    %6525 = vmatprep.subr.bf16.mxu0 %v5371
    %6526 = vmatpush1.bf16.msra.mxu0 %v5370
    %6527 = vmatprep.subr.bf16.mxu0 %v5378
    %6528 = vmatpush1.bf16.msra.mxu0 %v5377
    %6529 = vmatprep.subr.bf16.mxu0 %v5385
    %6530 = vmatpush1.bf16.msra.mxu0 %v5384
    %6531 = vmatprep.mubr.bf16.mxu0 %v3311
    %6532 = vmatmul.mubr.bf16.gmra.mrb[0].mxu0 %v3310
    %v6533 = vpop.f32.mrb[0].mxu0
    %v6534 = vadd.f32 %v3851, %v6533
    %v6535 = vpop.f32.mrb[0].mxu0
    %v6536 = vadd.f32 %v3855, %v6535
    %v6537 = vpop.f32.mrb[0].mxu0
    %v6538 = vpop.f32.mrb[0].mxu0
    %6539 = vdwg.mxu0
    %6540 = vmatprep.subr.bf16.mxu0 %v5392
    %6541 = vmatpush1.bf16.msra.mxu0 %v5391
    %6542 = vmatprep.subr.bf16.mxu0 %v5399
    %6543 = vmatpush1.bf16.msra.mxu0 %v5398
    %6544 = vmatprep.subr.bf16.mxu0 %v5406
    %6545 = vmatpush1.bf16.msra.mxu0 %v5405
    %6546 = vmatprep.subr.bf16.mxu0 %v5413
    %6547 = vmatpush1.bf16.msra.mxu0 %v5412
    %6548 = vmatprep.subr.bf16.mxu0 %v5420
    %6549 = vmatpush1.bf16.msra.mxu0 %v5419
    %6550 = vmatprep.subr.bf16.mxu0 %v5427
    %6551 = vmatpush1.bf16.msra.mxu0 %v5426
    %6552 = vmatprep.subr.bf16.mxu0 %v5434
    %6553 = vmatpush1.bf16.msra.mxu0 %v5433
    %6554 = vmatprep.subr.bf16.mxu0 %v5441
    %6555 = vmatpush1.bf16.msra.mxu0 %v5440
    %6556 = vmatprep.subr.bf16.mxu0 %v5448
    %6557 = vmatpush1.bf16.msra.mxu0 %v5447
    %6558 = vmatprep.subr.bf16.mxu0 %v5455
    %6559 = vmatpush1.bf16.msra.mxu0 %v5454
    %6560 = vmatprep.subr.bf16.mxu0 %v5462
    %6561 = vmatpush1.bf16.msra.mxu0 %v5461
    %6562 = vmatprep.subr.bf16.mxu0 %v5469
    %6563 = vmatpush1.bf16.msra.mxu0 %v5468
    %6564 = vmatprep.subr.bf16.mxu0 %v5476
    %6565 = vmatpush1.bf16.msra.mxu0 %v5475
    %6566 = vmatprep.subr.bf16.mxu0 %v5483
    %6567 = vmatpush1.bf16.msra.mxu0 %v5482
    %6568 = vmatprep.subr.bf16.mxu0 %v5490
    %6569 = vmatpush1.bf16.msra.mxu0 %v5489
    %6570 = vmatprep.subr.bf16.mxu0 %v5497
    %6571 = vmatpush1.bf16.msra.mxu0 %v5496
    %6572 = vmatprep.mubr.bf16.mxu0 %v3313
    %6573 = vmatmul.mubr.bf16.gmra.mrb[0].mxu0 %v3312
    %v6574 = vpop.f32.mrb[0].mxu0
    %v6575 = vadd.f32 %v6534, %v6574
    %v6576 = vpop.f32.mrb[0].mxu0
    %v6577 = vadd.f32 %v6536, %v6576
    %v6578 = vpop.f32.mrb[0].mxu0
    %v6579 = vpop.f32.mrb[0].mxu0
    %6580 = vdwg.mxu0
    %6581 = vmatprep.subr.bf16.mxu0 %v5504
    %6582 = vmatpush1.bf16.msra.mxu0 %v5503
    %6583 = vmatprep.subr.bf16.mxu0 %v5511
    %6584 = vmatpush1.bf16.msra.mxu0 %v5510
    %6585 = vmatprep.subr.bf16.mxu0 %v5518
    %6586 = vmatpush1.bf16.msra.mxu0 %v5517
    %6587 = vmatprep.subr.bf16.mxu0 %v5525
    %6588 = vmatpush1.bf16.msra.mxu0 %v5524
    %6589 = vmatprep.subr.bf16.mxu0 %v5532
    %6590 = vmatpush1.bf16.msra.mxu0 %v5531
    %6591 = vmatprep.subr.bf16.mxu0 %v5539
    %6592 = vmatpush1.bf16.msra.mxu0 %v5538
    %6593 = vmatprep.subr.bf16.mxu0 %v5546
    %6594 = vmatpush1.bf16.msra.mxu0 %v5545
    %6595 = vmatprep.subr.bf16.mxu0 %v5553
    %6596 = vmatpush1.bf16.msra.mxu0 %v5552
    %6597 = vmatprep.subr.bf16.mxu0 %v5560
    %6598 = vmatpush1.bf16.msra.mxu0 %v5559
    %6599 = vmatprep.subr.bf16.mxu0 %v5567
    %6600 = vmatpush1.bf16.msra.mxu0 %v5566
    %6601 = vmatprep.subr.bf16.mxu0 %v5574
    %6602 = vmatpush1.bf16.msra.mxu0 %v5573
    %6603 = vmatprep.subr.bf16.mxu0 %v5581
    %6604 = vmatpush1.bf16.msra.mxu0 %v5580
    %6605 = vmatprep.subr.bf16.mxu0 %v5588
    %6606 = vmatpush1.bf16.msra.mxu0 %v5587
    %6607 = vmatprep.subr.bf16.mxu0 %v5595
    %6608 = vmatpush1.bf16.msra.mxu0 %v5594
    %6609 = vmatprep.subr.bf16.mxu0 %v5602
    %6610 = vmatpush1.bf16.msra.mxu0 %v5601
    %6611 = vmatprep.subr.bf16.mxu0 %v5609
    %6612 = vmatpush1.bf16.msra.mxu0 %v5608
    %6613 = vmatprep.mubr.bf16.mxu0 %v3315
    %6614 = vmatmul.mubr.bf16.gmra.mrb[0].mxu0 %v3314
    %v6615 = vpop.f32.mrb[0].mxu0
    %v6616 = vadd.f32 %v6575, %v6615
    %v6617 = vpop.f32.mrb[0].mxu0
    %v6618 = vadd.f32 %v6577, %v6617
    %v6619 = vpop.f32.mrb[0].mxu0
    %v6620 = vpop.f32.mrb[0].mxu0
    %6621 = vdwg.mxu0
    %6622 = vmatprep.subr.bf16.mxu0 %v5616
    %6623 = vmatpush1.bf16.msra.mxu0 %v5615
    %6624 = vmatprep.subr.bf16.mxu0 %v5623
    %6625 = vmatpush1.bf16.msra.mxu0 %v5622
    %6626 = vmatprep.subr.bf16.mxu0 %v5630
    %6627 = vmatpush1.bf16.msra.mxu0 %v5629
    %6628 = vmatprep.subr.bf16.mxu0 %v5637
    %6629 = vmatpush1.bf16.msra.mxu0 %v5636
    %6630 = vmatprep.subr.bf16.mxu0 %v5644
    %6631 = vmatpush1.bf16.msra.mxu0 %v5643
    %6632 = vmatprep.subr.bf16.mxu0 %v5651
    %6633 = vmatpush1.bf16.msra.mxu0 %v5650
    %6634 = vmatprep.subr.bf16.mxu0 %v5658
    %6635 = vmatpush1.bf16.msra.mxu0 %v5657
    %6636 = vmatprep.subr.bf16.mxu0 %v5665
    %6637 = vmatpush1.bf16.msra.mxu0 %v5664
    %6638 = vmatprep.subr.bf16.mxu0 %v5672
    %6639 = vmatpush1.bf16.msra.mxu0 %v5671
    %6640 = vmatprep.subr.bf16.mxu0 %v5679
    %6641 = vmatpush1.bf16.msra.mxu0 %v5678
    %6642 = vmatprep.subr.bf16.mxu0 %v5686
    %6643 = vmatpush1.bf16.msra.mxu0 %v5685
    %6644 = vmatprep.subr.bf16.mxu0 %v5693
    %6645 = vmatpush1.bf16.msra.mxu0 %v5692
    %6646 = vmatprep.subr.bf16.mxu0 %v5700
    %6647 = vmatpush1.bf16.msra.mxu0 %v5699
    %6648 = vmatprep.subr.bf16.mxu0 %v5707
    %6649 = vmatpush1.bf16.msra.mxu0 %v5706
    %6650 = vmatprep.subr.bf16.mxu0 %v5714
    %6651 = vmatpush1.bf16.msra.mxu0 %v5713
    %6652 = vmatprep.subr.bf16.mxu0 %v5721
    %6653 = vmatpush1.bf16.msra.mxu0 %v5720
    %6654 = vmatprep.mubr.bf16.mxu0 %v3317
    %6655 = vmatmul.mubr.bf16.gmra.mrb[0].mxu0 %v3316
    %v6656 = vpop.f32.mrb[0].mxu0
    %v6657 = vadd.f32 %v6616, %v6656
    %v6658 = vpop.f32.mrb[0].mxu0
    %v6659 = vadd.f32 %v6618, %v6658
    %v6660 = vpop.f32.mrb[0].mxu0
    %v6661 = vpop.f32.mrb[0].mxu0
    %6662 = vdwg.mxu0
    %6663 = vmatprep.subr.bf16.mxu0 0
    %6664 = vmatpush1.bf16.msra.mxu0 %v5281
    %6665 = vmatprep.subr.bf16.mxu0 0
    %6666 = vmatpush1.bf16.msra.mxu0 %v5288
    %6667 = vmatprep.subr.bf16.mxu0 0
    %6668 = vmatpush1.bf16.msra.mxu0 %v5295
    %6669 = vmatprep.subr.bf16.mxu0 0
    %6670 = vmatpush1.bf16.msra.mxu0 %v5302
    %6671 = vmatprep.subr.bf16.mxu0 0
    %6672 = vmatpush1.bf16.msra.mxu0 %v5309
    %6673 = vmatprep.subr.bf16.mxu0 0
    %6674 = vmatpush1.bf16.msra.mxu0 %v5316
    %6675 = vmatprep.subr.bf16.mxu0 0
    %6676 = vmatpush1.bf16.msra.mxu0 %v5323
    %6677 = vmatprep.subr.bf16.mxu0 0
    %6678 = vmatpush1.bf16.msra.mxu0 %v5330
    %6679 = vmatprep.subr.bf16.mxu0 0
    %6680 = vmatpush1.bf16.msra.mxu0 %v5337
    %6681 = vmatprep.subr.bf16.mxu0 0
    %6682 = vmatpush1.bf16.msra.mxu0 %v5344
    %6683 = vmatprep.subr.bf16.mxu0 0
    %6684 = vmatpush1.bf16.msra.mxu0 %v5351
    %6685 = vmatprep.subr.bf16.mxu0 0
    %6686 = vmatpush1.bf16.msra.mxu0 %v5358
    %6687 = vmatprep.subr.bf16.mxu0 0
    %6688 = vmatpush1.bf16.msra.mxu0 %v5365
    %6689 = vmatprep.subr.bf16.mxu0 0
    %6690 = vmatpush1.bf16.msra.mxu0 %v5372
    %6691 = vmatprep.subr.bf16.mxu0 0
    %6692 = vmatpush1.bf16.msra.mxu0 %v5379
    %6693 = vmatprep.subr.bf16.mxu0 0
    %6694 = vmatpush1.bf16.msra.mxu0 %v5386
    %6695 = vmatprep.mubr.bf16.mxu0 %v3311
    %6696 = vmatmul.mubr.bf16.gmra.mrb[0].mxu0 %v3310
    %v6697 = vpop.f32.mrb[0].mxu0
    %v6698 = vadd.f32 %v3859, %v6697
    %v6699 = vpop.f32.mrb[0].mxu0
    %v6700 = vpop.f32.mrb[0].mxu0
    %v6701 = vpop.f32.mrb[0].mxu0
    %6702 = vdwg.mxu0
    %6703 = vmatprep.subr.bf16.mxu0 0
    %6704 = vmatpush1.bf16.msra.mxu0 %v5393
    %6705 = vmatprep.subr.bf16.mxu0 0
    %6706 = vmatpush1.bf16.msra.mxu0 %v5400
    %6707 = vmatprep.subr.bf16.mxu0 0
    %6708 = vmatpush1.bf16.msra.mxu0 %v5407
    %6709 = vmatprep.subr.bf16.mxu0 0
    %6710 = vmatpush1.bf16.msra.mxu0 %v5414
    %6711 = vmatprep.subr.bf16.mxu0 0
    %6712 = vmatpush1.bf16.msra.mxu0 %v5421
    %6713 = vmatprep.subr.bf16.mxu0 0
    %6714 = vmatpush1.bf16.msra.mxu0 %v5428
    %6715 = vmatprep.subr.bf16.mxu0 0
    %6716 = vmatpush1.bf16.msra.mxu0 %v5435
    %6717 = vmatprep.subr.bf16.mxu0 0
    %6718 = vmatpush1.bf16.msra.mxu0 %v5442
    %6719 = vmatprep.subr.bf16.mxu0 0
    %6720 = vmatpush1.bf16.msra.mxu0 %v5449
    %6721 = vmatprep.subr.bf16.mxu0 0
    %6722 = vmatpush1.bf16.msra.mxu0 %v5456
    %6723 = vmatprep.subr.bf16.mxu0 0
    %6724 = vmatpush1.bf16.msra.mxu0 %v5463
    %6725 = vmatprep.subr.bf16.mxu0 0
    %6726 = vmatpush1.bf16.msra.mxu0 %v5470
    %6727 = vmatprep.subr.bf16.mxu0 0
    %6728 = vmatpush1.bf16.msra.mxu0 %v5477
    %6729 = vmatprep.subr.bf16.mxu0 0
    %6730 = vmatpush1.bf16.msra.mxu0 %v5484
    %6731 = vmatprep.subr.bf16.mxu0 0
    %6732 = vmatpush1.bf16.msra.mxu0 %v5491
    %6733 = vmatprep.subr.bf16.mxu0 0
    %6734 = vmatpush1.bf16.msra.mxu0 %v5498
    %6735 = vmatprep.mubr.bf16.mxu0 %v3313
    %6736 = vmatmul.mubr.bf16.gmra.mrb[0].mxu0 %v3312
    %v6737 = vpop.f32.mrb[0].mxu0
    %v6738 = vadd.f32 %v6698, %v6737
    %v6739 = vpop.f32.mrb[0].mxu0
    %v6740 = vpop.f32.mrb[0].mxu0
    %v6741 = vpop.f32.mrb[0].mxu0
    %6742 = vdwg.mxu0
    %6743 = vmatprep.subr.bf16.mxu0 0
    %6744 = vmatpush1.bf16.msra.mxu0 %v5505
    %6745 = vmatprep.subr.bf16.mxu0 0
    %6746 = vmatpush1.bf16.msra.mxu0 %v5512
    %6747 = vmatprep.subr.bf16.mxu0 0
    %6748 = vmatpush1.bf16.msra.mxu0 %v5519
    %6749 = vmatprep.subr.bf16.mxu0 0
    %6750 = vmatpush1.bf16.msra.mxu0 %v5526
    %6751 = vmatprep.subr.bf16.mxu0 0
    %6752 = vmatpush1.bf16.msra.mxu0 %v5533
    %6753 = vmatprep.subr.bf16.mxu0 0
    %6754 = vmatpush1.bf16.msra.mxu0 %v5540
    %6755 = vmatprep.subr.bf16.mxu0 0
    %6756 = vmatpush1.bf16.msra.mxu0 %v5547
    %6757 = vmatprep.subr.bf16.mxu0 0
    %6758 = vmatpush1.bf16.msra.mxu0 %v5554
    %6759 = vmatprep.subr.bf16.mxu0 0
    %6760 = vmatpush1.bf16.msra.mxu0 %v5561
    %6761 = vmatprep.subr.bf16.mxu0 0
    %6762 = vmatpush1.bf16.msra.mxu0 %v5568
    %6763 = vmatprep.subr.bf16.mxu0 0
    %6764 = vmatpush1.bf16.msra.mxu0 %v5575
    %6765 = vmatprep.subr.bf16.mxu0 0
    %6766 = vmatpush1.bf16.msra.mxu0 %v5582
    %6767 = vmatprep.subr.bf16.mxu0 0
    %6768 = vmatpush1.bf16.msra.mxu0 %v5589
    %6769 = vmatprep.subr.bf16.mxu0 0
    %6770 = vmatpush1.bf16.msra.mxu0 %v5596
    %6771 = vmatprep.subr.bf16.mxu0 0
    %6772 = vmatpush1.bf16.msra.mxu0 %v5603
    %6773 = vmatprep.subr.bf16.mxu0 0
    %6774 = vmatpush1.bf16.msra.mxu0 %v5610
    %6775 = vmatprep.mubr.bf16.mxu0 %v3315
    %6776 = vmatmul.mubr.bf16.gmra.mrb[0].mxu0 %v3314
    %v6777 = vpop.f32.mrb[0].mxu0
    %v6778 = vadd.f32 %v6738, %v6777
    %v6779 = vpop.f32.mrb[0].mxu0
    %v6780 = vpop.f32.mrb[0].mxu0
    %v6781 = vpop.f32.mrb[0].mxu0
    %6782 = vdwg.mxu0
    %6783 = vmatprep.subr.bf16.mxu0 0
    %6784 = vmatpush1.bf16.msra.mxu0 %v5617
    %6785 = vmatprep.subr.bf16.mxu0 0
    %6786 = vmatpush1.bf16.msra.mxu0 %v5624
    %6787 = vmatprep.subr.bf16.mxu0 0
    %6788 = vmatpush1.bf16.msra.mxu0 %v5631
    %6789 = vmatprep.subr.bf16.mxu0 0
    %6790 = vmatpush1.bf16.msra.mxu0 %v5638
    %6791 = vmatprep.subr.bf16.mxu0 0
    %6792 = vmatpush1.bf16.msra.mxu0 %v5645
    %6793 = vmatprep.subr.bf16.mxu0 0
    %6794 = vmatpush1.bf16.msra.mxu0 %v5652
    %6795 = vmatprep.subr.bf16.mxu0 0
    %6796 = vmatpush1.bf16.msra.mxu0 %v5659
    %6797 = vmatprep.subr.bf16.mxu0 0
    %6798 = vmatpush1.bf16.msra.mxu0 %v5666
    %6799 = vmatprep.subr.bf16.mxu0 0
    %6800 = vmatpush1.bf16.msra.mxu0 %v5673
    %6801 = vmatprep.subr.bf16.mxu0 0
    %6802 = vmatpush1.bf16.msra.mxu0 %v5680
    %6803 = vmatprep.subr.bf16.mxu0 0
    %6804 = vmatpush1.bf16.msra.mxu0 %v5687
    %6805 = vmatprep.subr.bf16.mxu0 0
    %6806 = vmatpush1.bf16.msra.mxu0 %v5694
    %6807 = vmatprep.subr.bf16.mxu0 0
    %6808 = vmatpush1.bf16.msra.mxu0 %v5701
    %6809 = vmatprep.subr.bf16.mxu0 0
    %6810 = vmatpush1.bf16.msra.mxu0 %v5708
    %6811 = vmatprep.subr.bf16.mxu0 0
    %6812 = vmatpush1.bf16.msra.mxu0 %v5715
    %6813 = vmatprep.subr.bf16.mxu0 0
    %6814 = vmatpush1.bf16.msra.mxu0 %v5722
    %6815 = vmatprep.mubr.bf16.mxu0 %v3317
    %6816 = vmatmul.mubr.bf16.gmra.mrb[0].mxu0 %v3316
    %v6817 = vpop.f32.mrb[0].mxu0
    %v6818 = vadd.f32 %v6778, %v6817
    %v6819 = vpop.f32.mrb[0].mxu0
    %v6820 = vpop.f32.mrb[0].mxu0
    %v6821 = vpop.f32.mrb[0].mxu0
    %6822 = vdwg.mxu0
    %v6823 = vmax.f32 %v6329, 0.0
    %v6824 = vmax.f32 %v6331, 0.0
    %v6825 = vmax.f32 %v6493, 0.0
    %v6826 = vmax.f32 %v6495, 0.0
    %v6827 = vmax.f32 %v6657, 0.0
    %v6828 = vmax.f32 %v6659, 0.0
    %v6829 = vmax.f32 %v6818, 0.0
    %v6830 = vpack.c.bf16 %v6823, %v6823
    %v6831 = vpack.c.bf16 %v6824, %v6824
    %v6832 = vpack.c.bf16 %v6825, %v6825
    %v6833 = vpack.c.bf16 %v6826, %v6826
    %v6834 = vpack.c.bf16 %v6827, %v6827
    %v6835 = vpack.c.bf16 %v6828, %v6828
    %v6836 = vpack.c.bf16 %v6829, %v6829
    %v6844 = vcombine.low %v6830, %v6831
    %v6845 = vcombine.low %v6832, %v6833
    %v6846 = vcombine.low %v6834, %v6835
    %v6848 = vunpack.c.l.s4 1966171168
    %v6849 = vunpack.c.0.s8 %v6848
    %v6850 = vlaneseq
    %v6851 = vshrl.u32 %v6850, 7
    %v6852 = vsub.s32 %v6849, %v6851
    %v6853 = vrot.slane %v6844, %v6852
    %v6855 = vunpack.c.l.s4 1966171168
    %v6856 = vunpack.c.0.s8 %v6855
    %v6857 = vlaneseq
    %v6858 = vshrl.u32 %v6857, 7
    %v6859 = vsub.s32 %v6856, %v6858
    %v6860 = vrot.slane %v6845, %v6859
    %v6862 = vunpack.c.l.s4 1966171168
    %v6863 = vunpack.c.0.s8 %v6862
    %v6864 = vlaneseq
    %v6865 = vshrl.u32 %v6864, 7
    %v6866 = vsub.s32 %v6863, %v6865
    %v6867 = vrot.slane %v6846, %v6866
    %v6869 = vunpack.c.l.s4 1966171168
    %v6870 = vunpack.c.0.s8 %v6869
    %v6871 = vlaneseq
    %v6872 = vshrl.u32 %v6871, 7
    %v6873 = vsub.s32 %v6870, %v6872
    %v6874 = vrot.slane %v6836, %v6873
    %v6875 = vcombine.low %v6853, %v6860
    %v6876 = vcombine.low %v6867, %v6874
    %v6878 = vunpack.c.l.s4 1966171168
    %v6879 = vunpack.c.0.s8 %v6878
    %v6880 = vlaneseq
    %v6881 = vshrl.u32 %v6880, 7
    %v6882 = vsub.s32 %v6879, %v6881
    %v6883 = vrot.slane %v6875, %v6882
    %v6885 = vunpack.c.l.s4 1966171168
    %v6886 = vunpack.c.0.s8 %v6885
    %v6887 = vlaneseq
    %v6888 = vshrl.u32 %v6887, 7
    %v6889 = vsub.s32 %v6886, %v6888
    %v6890 = vrot.slane %v6876, %v6889
    %v6891 = vcombine.low %v6883, %v6890
    %6893 = vst [vmem:[#allocation11] sm:$0x7f] %v6891
    // Predicated region
    $region42: #{mlp_forward.1} parent=1 // pred_check
      _
    $region43: #{mlp_forward.1} parent=1 // pred_check_branch
      %6895 = sbr.rel (0) target = $region45
    $region44: #{mlp_forward.1} parent=1 // pred_region
      %s6897 = ssub.s32 112, 112
      %6898 = vsyncadd [#allocation4], %s6897
      %s6900 = sshll.u32 [#allocation11], 4
      %s6901 = int_to_ptr.vmem [resolvable:$true] %s6900
      %6903 = dma.vmem_to_hbm [thread:$0]  %s6901, 112, %s5, [#allocation4]
    $region45: #{mlp_forward.1} parent=1 // pred_fallthru
      _
    // Predicated region
    $region46: #{mlp_forward.1} parent=1 // pred_check
      _
    $region47: #{mlp_forward.1} parent=1 // pred_check_branch
      %6905 = sbr.rel (0) target = $region49
    $region48: #{mlp_forward.1} parent=1 // pred_region
      %6906 = dma.done [#allocation4], 112
    $region49: #{mlp_forward.1} parent=1 // pred_fallthru
      _
    %6907 = vsyncpa [#allocation3], 1
    %6908 = vsyncpa [#allocation6], 1
    %6909 = vsyncpa [#allocation9], 1
    %6910 = vsyncpa [#allocation4], 1

</llo_original>
